<compile_context>
chip_gen: v7x
topology: tpu7x:2x2x1
jax: 0.10.0
libtpu: 0.0.40
codegen_flags: <defaults>
</compile_context>

<pallas_src>
import functools

import jax
import jax.numpy as jnp
from jax import lax
from jax.experimental import pallas as pl
from jax.experimental.pallas import tpu as pltpu


# ----------------------------- helpers (traced inside kernels) ---------------

def _layer_norm(x, gamma, beta, eps):
    # One-pass statistics: var = E[x^2] - E[x]^2 (single XLU reduction pair).
    mean = jnp.mean(x, axis=-1, keepdims=True)
    mean_sq = jnp.mean(x * x, axis=-1, keepdims=True)
    var = jnp.maximum(mean_sq - mean * mean, 0.0)
    return (x - mean) * lax.rsqrt(var + eps) * gamma + beta


def _gelu_tanh(x):
    c = 0.7978845608028654  # sqrt(2/pi)
    return 0.5 * x * (1.0 + jnp.tanh(c * (x + 0.044715 * x * x * x)))


# ----------------------------- Pallas kernels --------------------------------

def _patch_embed_kernel(patches_ref, w_ref, pos_ref, out_ref):
    # patches: [S, K] bf16, w: [K, D] bf16, pos (= pos_emb + conv bias): [S, D] f32.
    y = jnp.dot(patches_ref[...], w_ref[...], preferred_element_type=jnp.float32)
    out_ref[...] = y + pos_ref[...]


def _encoder_stack_kernel(x_ref,
                          ln1_g_ref, ln1_b_ref,
                          wqkv_ref, bqkv_ref,
                          wo_ref, bo_ref,
                          ln2_g_ref, ln2_b_ref,
                          w1_ref, b1_ref, w2_ref, b2_ref,
                          pln_g_ref, pln_b_ref,
                          out_ref,
                          qkv_scr, attn_scr,
                          *, num_heads, head_dim, seq_real, eps):
    l = pl.program_id(1)
    num_layers = pl.num_programs(1)

    # Layer 0: load the embedded tokens into the resident output block.
    @pl.when(l == 0)
    def _():
        out_ref[...] = x_ref[...]

    Bt, S, D = out_ref.shape
    M = Bt * S
    dh = head_dim
    scale = dh ** -0.5

    x = out_ref[...].reshape(M, D)                       # [M, D] f32 (resident)

    # --- self-attention block (pre-LN) ---
    h = _layer_norm(x, ln1_g_ref[...], ln1_b_ref[...], eps)
    qkv = jnp.dot(h.astype(jnp.bfloat16), wqkv_ref[...],
                  preferred_element_type=jnp.float32) + bqkv_ref[...]
    qkv_scr[...] = qkv.astype(jnp.bfloat16)              # [M, 3D] bf16 scratch

    if seq_real < S:
        key_ok = lax.broadcasted_iota(jnp.int32, (S, S), 1) < seq_real

    # TODO(synk): for large Bt*num_heads replace this static unroll with a
    # lax.fori_loop using pl.ds lane offsets to bound code size; per-head temps
    # already die at the attn_scr store, so vreg live ranges stay small here.
    for b in range(Bt):
        r0 = b * S
        for hh in range(num_heads):
            c = hh * dh
            q_h = qkv_scr[r0:r0 + S, c:c + dh]                       # bf16
            k_h = qkv_scr[r0:r0 + S, D + c:D + c + dh]
            v_h = qkv_scr[r0:r0 + S, 2 * D + c:2 * D + c + dh]
            # scores = (q @ k^T) * scale, contraction on head_dim (NT matmul).
            s = lax.dot_general(q_h, k_h, (((1,), (1,)), ((), ())),
                                preferred_element_type=jnp.float32) * scale
            if seq_real < S:
                s = jnp.where(key_ok, s, -1e30)          # mask padded keys
            s = s - jnp.max(s, axis=-1, keepdims=True)
            p = jnp.exp(s)
            p = p * pl.reciprocal(jnp.sum(p, axis=-1, keepdims=True), approx=True)
            o_h = jnp.dot(p.astype(jnp.bfloat16), v_h,
                          preferred_element_type=jnp.float32)
            # Head result written at its lane offset -> one full-width out proj.
            attn_scr[r0:r0 + S, c:c + dh] = o_h.astype(jnp.bfloat16)

    attn = jnp.dot(attn_scr[...], wo_ref[...],
                   preferred_element_type=jnp.float32) + bo_ref[...]
    x = x + attn                                         # residual 1

    # --- MLP block (pre-LN) ---
    # TODO(synk): on v7x with ViT-L shapes, stream w1/w2 in I-chunks (extra
    # "arbitrary" grid axis or emit_pipeline) to fit the 64 MiB VMEM.
    h = _layer_norm(x, ln2_g_ref[...], ln2_b_ref[...], eps)
    h = jnp.dot(h.astype(jnp.bfloat16), w1_ref[...],
                preferred_element_type=jnp.float32) + b1_ref[...]
    h = _gelu_tanh(h)
    h = jnp.dot(h.astype(jnp.bfloat16), w2_ref[...],
                preferred_element_type=jnp.float32) + b2_ref[...]
    y = x + h                                            # residual 2

    out_ref[...] = y.reshape(Bt, S, D)

    # Final post-LayerNorm fused into the last layer (saves one HBM round trip).
    @pl.when(l == num_layers - 1)
    def _():
        out_ref[...] = _layer_norm(y, pln_g_ref[...], pln_b_ref[...],
                                   eps).reshape(Bt, S, D)


# ----------------------------- wrapper ---------------------------------------

def _pick_batch_block(B, max_bt=8):
    """Largest Bt dividing B that still leaves >= 2 outer blocks (v7x dual TC)."""
    for bt in range(min(max_bt, B), 0, -1):
        if B % bt == 0 and (B // bt) >= 2:
            return bt
    return B


def _encoder_vmem_limit(Bt, S, D, I):
    """Scoped-VMEM budget: double-buffered layer weights + resident hidden +
    scratches + big activation values, capped by the chip's physical VMEM."""
    layer_w = (3 * D * D + D * D + 2 * D * I) * 2        # bf16 matmul weights
    layer_b = (3 * D + D + I + D + 4 * D) * 4            # f32 biases / LN params
    hidden_blk = Bt * S * D * 4                          # f32 resident block
    scratch = Bt * S * (4 * D) * 2                       # bf16 qkv + attn scratch
    acts = Bt * S * max(3 * D, I) * 4 * 2                # f32 qkv / MLP temps
    est = 2 * (layer_w + layer_b) + 4 * hidden_blk + scratch + acts
    limit = max(32 * 1024 * 1024, int(est * 1.25))
    try:
        cap = int(pltpu.get_tpu_info().vmem_capacity_bytes * 0.85)
    except Exception:
        cap = 64 * 1024 * 1024                           # safe on every generation
    return min(limit, cap)


def prepare_params(params, cfg):
    """Stack per-layer params into [L, ...] arrays, fuse QKV, cast weights to bf16."""
    layers = params["layers"]

    def stk(name):
        return jnp.stack([lp[name] for lp in layers], axis=0)

    wq, wk, wv = stk("wq"), stk("wk"), stk("wv")          # [L, D, D]
    bq, bk, bv = stk("bq"), stk("bk"), stk("bv")          # [L, 1, D]
    packed = {
        "patch_w": params["patch_w"].astype(jnp.bfloat16),             # [K, D]
        # Conv bias folded into the positional embedding (one fewer stream).
        "pos_bias": (params["pos_emb"] + params["patch_b"]).astype(jnp.float32),
        "post_ln_g": params["post_ln_g"].astype(jnp.float32),          # [1, D]
        "post_ln_b": params["post_ln_b"].astype(jnp.float32),
        "ln1_g": stk("ln1_g"), "ln1_b": stk("ln1_b"),                  # [L, 1, D]
        "ln2_g": stk("ln2_g"), "ln2_b": stk("ln2_b"),
        # Fused, lane-dense QKV projection: [L, D, 3D] bf16 / [L, 1, 3D] f32.
        "wqkv": jnp.concatenate([wq, wk, wv], axis=-1).astype(jnp.bfloat16),
        "bqkv": jnp.concatenate([bq, bk, bv], axis=-1).astype(jnp.float32),
        # Full-width output projection [L, D, D] bf16.
        "wo": stk("wo").astype(jnp.bfloat16),
        "bo": stk("bo").astype(jnp.float32),                           # [L, 1, D]
        "w1": stk("w1").astype(jnp.bfloat16),                          # [L, D, I]
        "b1": stk("b1").astype(jnp.float32),                           # [L, 1, I]
        "w2": stk("w2").astype(jnp.bfloat16),                          # [L, I, D]
        "b2": stk("b2").astype(jnp.float32),                           # [L, 1, D]
    }
    return packed


def vision_transformer_forward(pixel_values, packed, cfg):
    B, C, Himg, Wimg = pixel_values.shape
    p = cfg["patch_size"]
    D = cfg["hidden_size"]
    I = cfg["intermediate_size"]
    H = cfg["num_attention_heads"]
    dh = D // H
    L = cfg["num_hidden_layers"]
    eps = cfg["layer_norm_eps"]
    Hp, Wp = Himg // p, Wimg // p
    N = Hp * Wp
    K = C * p * p
    S = ((N + 7) // 8) * 8          # pad sequence to a sublane multiple

    # -- glue: strided Conv2d == patch extraction + matmul, flatten order (c, kh, kw) --
    x = pixel_values.reshape(B, C, Hp, p, Wp, p)
    x = x.transpose(0, 2, 4, 1, 3, 5).reshape(B, N, K)
    if S != N:
        x = jnp.pad(x, ((0, 0), (0, S - N), (0, 0)))
    x = x.astype(jnp.bfloat16)

    pos = packed["pos_bias"]
    if S != N:
        pos = jnp.pad(pos, ((0, S - N), (0, 0)))

    hidden = pl.pallas_call(
        _patch_embed_kernel,
        out_shape=jax.ShapeDtypeStruct((B, S, D), jnp.float32),
        grid=(B,),
        in_specs=[
            pl.BlockSpec((None, S, K), lambda b: (b, 0, 0)),
            pl.BlockSpec((K, D), lambda b: (0, 0)),
            pl.BlockSpec((S, D), lambda b: (0, 0)),
        ],
        out_specs=pl.BlockSpec((None, S, D), lambda b: (b, 0, 0)),
        compiler_params=pltpu.CompilerParams(dimension_semantics=("parallel",)),
    )(x, packed["patch_w"], pos)

    # -- fused encoder stack (+ post-LN), grid=(B//Bt, L), hidden resident across L --
    Bt = _pick_batch_block(B)
    kern = functools.partial(_encoder_stack_kernel,
                             num_heads=H, head_dim=dh, seq_real=N, eps=eps)

    seq = pl.BlockSpec((Bt, S, D), lambda bb, l: (bb, 0, 0))
    lvec = lambda d: pl.BlockSpec((None, 1, d), lambda bb, l: (l, 0, 0))
    lmat = lambda r, c: pl.BlockSpec((None, r, c), lambda bb, l: (l, 0, 0))
    dvec = pl.BlockSpec((1, D), lambda bb, l: (0, 0))

    out = pl.pallas_call(
        kern,
        out_shape=jax.ShapeDtypeStruct((B, S, D), jnp.float32),
        grid=(B // Bt, L),
        in_specs=[
            seq,                               # hidden (read at l==0)
            lvec(D), lvec(D),                  # ln1 gamma, beta
            lmat(D, 3 * D), lvec(3 * D),       # fused wqkv, bqkv
            lmat(D, D), lvec(D),               # wo, bo
            lvec(D), lvec(D),                  # ln2 gamma, beta
            lmat(D, I), lvec(I),               # fc1
            lmat(I, D), lvec(D),               # fc2
            dvec, dvec,                        # post-LN gamma, beta
        ],
        out_specs=seq,
        scratch_shapes=[
            pltpu.VMEM((Bt * S, 3 * D), jnp.bfloat16),   # fused QKV
            pltpu.VMEM((Bt * S, D), jnp.bfloat16),       # per-head attn outputs
        ],
        compiler_params=pltpu.CompilerParams(
            dimension_semantics=("parallel", "arbitrary"),
            vmem_limit_bytes=_encoder_vmem_limit(Bt, S, D, I)),
    )(hidden,
      packed["ln1_g"], packed["ln1_b"],
      packed["wqkv"], packed["bqkv"],
      packed["wo"], packed["bo"],
      packed["ln2_g"], packed["ln2_b"],
      packed["w1"], packed["b1"], packed["w2"], packed["b2"],
      packed["post_ln_g"], packed["post_ln_b"])

    return out[:, :N, :]


# ----------------------------- pure-JAX reference ----------------------------

def reference_forward(pixel_values, packed, cfg):
    """Pure-JAX mirror of the kernel math (bf16 matmuls, exact softmax div)."""
    B, C, Himg, Wimg = pixel_values.shape
    p = cfg["patch_size"]
    D = cfg["hidden_size"]
    H = cfg["num_attention_heads"]
    dh = D // H
    L = cfg["num_hidden_layers"]
    eps = cfg["layer_norm_eps"]
    Hp, Wp = Himg // p, Wimg // p
    N = Hp * Wp
    K = C * p * p
    scale = dh ** -0.5

    xp = pixel_values.reshape(B, C, Hp, p, Wp, p)
    xp = xp.transpose(0, 2, 4, 1, 3, 5).reshape(B, N, K)
    x = jnp.dot(xp.astype(jnp.bfloat16), packed["patch_w"],
                preferred_element_type=jnp.float32) + packed["pos_bias"]

    for l in range(L):
        h = _layer_norm(x, packed["ln1_g"][l], packed["ln1_b"][l], eps)
        qkv = jnp.dot(h.astype(jnp.bfloat16), packed["wqkv"][l],
                      preferred_element_type=jnp.float32) + packed["bqkv"][l]
        qkv = qkv.astype(jnp.bfloat16)
        q = qkv[..., :D].reshape(B, N, H, dh)
        k = qkv[..., D:2 * D].reshape(B, N, H, dh)
        v = qkv[..., 2 * D:].reshape(B, N, H, dh)
        s = jnp.einsum("bqhd,bkhd->bhqk", q, k,
                       preferred_element_type=jnp.float32) * scale
        pr = jax.nn.softmax(s, axis=-1)
        ctx = jnp.einsum("bhqk,bkhd->bqhd", pr.astype(jnp.bfloat16), v,
                         preferred_element_type=jnp.float32)
        ctx = ctx.reshape(B, N, D).astype(jnp.bfloat16)
        attn = jnp.dot(ctx, packed["wo"][l],
                       preferred_element_type=jnp.float32) + packed["bo"][l]
        x = x + attn
        h = _layer_norm(x, packed["ln2_g"][l], packed["ln2_b"][l], eps)
        h = jnp.dot(h.astype(jnp.bfloat16), packed["w1"][l],
                    preferred_element_type=jnp.float32) + packed["b1"][l]
        h = _gelu_tanh(h)
        h = jnp.dot(h.astype(jnp.bfloat16), packed["w2"][l],
                    preferred_element_type=jnp.float32) + packed["b2"][l]
        x = x + h
    return _layer_norm(x, packed["post_ln_g"], packed["post_ln_b"], eps)


# ----------------------------- parameter init --------------------------------

def init_params(key, cfg):
    D = cfg["hidden_size"]
    I = cfg["intermediate_size"]
    C = cfg["num_channels"]
    p = cfg["patch_size"]
    N = (cfg["image_size"] // p) ** 2
    L = cfg["num_hidden_layers"]
    K = C * p * p

    def normal(k, shape, scale=0.02):
        return (scale * jax.random.normal(k, shape)).astype(jnp.float32)

    keys = jax.random.split(key, 4 + L)
    # Conv2d weight [D, C, p, p] flattened & transposed so the kernel does x @ W.
    conv_w = normal(keys[0], (D, C, p, p)).reshape(D, K)
    params = {
        "patch_w": conv_w.T,                               # [K, D]
        "patch_b": normal(keys[1], (1, D)),
        "pos_emb": normal(keys[2], (N, D)),
        "post_ln_g": jnp.ones((1, D), jnp.float32),
        "post_ln_b": jnp.zeros((1, D), jnp.float32),
        "layers": [],
    }
    for li in range(L):
        ks = jax.random.split(keys[4 + li], 8)
        # Linear weights stored pre-transposed to [in, out] (y = x @ W + b).
        lp = {
            "ln1_g": jnp.ones((1, D), jnp.float32),
            "ln1_b": jnp.zeros((1, D), jnp.float32),
            "wq": normal(ks[0], (D, D)), "bq": normal(ks[1], (1, D)),
            "wk": normal(ks[2], (D, D)), "bk": normal(ks[3], (1, D)),
            "wv": normal(ks[4], (D, D)), "bv": normal(ks[5], (1, D)),
            "wo": normal(ks[6], (D, D)), "bo": normal(ks[7], (1, D)),
            "ln2_g": jnp.ones((1, D), jnp.float32),
            "ln2_b": jnp.zeros((1, D), jnp.float32),
            "w1": normal(jax.random.fold_in(ks[0], 1), (D, I)),
            "b1": normal(jax.random.fold_in(ks[1], 1), (1, I)),
            "w2": normal(jax.random.fold_in(ks[2], 1), (I, D)),
            "b2": normal(jax.random.fold_in(ks[3], 1), (1, D)),
        }
        params["layers"].append(lp)
    return params


if __name__ == "__main__":
    key = jax.random.PRNGKey(0)

    test_cases = [
        # (cfg, batch): N=16 (already sublane-aligned), Bt=1, grid=(2, L)
        (dict(hidden_size=128, num_hidden_layers=2, num_attention_heads=4,
              intermediate_size=256, num_channels=3, image_size=32,
              patch_size=8, layer_norm_eps=1e-6), 2),
        # N=25 -> padded/masked to 32, batch-block Bt=2, grid=(2, L)
        (dict(hidden_size=128, num_hidden_layers=2, num_attention_heads=4,
              intermediate_size=256, num_channels=3, image_size=40,
              patch_size=8, layer_norm_eps=1e-6), 4),
    ]

    for idx, (cfg, B) in enumerate(test_cases):
        k_param, k_input, key = jax.random.split(jax.random.fold_in(key, idx), 3)
        params = init_params(k_param, cfg)
        packed = prepare_params(params, cfg)
        pixel_values = jax.random.normal(
            k_input,
            (B, cfg["num_channels"], cfg["image_size"], cfg["image_size"]),
            dtype=jnp.float32)

        fwd = jax.jit(functools.partial(vision_transformer_forward, cfg=cfg))
        out = jax.block_until_ready(fwd(pixel_values, packed))

        N = (cfg["image_size"] // cfg["patch_size"]) ** 2
        assert out.shape == (B, N, cfg["hidden_size"]), out.shape
        assert bool(jnp.all(jnp.isfinite(out)))

        ref = reference_forward(pixel_values, packed, cfg)
        err = float(jnp.max(jnp.abs(out - ref)))
        assert err < 3e-2, f"case {idx}: max abs err {err}"

    print("KERNEL_OK")
</pallas_src>

<mosaic_0001>
module attributes {stable_mosaic.version = 11 : i64} {
  func.func @_patch_embed_kernel(%arg0: i32, %arg1: memref<1x16x192xbf16, #tpu.memory_space<vmem>>, %arg2: memref<192x128xbf16, #tpu.memory_space<vmem>>, %arg3: memref<16x128xf32, #tpu.memory_space<vmem>>, %arg4: memref<1x16x128xf32, #tpu.memory_space<vmem>>) attributes {dimension_semantics = [#tpu.dimension_semantics<parallel>], iteration_bounds = array<i64: 2>, scalar_prefetch = 0 : i64, scratch_operands = 0 : i64, tpu.core_type = #tpu.core_type<tc>, window_params = [{transform_indices = @transform_0, window_bounds = array<i64: 1, 16, 192>}, {pipeline_mode = #tpu.pipeline_mode<synchronous>, transform_indices = @transform_1, window_bounds = array<i64: 192, 128>}, {pipeline_mode = #tpu.pipeline_mode<synchronous>, transform_indices = @transform_2, window_bounds = array<i64: 16, 128>}, {transform_indices = @transform_3, window_bounds = array<i64: 1, 16, 128>}]} {
    %c0 = arith.constant 0 : index
    %c0_0 = arith.constant 0 : index
    %c0_1 = arith.constant 0 : index
    %0 = vector.load %arg1[%c0, %c0_0, %c0_1] : memref<1x16x192xbf16, #tpu.memory_space<vmem>>, vector<1x16x192xbf16>
    %1 = vector.shape_cast %0 : vector<1x16x192xbf16> to vector<16x192xbf16>
    %c0_2 = arith.constant 0 : index
    %c0_3 = arith.constant 0 : index
    %2 = vector.load %arg2[%c0_2, %c0_3] : memref<192x128xbf16, #tpu.memory_space<vmem>>, vector<192x128xbf16>
    %cst = arith.constant dense<0.000000e+00> : vector<16x128xf32>
    %3 = tpu.matmul %1, %2, %cst {dimension_numbers = #tpu.dot_dimension_numbers<[1], [0], [0], [1], [0, 0, 1, 1], [], []>} : vector<16x192xbf16>, vector<192x128xbf16>, vector<16x128xf32> -> vector<16x128xf32>
    %c0_4 = arith.constant 0 : index
    %c0_5 = arith.constant 0 : index
    %4 = vector.load %arg3[%c0_4, %c0_5] : memref<16x128xf32, #tpu.memory_space<vmem>>, vector<16x128xf32>
    %5 = arith.addf %3, %4 : vector<16x128xf32>
    %c0_6 = arith.constant 0 : index
    %c0_7 = arith.constant 0 : index
    %c0_8 = arith.constant 0 : index
    %6 = vector.load %arg4[%c0_6, %c0_7, %c0_8] : memref<1x16x128xf32, #tpu.memory_space<vmem>>, vector<1x16x128xf32>
    %7 = vector.shape_cast %6 : vector<1x16x128xf32> to vector<16x128xf32>
    %8 = vector.shape_cast %5 : vector<16x128xf32> to vector<1x16x128xf32>
    tpu.vector_store %arg4[%c0_6, %c0_7, %c0_8], %8 {strides = array<i32>} : memref<1x16x128xf32, #tpu.memory_space<vmem>>, vector<1x16x128xf32>,
    return
  }
  func.func @transform_0(%arg0: i32) -> (i32, i32, i32) {
    %c0_i32 = arith.constant 0 : i32
    %c0_i32_0 = arith.constant 0 : i32
    %c0_i32_1 = arith.constant 0 : i32
    return %arg0, %c0_i32, %c0_i32_0 : i32, i32, i32
  }
  func.func @transform_1(%arg0: i32) -> (i32, i32) {
    %c0_i32 = arith.constant 0 : i32
    %c0_i32_0 = arith.constant 0 : i32
    %c0_i32_1 = arith.constant 0 : i32
    return %c0_i32, %c0_i32_0 : i32, i32
  }
  func.func @transform_2(%arg0: i32) -> (i32, i32) {
    %c0_i32 = arith.constant 0 : i32
    %c0_i32_0 = arith.constant 0 : i32
    %c0_i32_1 = arith.constant 0 : i32
    return %c0_i32, %c0_i32_0 : i32, i32
  }
  func.func @transform_3(%arg0: i32) -> (i32, i32, i32) {
    %c0_i32 = arith.constant 0 : i32
    %c0_i32_0 = arith.constant 0 : i32
    %c0_i32_1 = arith.constant 0 : i32
    return %arg0, %c0_i32, %c0_i32_0 : i32, i32, i32
  }
}

module attributes {stable_mosaic.version = 11 : i64} {
  func.func @_encoder_stack_kernel(%arg0: i32, %arg1: i32, %arg2: memref<1x16x128xf32, #tpu.memory_space<vmem>>, %arg3: memref<1x1x128xf32, #tpu.memory_space<vmem>>, %arg4: memref<1x1x128xf32, #tpu.memory_space<vmem>>, %arg5: memref<1x128x384xbf16, #tpu.memory_space<vmem>>, %arg6: memref<1x1x384xf32, #tpu.memory_space<vmem>>, %arg7: memref<1x128x128xbf16, #tpu.memory_space<vmem>>, %arg8: memref<1x1x128xf32, #tpu.memory_space<vmem>>, %arg9: memref<1x1x128xf32, #tpu.memory_space<vmem>>, %arg10: memref<1x1x128xf32, #tpu.memory_space<vmem>>, %arg11: memref<1x128x256xbf16, #tpu.memory_space<vmem>>, %arg12: memref<1x1x256xf32, #tpu.memory_space<vmem>>, %arg13: memref<1x256x128xbf16, #tpu.memory_space<vmem>>, %arg14: memref<1x1x128xf32, #tpu.memory_space<vmem>>, %arg15: memref<1x128xf32, #tpu.memory_space<vmem>>, %arg16: memref<1x128xf32, #tpu.memory_space<vmem>>, %arg17: memref<1x16x128xf32, #tpu.memory_space<vmem>>, %arg18: memref<16x384xbf16, #tpu.memory_space<vmem>>, %arg19: memref<16x128xbf16, #tpu.memory_space<vmem>>) attributes {dimension_semantics = [#tpu.dimension_semantics<parallel>, #tpu.dimension_semantics<arbitrary>], iteration_bounds = array<i64: 2, 2>, scalar_prefetch = 0 : i64, scratch_operands = 2 : i64, tpu.core_type = #tpu.core_type<tc>, window_params = [{transform_indices = @transform_0, window_bounds = array<i64: 1, 16, 128>}, {transform_indices = @transform_1, window_bounds = array<i64: 1, 1, 128>}, {transform_indices = @transform_2, window_bounds = array<i64: 1, 1, 128>}, {transform_indices = @transform_3, window_bounds = array<i64: 1, 128, 384>}, {transform_indices = @transform_4, window_bounds = array<i64: 1, 1, 384>}, {transform_indices = @transform_5, window_bounds = array<i64: 1, 128, 128>}, {transform_indices = @transform_6, window_bounds = array<i64: 1, 1, 128>}, {transform_indices = @transform_7, window_bounds = array<i64: 1, 1, 128>}, {transform_indices = @transform_8, window_bounds = array<i64: 1, 1, 128>}, {transform_indices = @transform_9, window_bounds = array<i64: 1, 128, 256>}, {transform_indices = @transform_10, window_bounds = array<i64: 1, 1, 256>}, {transform_indices = @transform_11, window_bounds = array<i64: 1, 256, 128>}, {transform_indices = @transform_12, window_bounds = array<i64: 1, 1, 128>}, {pipeline_mode = #tpu.pipeline_mode<synchronous>, transform_indices = @transform_13, window_bounds = array<i64: 1, 128>}, {pipeline_mode = #tpu.pipeline_mode<synchronous>, transform_indices = @transform_14, window_bounds = array<i64: 1, 128>}, {transform_indices = @transform_15, window_bounds = array<i64: 1, 16, 128>}]} {
    %c0_i32 = arith.constant 0 : i32
    %0 = arith.cmpi eq, %arg1, %c0_i32 : i32
    %1 = arith.extui %0 : i1 to i32
    %c0_i32_0 = arith.constant 0 : i32
    %2 = arith.cmpi ne, %1, %c0_i32_0 : i32
    scf.if %2 {
      %c0_107 = arith.constant 0 : index
      %c0_108 = arith.constant 0 : index
      %c0_109 = arith.constant 0 : index
      %195 = vector.load %arg2[%c0_107, %c0_108, %c0_109] : memref<1x16x128xf32, #tpu.memory_space<vmem>>, vector<1x16x128xf32>
      %c0_110 = arith.constant 0 : index
      %c0_111 = arith.constant 0 : index
      %c0_112 = arith.constant 0 : index
      %196 = vector.load %arg17[%c0_110, %c0_111, %c0_112] : memref<1x16x128xf32, #tpu.memory_space<vmem>>, vector<1x16x128xf32>
      tpu.vector_store %arg17[%c0_110, %c0_111, %c0_112], %195 {strides = array<i32>} : memref<1x16x128xf32, #tpu.memory_space<vmem>>, vector<1x16x128xf32>,
    } else {
    }
    %c0 = arith.constant 0 : index
    %c0_1 = arith.constant 0 : index
    %c0_2 = arith.constant 0 : index
    %3 = vector.load %arg17[%c0, %c0_1, %c0_2] : memref<1x16x128xf32, #tpu.memory_space<vmem>>, vector<1x16x128xf32>
    %4 = vector.shape_cast %3 : vector<1x16x128xf32> to vector<16x128xf32>
    %c0_3 = arith.constant 0 : index
    %c0_4 = arith.constant 0 : index
    %c0_5 = arith.constant 0 : index
    %5 = vector.load %arg3[%c0_3, %c0_4, %c0_5] : memref<1x1x128xf32, #tpu.memory_space<vmem>>, vector<1x1x128xf32>
    %6 = vector.shape_cast %5 : vector<1x1x128xf32> to vector<1x128xf32>
    %c0_6 = arith.constant 0 : index
    %c0_7 = arith.constant 0 : index
    %c0_8 = arith.constant 0 : index
    %7 = vector.load %arg4[%c0_6, %c0_7, %c0_8] : memref<1x1x128xf32, #tpu.memory_space<vmem>>, vector<1x1x128xf32>
    %8 = vector.shape_cast %7 : vector<1x1x128xf32> to vector<1x128xf32>
    %cst = arith.constant dense<0.000000e+00> : vector<16xf32>
    %9 = vector.multi_reduction <add>, %4, %cst [1] : vector<16x128xf32> to vector<16xf32>
    %10 = vector.shape_cast %9 : vector<16xf32> to vector<16x1xf32>
    %cst_9 = arith.constant 1.280000e+02 : f32
    %11 = vector.broadcast %cst_9 : f32 to vector<16x1xf32>
    %12 = arith.divf %10, %11 : vector<16x1xf32>
    %13 = arith.mulf %4, %4 : vector<16x128xf32>
    %cst_10 = arith.constant dense<0.000000e+00> : vector<16xf32>
    %14 = vector.multi_reduction <add>, %13, %cst_10 [1] : vector<16x128xf32> to vector<16xf32>
    %15 = vector.shape_cast %14 : vector<16xf32> to vector<16x1xf32>
    %cst_11 = arith.constant 1.280000e+02 : f32
    %16 = vector.broadcast %cst_11 : f32 to vector<16x1xf32>
    %17 = arith.divf %15, %16 : vector<16x1xf32>
    %18 = arith.mulf %12, %12 : vector<16x1xf32>
    %19 = arith.subf %17, %18 : vector<16x1xf32>
    %cst_12 = arith.constant 0.000000e+00 : f32
    %20 = vector.broadcast %cst_12 : f32 to vector<16x1xf32>
    %21 = arith.maximumf %19, %20 : vector<16x1xf32>
    %22 = vector.broadcast %12 : vector<16x1xf32> to vector<16x128xf32>
    %23 = arith.subf %4, %22 : vector<16x128xf32>
    %cst_13 = arith.constant 9.99999997E-7 : f32
    %24 = vector.broadcast %cst_13 : f32 to vector<16x1xf32>
    %25 = arith.addf %21, %24 : vector<16x1xf32>
    %26 = math.rsqrt %25 : vector<16x1xf32>
    %27 = vector.broadcast %26 : vector<16x1xf32> to vector<16x128xf32>
    %28 = arith.mulf %23, %27 : vector<16x128xf32>
    %29 = vector.broadcast %6 : vector<1x128xf32> to vector<16x128xf32>
    %30 = arith.mulf %28, %29 : vector<16x128xf32>
    %31 = vector.broadcast %8 : vector<1x128xf32> to vector<16x128xf32>
    %32 = arith.addf %30, %31 : vector<16x128xf32>
    %33 = arith.truncf %32 : vector<16x128xf32> to vector<16x128xbf16>
    %c0_14 = arith.constant 0 : index
    %c0_15 = arith.constant 0 : index
    %c0_16 = arith.constant 0 : index
    %34 = vector.load %arg5[%c0_14, %c0_15, %c0_16] : memref<1x128x384xbf16, #tpu.memory_space<vmem>>, vector<1x128x384xbf16>
    %35 = vector.shape_cast %34 : vector<1x128x384xbf16> to vector<128x384xbf16>
    %cst_17 = arith.constant dense<0.000000e+00> : vector<16x384xf32>
    %36 = tpu.matmul %33, %35, %cst_17 {dimension_numbers = #tpu.dot_dimension_numbers<[1], [0], [0], [1], [0, 0, 1, 1], [], []>} : vector<16x128xbf16>, vector<128x384xbf16>, vector<16x384xf32> -> vector<16x384xf32>
    %c0_18 = arith.constant 0 : index
    %c0_19 = arith.constant 0 : index
    %c0_20 = arith.constant 0 : index
    %37 = vector.load %arg6[%c0_18, %c0_19, %c0_20] : memref<1x1x384xf32, #tpu.memory_space<vmem>>, vector<1x1x384xf32>
    %38 = vector.shape_cast %37 : vector<1x1x384xf32> to vector<1x384xf32>
    %39 = vector.broadcast %38 : vector<1x384xf32> to vector<16x384xf32>
    %40 = arith.addf %36, %39 : vector<16x384xf32>
    %41 = arith.truncf %40 : vector<16x384xf32> to vector<16x384xbf16>
    %c0_21 = arith.constant 0 : index
    %c0_22 = arith.constant 0 : index
    %42 = vector.load %arg18[%c0_21, %c0_22] : memref<16x384xbf16, #tpu.memory_space<vmem>>, vector<16x384xbf16>
    tpu.vector_store %arg18[%c0_21, %c0_22], %41 {strides = array<i32>} : memref<16x384xbf16, #tpu.memory_space<vmem>>, vector<16x384xbf16>,
    %c0_23 = arith.constant 0 : index
    %c0_24 = arith.constant 0 : index
    %43 = vector.load %arg18[%c0_23, %c0_24] : memref<16x384xbf16, #tpu.memory_space<vmem>>, vector<16x32xbf16>
    %c0_25 = arith.constant 0 : index
    %c128 = arith.constant 128 : index
    %44 = vector.load %arg18[%c0_25, %c128] : memref<16x384xbf16, #tpu.memory_space<vmem>>, vector<16x32xbf16>
    %c0_26 = arith.constant 0 : index
    %c256 = arith.constant 256 : index
    %45 = vector.load %arg18[%c0_26, %c256] : memref<16x384xbf16, #tpu.memory_space<vmem>>, vector<16x32xbf16>
    %cst_27 = arith.constant dense<0.000000e+00> : vector<16x16xf32>
    %46 = tpu.matmul %43, %44, %cst_27 {dimension_numbers = #tpu.dot_dimension_numbers<[1], [1], [0], [0], [0, 0, 1, 0], [], []>} : vector<16x32xbf16>, vector<16x32xbf16>, vector<16x16xf32> -> vector<16x16xf32>
    %cst_28 = arith.constant 0.176776692 : f32
    %47 = vector.broadcast %cst_28 : f32 to vector<16x16xf32>
    %48 = arith.mulf %46, %47 : vector<16x16xf32>
    %cst_29 = arith.constant dense<0xFF800000> : vector<16xf32>
    %49 = vector.multi_reduction <maximumf>, %48, %cst_29 [1] : vector<16x16xf32> to vector<16xf32>
    %50 = vector.shape_cast %49 : vector<16xf32> to vector<16x1xf32>
    %51 = vector.broadcast %50 : vector<16x1xf32> to vector<16x16xf32>
    %52 = arith.subf %48, %51 : vector<16x16xf32>
    %53 = math.exp %52 : vector<16x16xf32>
    %cst_30 = arith.constant dense<0.000000e+00> : vector<16xf32>
    %54 = vector.multi_reduction <add>, %53, %cst_30 [1] : vector<16x16xf32> to vector<16xf32>
    %55 = vector.shape_cast %54 : vector<16xf32> to vector<16x1xf32>
    %56 = tpu.reciprocal %55 {approx = true} : vector<16x1xf32> -> vector<16x1xf32>
    %57 = vector.broadcast %56 : vector<16x1xf32> to vector<16x16xf32>
    %58 = arith.mulf %53, %57 : vector<16x16xf32>
    %59 = arith.truncf %58 : vector<16x16xf32> to vector<16x16xbf16>
    %cst_31 = arith.constant dense<0.000000e+00> : vector<16x32xf32>
    %60 = tpu.matmul %59, %45, %cst_31 {dimension_numbers = #tpu.dot_dimension_numbers<[1], [0], [0], [1], [0, 0, 1, 1], [], []>} : vector<16x16xbf16>, vector<16x32xbf16>, vector<16x32xf32> -> vector<16x32xf32>
    %61 = arith.truncf %60 : vector<16x32xf32> to vector<16x32xbf16>
    %c0_32 = arith.constant 0 : index
    %c0_33 = arith.constant 0 : index
    %62 = vector.load %arg19[%c0_32, %c0_33] : memref<16x128xbf16, #tpu.memory_space<vmem>>, vector<16x32xbf16>
    tpu.vector_store %arg19[%c0_32, %c0_33], %61 {strides = array<i32>} : memref<16x128xbf16, #tpu.memory_space<vmem>>, vector<16x32xbf16>,
    %c0_34 = arith.constant 0 : index
    %c32 = arith.constant 32 : index
    %63 = vector.load %arg18[%c0_34, %c32] : memref<16x384xbf16, #tpu.memory_space<vmem>>, vector<16x32xbf16>
    %c0_35 = arith.constant 0 : index
    %c160 = arith.constant 160 : index
    %64 = vector.load %arg18[%c0_35, %c160] : memref<16x384xbf16, #tpu.memory_space<vmem>>, vector<16x32xbf16>
    %c0_36 = arith.constant 0 : index
    %c288 = arith.constant 288 : index
    %65 = vector.load %arg18[%c0_36, %c288] : memref<16x384xbf16, #tpu.memory_space<vmem>>, vector<16x32xbf16>
    %cst_37 = arith.constant dense<0.000000e+00> : vector<16x16xf32>
    %66 = tpu.matmul %63, %64, %cst_37 {dimension_numbers = #tpu.dot_dimension_numbers<[1], [1], [0], [0], [0, 0, 1, 0], [], []>} : vector<16x32xbf16>, vector<16x32xbf16>, vector<16x16xf32> -> vector<16x16xf32>
    %cst_38 = arith.constant 0.176776692 : f32
    %67 = vector.broadcast %cst_38 : f32 to vector<16x16xf32>
    %68 = arith.mulf %66, %67 : vector<16x16xf32>
    %cst_39 = arith.constant dense<0xFF800000> : vector<16xf32>
    %69 = vector.multi_reduction <maximumf>, %68, %cst_39 [1] : vector<16x16xf32> to vector<16xf32>
    %70 = vector.shape_cast %69 : vector<16xf32> to vector<16x1xf32>
    %71 = vector.broadcast %70 : vector<16x1xf32> to vector<16x16xf32>
    %72 = arith.subf %68, %71 : vector<16x16xf32>
    %73 = math.exp %72 : vector<16x16xf32>
    %cst_40 = arith.constant dense<0.000000e+00> : vector<16xf32>
    %74 = vector.multi_reduction <add>, %73, %cst_40 [1] : vector<16x16xf32> to vector<16xf32>
    %75 = vector.shape_cast %74 : vector<16xf32> to vector<16x1xf32>
    %76 = tpu.reciprocal %75 {approx = true} : vector<16x1xf32> -> vector<16x1xf32>
    %77 = vector.broadcast %76 : vector<16x1xf32> to vector<16x16xf32>
    %78 = arith.mulf %73, %77 : vector<16x16xf32>
    %79 = arith.truncf %78 : vector<16x16xf32> to vector<16x16xbf16>
    %cst_41 = arith.constant dense<0.000000e+00> : vector<16x32xf32>
    %80 = tpu.matmul %79, %65, %cst_41 {dimension_numbers = #tpu.dot_dimension_numbers<[1], [0], [0], [1], [0, 0, 1, 1], [], []>} : vector<16x16xbf16>, vector<16x32xbf16>, vector<16x32xf32> -> vector<16x32xf32>
    %81 = arith.truncf %80 : vector<16x32xf32> to vector<16x32xbf16>
    %c0_42 = arith.constant 0 : index
    %c32_43 = arith.constant 32 : index
    %82 = vector.load %arg19[%c0_42, %c32_43] : memref<16x128xbf16, #tpu.memory_space<vmem>>, vector<16x32xbf16>
    tpu.vector_store %arg19[%c0_42, %c32_43], %81 {strides = array<i32>} : memref<16x128xbf16, #tpu.memory_space<vmem>>, vector<16x32xbf16>,
    %c0_44 = arith.constant 0 : index
    %c64 = arith.constant 64 : index
    %83 = vector.load %arg18[%c0_44, %c64] : memref<16x384xbf16, #tpu.memory_space<vmem>>, vector<16x32xbf16>
    %c0_45 = arith.constant 0 : index
    %c192 = arith.constant 192 : index
    %84 = vector.load %arg18[%c0_45, %c192] : memref<16x384xbf16, #tpu.memory_space<vmem>>, vector<16x32xbf16>
    %c0_46 = arith.constant 0 : index
    %c320 = arith.constant 320 : index
    %85 = vector.load %arg18[%c0_46, %c320] : memref<16x384xbf16, #tpu.memory_space<vmem>>, vector<16x32xbf16>
    %cst_47 = arith.constant dense<0.000000e+00> : vector<16x16xf32>
    %86 = tpu.matmul %83, %84, %cst_47 {dimension_numbers = #tpu.dot_dimension_numbers<[1], [1], [0], [0], [0, 0, 1, 0], [], []>} : vector<16x32xbf16>, vector<16x32xbf16>, vector<16x16xf32> -> vector<16x16xf32>
    %cst_48 = arith.constant 0.176776692 : f32
    %87 = vector.broadcast %cst_48 : f32 to vector<16x16xf32>
    %88 = arith.mulf %86, %87 : vector<16x16xf32>
    %cst_49 = arith.constant dense<0xFF800000> : vector<16xf32>
    %89 = vector.multi_reduction <maximumf>, %88, %cst_49 [1] : vector<16x16xf32> to vector<16xf32>
    %90 = vector.shape_cast %89 : vector<16xf32> to vector<16x1xf32>
    %91 = vector.broadcast %90 : vector<16x1xf32> to vector<16x16xf32>
    %92 = arith.subf %88, %91 : vector<16x16xf32>
    %93 = math.exp %92 : vector<16x16xf32>
    %cst_50 = arith.constant dense<0.000000e+00> : vector<16xf32>
    %94 = vector.multi_reduction <add>, %93, %cst_50 [1] : vector<16x16xf32> to vector<16xf32>
    %95 = vector.shape_cast %94 : vector<16xf32> to vector<16x1xf32>
    %96 = tpu.reciprocal %95 {approx = true} : vector<16x1xf32> -> vector<16x1xf32>
    %97 = vector.broadcast %96 : vector<16x1xf32> to vector<16x16xf32>
    %98 = arith.mulf %93, %97 : vector<16x16xf32>
    %99 = arith.truncf %98 : vector<16x16xf32> to vector<16x16xbf16>
    %cst_51 = arith.constant dense<0.000000e+00> : vector<16x32xf32>
    %100 = tpu.matmul %99, %85, %cst_51 {dimension_numbers = #tpu.dot_dimension_numbers<[1], [0], [0], [1], [0, 0, 1, 1], [], []>} : vector<16x16xbf16>, vector<16x32xbf16>, vector<16x32xf32> -> vector<16x32xf32>
    %101 = arith.truncf %100 : vector<16x32xf32> to vector<16x32xbf16>
    %c0_52 = arith.constant 0 : index
    %c64_53 = arith.constant 64 : index
    %102 = vector.load %arg19[%c0_52, %c64_53] : memref<16x128xbf16, #tpu.memory_space<vmem>>, vector<16x32xbf16>
    tpu.vector_store %arg19[%c0_52, %c64_53], %101 {strides = array<i32>} : memref<16x128xbf16, #tpu.memory_space<vmem>>, vector<16x32xbf16>,
    %c0_54 = arith.constant 0 : index
    %c96 = arith.constant 96 : index
    %103 = vector.load %arg18[%c0_54, %c96] : memref<16x384xbf16, #tpu.memory_space<vmem>>, vector<16x32xbf16>
    %c0_55 = arith.constant 0 : index
    %c224 = arith.constant 224 : index
    %104 = vector.load %arg18[%c0_55, %c224] : memref<16x384xbf16, #tpu.memory_space<vmem>>, vector<16x32xbf16>
    %c0_56 = arith.constant 0 : index
    %c352 = arith.constant 352 : index
    %105 = vector.load %arg18[%c0_56, %c352] : memref<16x384xbf16, #tpu.memory_space<vmem>>, vector<16x32xbf16>
    %cst_57 = arith.constant dense<0.000000e+00> : vector<16x16xf32>
    %106 = tpu.matmul %103, %104, %cst_57 {dimension_numbers = #tpu.dot_dimension_numbers<[1], [1], [0], [0], [0, 0, 1, 0], [], []>} : vector<16x32xbf16>, vector<16x32xbf16>, vector<16x16xf32> -> vector<16x16xf32>
    %cst_58 = arith.constant 0.176776692 : f32
    %107 = vector.broadcast %cst_58 : f32 to vector<16x16xf32>
    %108 = arith.mulf %106, %107 : vector<16x16xf32>
    %cst_59 = arith.constant dense<0xFF800000> : vector<16xf32>
    %109 = vector.multi_reduction <maximumf>, %108, %cst_59 [1] : vector<16x16xf32> to vector<16xf32>
    %110 = vector.shape_cast %109 : vector<16xf32> to vector<16x1xf32>
    %111 = vector.broadcast %110 : vector<16x1xf32> to vector<16x16xf32>
    %112 = arith.subf %108, %111 : vector<16x16xf32>
    %113 = math.exp %112 : vector<16x16xf32>
    %cst_60 = arith.constant dense<0.000000e+00> : vector<16xf32>
    %114 = vector.multi_reduction <add>, %113, %cst_60 [1] : vector<16x16xf32> to vector<16xf32>
    %115 = vector.shape_cast %114 : vector<16xf32> to vector<16x1xf32>
    %116 = tpu.reciprocal %115 {approx = true} : vector<16x1xf32> -> vector<16x1xf32>
    %117 = vector.broadcast %116 : vector<16x1xf32> to vector<16x16xf32>
    %118 = arith.mulf %113, %117 : vector<16x16xf32>
    %119 = arith.truncf %118 : vector<16x16xf32> to vector<16x16xbf16>
    %cst_61 = arith.constant dense<0.000000e+00> : vector<16x32xf32>
    %120 = tpu.matmul %119, %105, %cst_61 {dimension_numbers = #tpu.dot_dimension_numbers<[1], [0], [0], [1], [0, 0, 1, 1], [], []>} : vector<16x16xbf16>, vector<16x32xbf16>, vector<16x32xf32> -> vector<16x32xf32>
    %121 = arith.truncf %120 : vector<16x32xf32> to vector<16x32xbf16>
    %c0_62 = arith.constant 0 : index
    %c96_63 = arith.constant 96 : index
    %122 = vector.load %arg19[%c0_62, %c96_63] : memref<16x128xbf16, #tpu.memory_space<vmem>>, vector<16x32xbf16>
    tpu.vector_store %arg19[%c0_62, %c96_63], %121 {strides = array<i32>} : memref<16x128xbf16, #tpu.memory_space<vmem>>, vector<16x32xbf16>,
    %c0_64 = arith.constant 0 : index
    %c0_65 = arith.constant 0 : index
    %123 = vector.load %arg19[%c0_64, %c0_65] : memref<16x128xbf16, #tpu.memory_space<vmem>>, vector<16x128xbf16>
    %c0_66 = arith.constant 0 : index
    %c0_67 = arith.constant 0 : index
    %c0_68 = arith.constant 0 : index
    %124 = vector.load %arg7[%c0_66, %c0_67, %c0_68] : memref<1x128x128xbf16, #tpu.memory_space<vmem>>, vector<1x128x128xbf16>
    %125 = vector.shape_cast %124 : vector<1x128x128xbf16> to vector<128x128xbf16>
    %cst_69 = arith.constant dense<0.000000e+00> : vector<16x128xf32>
    %126 = tpu.matmul %123, %125, %cst_69 {dimension_numbers = #tpu.dot_dimension_numbers<[1], [0], [0], [1], [0, 0, 1, 1], [], []>} : vector<16x128xbf16>, vector<128x128xbf16>, vector<16x128xf32> -> vector<16x128xf32>
    %c0_70 = arith.constant 0 : index
    %c0_71 = arith.constant 0 : index
    %c0_72 = arith.constant 0 : index
    %127 = vector.load %arg8[%c0_70, %c0_71, %c0_72] : memref<1x1x128xf32, #tpu.memory_space<vmem>>, vector<1x1x128xf32>
    %128 = vector.shape_cast %127 : vector<1x1x128xf32> to vector<1x128xf32>
    %129 = vector.broadcast %128 : vector<1x128xf32> to vector<16x128xf32>
    %130 = arith.addf %126, %129 : vector<16x128xf32>
    %131 = arith.addf %4, %130 : vector<16x128xf32>
    %c0_73 = arith.constant 0 : index
    %c0_74 = arith.constant 0 : index
    %c0_75 = arith.constant 0 : index
    %132 = vector.load %arg9[%c0_73, %c0_74, %c0_75] : memref<1x1x128xf32, #tpu.memory_space<vmem>>, vector<1x1x128xf32>
    %133 = vector.shape_cast %132 : vector<1x1x128xf32> to vector<1x128xf32>
    %c0_76 = arith.constant 0 : index
    %c0_77 = arith.constant 0 : index
    %c0_78 = arith.constant 0 : index
    %134 = vector.load %arg10[%c0_76, %c0_77, %c0_78] : memref<1x1x128xf32, #tpu.memory_space<vmem>>, vector<1x1x128xf32>
    %135 = vector.shape_cast %134 : vector<1x1x128xf32> to vector<1x128xf32>
    %cst_79 = arith.constant dense<0.000000e+00> : vector<16xf32>
    %136 = vector.multi_reduction <add>, %131, %cst_79 [1] : vector<16x128xf32> to vector<16xf32>
    %137 = vector.shape_cast %136 : vector<16xf32> to vector<16x1xf32>
    %cst_80 = arith.constant 1.280000e+02 : f32
    %138 = vector.broadcast %cst_80 : f32 to vector<16x1xf32>
    %139 = arith.divf %137, %138 : vector<16x1xf32>
    %140 = arith.mulf %131, %131 : vector<16x128xf32>
    %cst_81 = arith.constant dense<0.000000e+00> : vector<16xf32>
    %141 = vector.multi_reduction <add>, %140, %cst_81 [1] : vector<16x128xf32> to vector<16xf32>
    %142 = vector.shape_cast %141 : vector<16xf32> to vector<16x1xf32>
    %cst_82 = arith.constant 1.280000e+02 : f32
    %143 = vector.broadcast %cst_82 : f32 to vector<16x1xf32>
    %144 = arith.divf %142, %143 : vector<16x1xf32>
    %145 = arith.mulf %139, %139 : vector<16x1xf32>
    %146 = arith.subf %144, %145 : vector<16x1xf32>
    %cst_83 = arith.constant 0.000000e+00 : f32
    %147 = vector.broadcast %cst_83 : f32 to vector<16x1xf32>
    %148 = arith.maximumf %146, %147 : vector<16x1xf32>
    %149 = vector.broadcast %139 : vector<16x1xf32> to vector<16x128xf32>
    %150 = arith.subf %131, %149 : vector<16x128xf32>
    %cst_84 = arith.constant 9.99999997E-7 : f32
    %151 = vector.broadcast %cst_84 : f32 to vector<16x1xf32>
    %152 = arith.addf %148, %151 : vector<16x1xf32>
    %153 = math.rsqrt %152 : vector<16x1xf32>
    %154 = vector.broadcast %153 : vector<16x1xf32> to vector<16x128xf32>
    %155 = arith.mulf %150, %154 : vector<16x128xf32>
    %156 = vector.broadcast %133 : vector<1x128xf32> to vector<16x128xf32>
    %157 = arith.mulf %155, %156 : vector<16x128xf32>
    %158 = vector.broadcast %135 : vector<1x128xf32> to vector<16x128xf32>
    %159 = arith.addf %157, %158 : vector<16x128xf32>
    %160 = arith.truncf %159 : vector<16x128xf32> to vector<16x128xbf16>
    %c0_85 = arith.constant 0 : index
    %c0_86 = arith.constant 0 : index
    %c0_87 = arith.constant 0 : index
    %161 = vector.load %arg11[%c0_85, %c0_86, %c0_87] : memref<1x128x256xbf16, #tpu.memory_space<vmem>>, vector<1x128x256xbf16>
    %162 = vector.shape_cast %161 : vector<1x128x256xbf16> to vector<128x256xbf16>
    %cst_88 = arith.constant dense<0.000000e+00> : vector<16x256xf32>
    %163 = tpu.matmul %160, %162, %cst_88 {dimension_numbers = #tpu.dot_dimension_numbers<[1], [0], [0], [1], [0, 0, 1, 1], [], []>} : vector<16x128xbf16>, vector<128x256xbf16>, vector<16x256xf32> -> vector<16x256xf32>
    %c0_89 = arith.constant 0 : index
    %c0_90 = arith.constant 0 : index
    %c0_91 = arith.constant 0 : index
    %164 = vector.load %arg12[%c0_89, %c0_90, %c0_91] : memref<1x1x256xf32, #tpu.memory_space<vmem>>, vector<1x1x256xf32>
    %165 = vector.shape_cast %164 : vector<1x1x256xf32> to vector<1x256xf32>
    %166 = vector.broadcast %165 : vector<1x256xf32> to vector<16x256xf32>
    %167 = arith.addf %163, %166 : vector<16x256xf32>
    %cst_92 = arith.constant 5.000000e-01 : f32
    %168 = vector.broadcast %cst_92 : f32 to vector<16x256xf32>
    %169 = arith.mulf %168, %167 : vector<16x256xf32>
    %cst_93 = arith.constant 4.471500e-02 : f32
    %170 = vector.broadcast %cst_93 : f32 to vector<16x256xf32>
    %171 = arith.mulf %170, %167 : vector<16x256xf32>
    %172 = arith.mulf %171, %167 : vector<16x256xf32>
    %173 = arith.mulf %172, %167 : vector<16x256xf32>
    %174 = arith.addf %167, %173 : vector<16x256xf32>
    %cst_94 = arith.constant 0.797884583 : f32
    %175 = vector.broadcast %cst_94 : f32 to vector<16x256xf32>
    %176 = arith.mulf %175, %174 : vector<16x256xf32>
    %177 = math.tanh %176 : vector<16x256xf32>
    %cst_95 = arith.constant 1.000000e+00 : f32
    %178 = vector.broadcast %cst_95 : f32 to vector<16x256xf32>
    %179 = arith.addf %178, %177 : vector<16x256xf32>
    %180 = arith.mulf %169, %179 : vector<16x256xf32>
    %181 = arith.truncf %180 : vector<16x256xf32> to vector<16x256xbf16>
    %c0_96 = arith.constant 0 : index
    %c0_97 = arith.constant 0 : index
    %c0_98 = arith.constant 0 : index
    %182 = vector.load %arg13[%c0_96, %c0_97, %c0_98] : memref<1x256x128xbf16, #tpu.memory_space<vmem>>, vector<1x256x128xbf16>
    %183 = vector.shape_cast %182 : vector<1x256x128xbf16> to vector<256x128xbf16>
    %cst_99 = arith.constant dense<0.000000e+00> : vector<16x128xf32>
    %184 = tpu.matmul %181, %183, %cst_99 {dimension_numbers = #tpu.dot_dimension_numbers<[1], [0], [0], [1], [0, 0, 1, 1], [], []>} : vector<16x256xbf16>, vector<256x128xbf16>, vector<16x128xf32> -> vector<16x128xf32>
    %c0_100 = arith.constant 0 : index
    %c0_101 = arith.constant 0 : index
    %c0_102 = arith.constant 0 : index
    %185 = vector.load %arg14[%c0_100, %c0_101, %c0_102] : memref<1x1x128xf32, #tpu.memory_space<vmem>>, vector<1x1x128xf32>
    %186 = vector.shape_cast %185 : vector<1x1x128xf32> to vector<1x128xf32>
    %187 = vector.broadcast %186 : vector<1x128xf32> to vector<16x128xf32>
    %188 = arith.addf %184, %187 : vector<16x128xf32>
    %189 = arith.addf %131, %188 : vector<16x128xf32>
    %190 = vector.shape_cast %189 : vector<16x128xf32> to vector<1x16x128xf32>
    %c0_103 = arith.constant 0 : index
    %c0_104 = arith.constant 0 : index
    %c0_105 = arith.constant 0 : index
    %191 = vector.load %arg17[%c0_103, %c0_104, %c0_105] : memref<1x16x128xf32, #tpu.memory_space<vmem>>, vector<1x16x128xf32>
    tpu.vector_store %arg17[%c0_103, %c0_104, %c0_105], %190 {strides = array<i32>} : memref<1x16x128xf32, #tpu.memory_space<vmem>>, vector<1x16x128xf32>,
    %c1_i32 = arith.constant 1 : i32
    %192 = arith.cmpi eq, %arg1, %c1_i32 : i32
    %193 = arith.extui %192 : i1 to i32
    %c0_i32_106 = arith.constant 0 : i32
    %194 = arith.cmpi ne, %193, %c0_i32_106 : i32
    scf.if %194 {
      %c0_107 = arith.constant 0 : index
      %c0_108 = arith.constant 0 : index
      %195 = vector.load %arg15[%c0_107, %c0_108] : memref<1x128xf32, #tpu.memory_space<vmem>>, vector<1x128xf32>
      %c0_109 = arith.constant 0 : index
      %c0_110 = arith.constant 0 : index
      %196 = vector.load %arg16[%c0_109, %c0_110] : memref<1x128xf32, #tpu.memory_space<vmem>>, vector<1x128xf32>
      %cst_111 = arith.constant dense<0.000000e+00> : vector<16xf32>
      %197 = vector.multi_reduction <add>, %189, %cst_111 [1] : vector<16x128xf32> to vector<16xf32>
      %198 = vector.shape_cast %197 : vector<16xf32> to vector<16x1xf32>
      %cst_112 = arith.constant 1.280000e+02 : f32
      %199 = vector.broadcast %cst_112 : f32 to vector<16x1xf32>
      %200 = arith.divf %198, %199 : vector<16x1xf32>
      %201 = arith.mulf %189, %189 : vector<16x128xf32>
      %cst_113 = arith.constant dense<0.000000e+00> : vector<16xf32>
      %202 = vector.multi_reduction <add>, %201, %cst_113 [1] : vector<16x128xf32> to vector<16xf32>
      %203 = vector.shape_cast %202 : vector<16xf32> to vector<16x1xf32>
      %cst_114 = arith.constant 1.280000e+02 : f32
      %204 = vector.broadcast %cst_114 : f32 to vector<16x1xf32>
      %205 = arith.divf %203, %204 : vector<16x1xf32>
      %206 = arith.mulf %200, %200 : vector<16x1xf32>
      %207 = arith.subf %205, %206 : vector<16x1xf32>
      %cst_115 = arith.constant 0.000000e+00 : f32
      %208 = vector.broadcast %cst_115 : f32 to vector<16x1xf32>
      %209 = arith.maximumf %207, %208 : vector<16x1xf32>
      %210 = vector.broadcast %200 : vector<16x1xf32> to vector<16x128xf32>
      %211 = arith.subf %189, %210 : vector<16x128xf32>
      %cst_116 = arith.constant 9.99999997E-7 : f32
      %212 = vector.broadcast %cst_116 : f32 to vector<16x1xf32>
      %213 = arith.addf %209, %212 : vector<16x1xf32>
      %214 = math.rsqrt %213 : vector<16x1xf32>
      %215 = vector.broadcast %214 : vector<16x1xf32> to vector<16x128xf32>
      %216 = arith.mulf %211, %215 : vector<16x128xf32>
      %217 = vector.broadcast %195 : vector<1x128xf32> to vector<16x128xf32>
      %218 = arith.mulf %216, %217 : vector<16x128xf32>
      %219 = vector.broadcast %196 : vector<1x128xf32> to vector<16x128xf32>
      %220 = arith.addf %218, %219 : vector<16x128xf32>
      %221 = vector.shape_cast %220 : vector<16x128xf32> to vector<1x16x128xf32>
      %c0_117 = arith.constant 0 : index
      %c0_118 = arith.constant 0 : index
      %c0_119 = arith.constant 0 : index
      %222 = vector.load %arg17[%c0_117, %c0_118, %c0_119] : memref<1x16x128xf32, #tpu.memory_space<vmem>>, vector<1x16x128xf32>
      tpu.vector_store %arg17[%c0_117, %c0_118, %c0_119], %221 {strides = array<i32>} : memref<1x16x128xf32, #tpu.memory_space<vmem>>, vector<1x16x128xf32>,
    } else {
    }
    return
  }
  func.func @transform_0(%arg0: i32, %arg1: i32) -> (i32, i32, i32) {
    %c0_i32 = arith.constant 0 : i32
    %c0_i32_0 = arith.constant 0 : i32
    %c0_i32_1 = arith.constant 0 : i32
    return %arg0, %c0_i32, %c0_i32_0 : i32, i32, i32
  }
  func.func @transform_1(%arg0: i32, %arg1: i32) -> (i32, i32, i32) {
    %c0_i32 = arith.constant 0 : i32
    %c0_i32_0 = arith.constant 0 : i32
    %c0_i32_1 = arith.constant 0 : i32
    return %arg1, %c0_i32, %c0_i32_0 : i32, i32, i32
  }
  func.func @transform_2(%arg0: i32, %arg1: i32) -> (i32, i32, i32) {
    %c0_i32 = arith.constant 0 : i32
    %c0_i32_0 = arith.constant 0 : i32
    %c0_i32_1 = arith.constant 0 : i32
    return %arg1, %c0_i32, %c0_i32_0 : i32, i32, i32
  }
  func.func @transform_3(%arg0: i32, %arg1: i32) -> (i32, i32, i32) {
    %c0_i32 = arith.constant 0 : i32
    %c0_i32_0 = arith.constant 0 : i32
    %c0_i32_1 = arith.constant 0 : i32
    return %arg1, %c0_i32, %c0_i32_0 : i32, i32, i32
  }
  func.func @transform_4(%arg0: i32, %arg1: i32) -> (i32, i32, i32) {
    %c0_i32 = arith.constant 0 : i32
    %c0_i32_0 = arith.constant 0 : i32
    %c0_i32_1 = arith.constant 0 : i32
    return %arg1, %c0_i32, %c0_i32_0 : i32, i32, i32
  }
  func.func @transform_5(%arg0: i32, %arg1: i32) -> (i32, i32, i32) {
    %c0_i32 = arith.constant 0 : i32
    %c0_i32_0 = arith.constant 0 : i32
    %c0_i32_1 = arith.constant 0 : i32
    return %arg1, %c0_i32, %c0_i32_0 : i32, i32, i32
  }
  func.func @transform_6(%arg0: i32, %arg1: i32) -> (i32, i32, i32) {
    %c0_i32 = arith.constant 0 : i32
    %c0_i32_0 = arith.constant 0 : i32
    %c0_i32_1 = arith.constant 0 : i32
    return %arg1, %c0_i32, %c0_i32_0 : i32, i32, i32
  }
  func.func @transform_7(%arg0: i32, %arg1: i32) -> (i32, i32, i32) {
    %c0_i32 = arith.constant 0 : i32
    %c0_i32_0 = arith.constant 0 : i32
    %c0_i32_1 = arith.constant 0 : i32
    return %arg1, %c0_i32, %c0_i32_0 : i32, i32, i32
  }
  func.func @transform_8(%arg0: i32, %arg1: i32) -> (i32, i32, i32) {
    %c0_i32 = arith.constant 0 : i32
    %c0_i32_0 = arith.constant 0 : i32
    %c0_i32_1 = arith.constant 0 : i32
    return %arg1, %c0_i32, %c0_i32_0 : i32, i32, i32
  }
  func.func @transform_9(%arg0: i32, %arg1: i32) -> (i32, i32, i32) {
    %c0_i32 = arith.constant 0 : i32
    %c0_i32_0 = arith.constant 0 : i32
    %c0_i32_1 = arith.constant 0 : i32
    return %arg1, %c0_i32, %c0_i32_0 : i32, i32, i32
  }
  func.func @transform_10(%arg0: i32, %arg1: i32) -> (i32, i32, i32) {
    %c0_i32 = arith.constant 0 : i32
    %c0_i32_0 = arith.constant 0 : i32
    %c0_i32_1 = arith.constant 0 : i32
    return %arg1, %c0_i32, %c0_i32_0 : i32, i32, i32
  }
  func.func @transform_11(%arg0: i32, %arg1: i32) -> (i32, i32, i32) {
    %c0_i32 = arith.constant 0 : i32
    %c0_i32_0 = arith.constant 0 : i32
    %c0_i32_1 = arith.constant 0 : i32
    return %arg1, %c0_i32, %c0_i32_0 : i32, i32, i32
  }
  func.func @transform_12(%arg0: i32, %arg1: i32) -> (i32, i32, i32) {
    %c0_i32 = arith.constant 0 : i32
    %c0_i32_0 = arith.constant 0 : i32
    %c0_i32_1 = arith.constant 0 : i32
    return %arg1, %c0_i32, %c0_i32_0 : i32, i32, i32
  }
  func.func @transform_13(%arg0: i32, %arg1: i32) -> (i32, i32) {
    %c0_i32 = arith.constant 0 : i32
    %c0_i32_0 = arith.constant 0 : i32
    %c0_i32_1 = arith.constant 0 : i32
    return %c0_i32, %c0_i32_0 : i32, i32
  }
  func.func @transform_14(%arg0: i32, %arg1: i32) -> (i32, i32) {
    %c0_i32 = arith.constant 0 : i32
    %c0_i32_0 = arith.constant 0 : i32
    %c0_i32_1 = arith.constant 0 : i32
    return %c0_i32, %c0_i32_0 : i32, i32
  }
  func.func @transform_15(%arg0: i32, %arg1: i32) -> (i32, i32, i32) {
    %c0_i32 = arith.constant 0 : i32
    %c0_i32_0 = arith.constant 0 : i32
    %c0_i32_1 = arith.constant 0 : i32
    return %arg0, %c0_i32, %c0_i32_0 : i32, i32, i32
  }
}

</mosaic_0001>

<llo_original>
// kernel: vision_transformer_forward.2
$region0: #{vision_transformer_forward.2}
  #allocation0 [shape = 'u32[]', space=smem, size = 0x4, offset = 0x4, fixed_abs, tag = 'smem constant byte address 0x4 - core index']
  #allocation1 [shape = 'u32[144,128]{1,0:T(1,128)}', space=vmem, size = 0x12000, scoped, tag = 'internal scratch']
  %s0 = inlined_call_operand.vmem [shape: bf16[2,16,192], index: 0, kind: input, shape index: {}]
  %s1 = inlined_call_operand.vmem [shape: bf16[192,128], index: 1, kind: input, shape index: {}]
  %s2 = inlined_call_operand.vmem [shape: f32[16,128], index: 2, kind: input, shape index: {}]
  %s3 = inlined_call_operand.vmem [shape: f32[2,16,128], index: 3, kind: output, shape index: {}]
  %s4 = sld [smem:[#allocation0]]
  $region45: #{vision_transformer_forward.2} parent=0
    _
  %s6 = ssub.s32 1, %s4
  %s7 = scalar_select 0, %s6, %s4
  loop: start=0, step=1, limit=4
  $region2: #{vision_transformer_forward.2} parent=0 // loop_pre_header
    _
  $region3: #{vision_transformer_forward.2} parent=0 // loop_header
    %s9 = sphi 0, %s13
    %p10 = scmp.ge.s32.totalorder %s9, 4
    %s19 = sphi 0, %s21
    %s22 = sphi 0, %s19
    %s23 = sphi 0, %s22
    %s39 = sphi 0, %s23
    %s43 = sphi 0, %s43
    %s45 = sphi 0, %s43
    %s46 = sphi 0, %s45
    %s60 = sphi 0, %s46
    %s64 = sphi 0, %s64
    %s66 = sphi 0, %s64
    %s67 = sphi 0, %s66
    %s81 = sphi 0, %s67
    %s87 = sphi 0, %s89
    %s90 = sphi 0, %s87
    %s91 = sphi 0, %s90
    %s107 = sphi 0, %s91
  $region4: #{vision_transformer_forward.2} parent=0 // loop_header_branch
    %12 = sbr.rel (%p10) target = $region8
  $region5: #{vision_transformer_forward.2} parent=0 // loop_body
    %s14 = ssub.s32 %s9, 1
    %s15 = ssub.s32 %s9, 2
    %s16 = sadd.s32 %s9, 1
    %s17 = ssub.s32 %s9, %s16
    %p18 = scmp.eq.s32.totalorder %s17, 0
    %s20 = sadd.s32 %s19, 1
    %s21 = scalar_select %p18, %s19, %s20
    %p24 = pneg %p18
    %p25 = scmp.eq.s32.totalorder %s9, 1
    %p26 = por %p24, %p25
    %p27 = scmp.ne.s32.totalorder %s19, %s22
    %p28 = scmp.eq.s32.totalorder %s9, 0
    %p29 = por %p27, %p28
    %p30 = scmp.ne.s32.totalorder %s19, %s22
    %p31 = scmp.eq.s32.totalorder %s14, 1
    %p32 = por %p30, %p31
    %p33 = scmp.ne.s32.totalorder %s22, %s23
    %p34 = scmp.eq.s32.totalorder %s14, 0
    %p35 = por %p33, %p34
    %p36 = scmp.ne.s32.totalorder %s22, %s23
    %p37 = scmp.eq.s32.totalorder %s15, 1
    %p38 = por %p36, %p37
    %p40 = scmp.ne.s32.totalorder %s23, %s39
    %p41 = scmp.eq.s32.totalorder %s15, 0
    %p42 = por %p40, %p41
    %s44 = sadd.s32 %s43, 1
    %p47 = scmp.eq.s32.totalorder %s9, 1
    %p48 = scmp.ne.s32.totalorder %s43, %s45
    %p49 = scmp.eq.s32.totalorder %s9, 0
    %p50 = por %p48, %p49
    %p51 = scmp.ne.s32.totalorder %s43, %s45
    %p52 = scmp.eq.s32.totalorder %s14, 1
    %p53 = por %p51, %p52
    %p54 = scmp.ne.s32.totalorder %s45, %s46
    %p55 = scmp.eq.s32.totalorder %s14, 0
    %p56 = por %p54, %p55
    %p57 = scmp.ne.s32.totalorder %s45, %s46
    %p58 = scmp.eq.s32.totalorder %s15, 1
    %p59 = por %p57, %p58
    %p61 = scmp.ne.s32.totalorder %s46, %s60
    %p62 = scmp.eq.s32.totalorder %s15, 0
    %p63 = por %p61, %p62
    %s65 = sadd.s32 %s64, 1
    %p68 = scmp.eq.s32.totalorder %s9, 1
    %p69 = scmp.ne.s32.totalorder %s64, %s66
    %p70 = scmp.eq.s32.totalorder %s9, 0
    %p71 = por %p69, %p70
    %p72 = scmp.ne.s32.totalorder %s64, %s66
    %p73 = scmp.eq.s32.totalorder %s14, 1
    %p74 = por %p72, %p73
    %p75 = scmp.ne.s32.totalorder %s66, %s67
    %p76 = scmp.eq.s32.totalorder %s14, 0
    %p77 = por %p75, %p76
    %p78 = scmp.ne.s32.totalorder %s66, %s67
    %p79 = scmp.eq.s32.totalorder %s15, 1
    %p80 = por %p78, %p79
    %p82 = scmp.ne.s32.totalorder %s67, %s81
    %p83 = scmp.eq.s32.totalorder %s15, 0
    %p84 = por %p82, %p83
    %s85 = ssub.s32 %s9, %s16
    %p86 = scmp.eq.s32.totalorder %s85, 0
    %s88 = sadd.s32 %s87, 1
    %s89 = scalar_select %p86, %s87, %s88
    %p92 = pneg %p86
    %p93 = scmp.eq.s32.totalorder %s9, 1
    %p94 = por %p92, %p93
    %p95 = scmp.ne.s32.totalorder %s87, %s90
    %p96 = scmp.eq.s32.totalorder %s9, 0
    %p97 = por %p95, %p96
    %p98 = scmp.ne.s32.totalorder %s87, %s90
    %p99 = scmp.eq.s32.totalorder %s14, 1
    %p100 = por %p98, %p99
    %p101 = scmp.ne.s32.totalorder %s90, %s91
    %p102 = scmp.eq.s32.totalorder %s14, 0
    %p103 = por %p101, %p102
    %p104 = scmp.ne.s32.totalorder %s90, %s91
    %p105 = scmp.eq.s32.totalorder %s15, 1
    %p106 = por %p104, %p105
    %p108 = scmp.ne.s32.totalorder %s91, %s107
    %p109 = scmp.eq.s32.totalorder %s15, 0
    %p110 = por %p108, %p109
    %p111 = scmp.le.s32.totalorder 1, %s9
    %p112 = scmp.lt.s32.totalorder %s9, 3
    %p113 = pnand %p111, %p112
    %p114 = pneg %p113
    // Predicated region
    $region9: #{vision_transformer_forward.2} parent=5 // pred_check
      _
    $region10: #{vision_transformer_forward.2} parent=5 // pred_check_branch
      %116 = sbr.rel (%p113) target = $region12
    $region11: #{vision_transformer_forward.2} parent=5 // pred_region
      %s117 = ssub.s32 %s9, 1
      // Predicated region
      $region13: #{vision_transformer_forward.2} parent=11 // pred_check
        %p118 = pneg %p56
      $region14: #{vision_transformer_forward.2} parent=11 // pred_check_branch
        %120 = sbr.rel (%p118) target = $region16
      $region15: #{vision_transformer_forward.2} parent=11 // pred_region
        _
      $region16: #{vision_transformer_forward.2} parent=11 // pred_fallthru
        _
      // Predicated region
      $region17: #{vision_transformer_forward.2} parent=11 // pred_check
        %p121 = pneg %p77
      $region18: #{vision_transformer_forward.2} parent=11 // pred_check_branch
        %123 = sbr.rel (%p121) target = $region20
      $region19: #{vision_transformer_forward.2} parent=11 // pred_region
        _
      $region20: #{vision_transformer_forward.2} parent=11 // pred_fallthru
        _
    $region12: #{vision_transformer_forward.2} parent=5 // pred_fallthru
      _
    %p124 = scmp.lt.s32.totalorder %s9, 2
    // Predicated region
    $region21: #{vision_transformer_forward.2} parent=5 // pred_check
      %p125 = pneg %p124
    $region22: #{vision_transformer_forward.2} parent=5 // pred_check_branch
      %127 = sbr.rel (%p125) target = $region24
    $region23: #{vision_transformer_forward.2} parent=5 // pred_region
      // Predicated region
      $region25: #{vision_transformer_forward.2} parent=23 // pred_check
        %p128 = pneg %p29
      $region26: #{vision_transformer_forward.2} parent=23 // pred_check_branch
        %130 = sbr.rel (%p128) target = $region28
      $region27: #{vision_transformer_forward.2} parent=23 // pred_region
        %p131 = scmp.lt.s32.totalorder %s9, 1
        %s132 = scalar_select %p131, %s9, 1
        %s133 = smul.addr %s132, 4
        %s134 = smul.addr %s133, 4
        %s135 = scalar_lea.vmem %s0, %s134
      $region28: #{vision_transformer_forward.2} parent=23 // pred_fallthru
        _
    $region24: #{vision_transformer_forward.2} parent=5 // pred_fallthru
      _
    %p136 = scmp.le.s32.totalorder 1, %s9
    %p137 = scmp.lt.s32.totalorder %s9, 3
    %p138 = pnand %p136, %p137
    %p139 = pneg %p138
    // Predicated region
    $region29: #{vision_transformer_forward.2} parent=5 // pred_check
      _
    $region30: #{vision_transformer_forward.2} parent=5 // pred_check_branch
      %141 = sbr.rel (%p138) target = $region32
    $region31: #{vision_transformer_forward.2} parent=5 // pred_region
      %s142 = ssub.s32 %s9, 1
      %p143 = scmp.lt.s32.totalorder %s14, 1
      %s144 = scalar_select %p143, %s14, 1
      %s145 = smul.addr %s144, 4
      %s146 = smul.addr %s145, 4
      %s147 = scalar_lea.vmem %s0, %s146
      %p148 = pneg %p35
      %p149 = pneg %p32
      %p150 = pneg %p56
      %p151 = pneg %p53
      %p152 = pneg %p77
      %p153 = pneg %p74
      %p154 = pneg %p103
      %p155 = pneg %p100
      %p156 = scmp.lt.s32.totalorder %s14, 1
      %s157 = scalar_select %p156, %s14, 1
      %s158 = smul.addr %s157, 2
      %s159 = smul.addr %s158, 8
      %s160 = scalar_lea.vmem %s3, %s159
      %p161 = scmp.lt.s32.totalorder %s14, 1
      %s162 = scalar_select %p161, %s14, 1
      %s163 = smul.addr %s162, 4
      %s164 = smul.addr %s163, 4
      %s165 = scalar_lea.vmem %s0, %s164
      %p166 = scmp.lt.s32.totalorder %s14, 1
      %s167 = scalar_select %p166, %s14, 1
      %s168 = smul.addr %s167, 2
      %s169 = smul.addr %s168, 8
      %s170 = scalar_lea.vmem %s3, %s169
      %v172 = vld [vmem:[%s165] sm:$0xff]
      %v173 = vld [vmem:[%s165 + $0x8] sm:$0xff]
      %v174 = vld [vmem:[%s1] sm:$0xf]
      %v175 = vld [vmem:[%s1 + $0x4] sm:$0xf]
      %v176 = vld [vmem:[%s1 + $0x8] sm:$0xf]
      %v177 = vld [vmem:[%s1 + $0xc] sm:$0xf]
      %v178 = vld [vmem:[%s1 + $0x10] sm:$0xf]
      %v179 = vld [vmem:[%s1 + $0x14] sm:$0xf]
      %v180 = vld [vmem:[%s1 + $0x18] sm:$0xf]
      %v181 = vld [vmem:[%s1 + $0x1c] sm:$0xf]
      %v182 = vld [vmem:[%s1 + $0x20] sm:$0xf]
      %v183 = vld [vmem:[%s1 + $0x24] sm:$0xf]
      %v184 = vld [vmem:[%s1 + $0x28] sm:$0xf]
      %v185 = vld [vmem:[%s1 + $0x2c] sm:$0xf]
      %v186 = vld [vmem:[%s1 + $0x30] sm:$0xf]
      %v187 = vld [vmem:[%s1 + $0x34] sm:$0xf]
      %v188 = vld [vmem:[%s1 + $0x38] sm:$0xf]
      %v189 = vld [vmem:[%s1 + $0x3c] sm:$0xf]
      %v190 = vld [vmem:[%s1 + $0x40] sm:$0xf]
      %v191 = vld [vmem:[%s1 + $0x44] sm:$0xf]
      %v192 = vld [vmem:[%s1 + $0x48] sm:$0xf]
      %v193 = vld [vmem:[%s1 + $0x4c] sm:$0xf]
      %v194 = vld [vmem:[%s1 + $0x50] sm:$0xf]
      %v195 = vld [vmem:[%s1 + $0x54] sm:$0xf]
      %v196 = vld [vmem:[%s1 + $0x58] sm:$0xf]
      %v197 = vld [vmem:[%s1 + $0x5c] sm:$0xf]
      %v198 = vld [vmem:[%s2] sm:$0xff]
      %v199 = vld [vmem:[%s2 + $0x8] sm:$0xff]
      %v202 = vunpack.c.l.b16 %v172
      %v203 = vunpack.c.h.b16 %v172
      %v204 = vunpack.c.l.b16 %v173
      %v205 = vunpack.c.h.b16 %v173
      %v206 = vpack.c.b16 %v204, %v202
      %v207 = vpack.c.b16 %v205, %v203
      %v233 = vunpack.c.l.b16 %v174
      %v234 = vunpack.c.l.b16 %v175
      %v235 = vunpack.c.l.b16 %v176
      %v236 = vunpack.c.l.b16 %v177
      %v237 = vunpack.c.l.b16 %v178
      %v238 = vunpack.c.l.b16 %v179
      %v239 = vunpack.c.l.b16 %v180
      %v240 = vunpack.c.l.b16 %v181
      %v241 = vunpack.c.l.b16 %v182
      %v242 = vunpack.c.l.b16 %v183
      %v243 = vunpack.c.l.b16 %v184
      %v244 = vunpack.c.l.b16 %v185
      %v245 = vunpack.c.l.b16 %v186
      %v246 = vunpack.c.l.b16 %v187
      %v247 = vunpack.c.l.b16 %v188
      %v248 = vunpack.c.l.b16 %v189
      %v249 = vunpack.c.l.b16 %v190
      %v250 = vunpack.c.l.b16 %v191
      %v251 = vunpack.c.l.b16 %v192
      %v252 = vunpack.c.l.b16 %v193
      %v253 = vunpack.c.l.b16 %v194
      %v254 = vunpack.c.l.b16 %v195
      %v255 = vunpack.c.l.b16 %v196
      %v256 = vunpack.c.l.b16 %v197
      %v257 = vpack.c.b16 %v234, %v233
      %v258 = vpack.c.b16 %v236, %v235
      %v259 = vpack.c.b16 %v238, %v237
      %v260 = vpack.c.b16 %v240, %v239
      %v261 = vpack.c.b16 %v242, %v241
      %v262 = vpack.c.b16 %v244, %v243
      %v263 = vpack.c.b16 %v246, %v245
      %v264 = vpack.c.b16 %v248, %v247
      %v265 = vpack.c.b16 %v250, %v249
      %v266 = vpack.c.b16 %v252, %v251
      %v267 = vpack.c.b16 %v254, %v253
      %v268 = vpack.c.b16 %v256, %v255
      %vm281 = vcmask 523264
      %v283 = vsel %vm281, %v207, 0
      %285 = vmatprep.subr.bf16.mxu0 0
      %286 = vmatpush1.bf16.msra.mxu0 %v257
      %287 = vmatprep.subr.bf16.mxu0 0
      %288 = vmatpush1.bf16.msra.mxu0 %v258
      %289 = vmatprep.subr.bf16.mxu0 0
      %290 = vmatpush1.bf16.msra.mxu0 %v259
      %291 = vmatprep.subr.bf16.mxu0 0
      %292 = vmatpush1.bf16.msra.mxu0 %v260
      %293 = vmatprep.subr.bf16.mxu0 0
      %294 = vmatpush1.bf16.msra.mxu0 %v261
      %295 = vmatprep.subr.bf16.mxu0 0
      %296 = vmatpush1.bf16.msra.mxu0 %v262
      %297 = vmatprep.subr.bf16.mxu0 0
      %298 = vmatpush1.bf16.msra.mxu0 %v263
      %299 = vmatprep.subr.bf16.mxu0 0
      %300 = vmatpush1.bf16.msra.mxu0 %v264
      %301 = vmatprep.subr.bf16.mxu0 0
      %302 = vmatpush1.bf16.msra.mxu0 %v265
      %303 = vmatprep.subr.bf16.mxu0 0
      %304 = vmatpush1.bf16.msra.mxu0 %v266
      %305 = vmatprep.subr.bf16.mxu0 0
      %306 = vmatpush1.bf16.msra.mxu0 %v267
      %307 = vmatprep.subr.bf16.mxu0 0
      %308 = vmatpush1.bf16.msra.mxu0 %v268
      %309 = vmatprep.subr.bf16.mxu0 0
      %310 = vmatpush1.bf16.msra.mxu0 0
      %311 = vmatprep.subr.bf16.mxu0 0
      %312 = vmatpush1.bf16.msra.mxu0 0
      %313 = vmatprep.subr.bf16.mxu0 0
      %314 = vmatpush1.bf16.msra.mxu0 0
      %315 = vmatprep.subr.bf16.mxu0 0
      %316 = vmatpush1.bf16.msra.mxu0 0
      %317 = vmatprep.mubr.bf16.mxu0 %v283
      %318 = vmatmul.mubr.bf16.gmra.mrb[0].mxu0 %v206
      %v319 = vpop.f32.mrb[0].mxu0
      %v320 = vadd.f32 %v198, %v319
      %v321 = vpop.f32.mrb[0].mxu0
      %v322 = vpop.f32.mrb[0].mxu0
      %v323 = vadd.f32 %v199, %v322
      %v324 = vpop.f32.mrb[0].mxu0
      %325 = vdwg.mxu0
      %326 = vst [vmem:[%s170] sm:$0xff] %v320
      %327 = vst [vmem:[%s170 + $0x8] sm:$0xff] %v323
      %p328 = scmp.lt.s32.totalorder %s14, 1
      %s329 = scalar_select %p328, %s14, 1
      %s330 = smul.addr %s329, 2
      %s331 = smul.addr %s330, 8
      %s332 = scalar_lea.vmem %s3, %s331
      // Predicated region
      $region33: #{vision_transformer_forward.2} parent=31 // pred_check
        %p333 = pneg %p100
      $region34: #{vision_transformer_forward.2} parent=31 // pred_check_branch
        %335 = sbr.rel (%p333) target = $region36
      $region35: #{vision_transformer_forward.2} parent=31 // pred_region
        _
      $region36: #{vision_transformer_forward.2} parent=31 // pred_fallthru
        _
    $region32: #{vision_transformer_forward.2} parent=5 // pred_fallthru
      _
    %p336 = scmp.le.s32.totalorder 2, %s9
    // Predicated region
    $region37: #{vision_transformer_forward.2} parent=5 // pred_check
      %p337 = pneg %p336
    $region38: #{vision_transformer_forward.2} parent=5 // pred_check_branch
      %339 = sbr.rel (%p337) target = $region40
    $region39: #{vision_transformer_forward.2} parent=5 // pred_region
      %s340 = ssub.s32 %s9, 2
      // Predicated region
      $region41: #{vision_transformer_forward.2} parent=39 // pred_check
        %p341 = pneg %p106
      $region42: #{vision_transformer_forward.2} parent=39 // pred_check_branch
        %343 = sbr.rel (%p341) target = $region44
      $region43: #{vision_transformer_forward.2} parent=39 // pred_region
        %p344 = scmp.lt.s32.totalorder %s15, 1
        %s345 = scalar_select %p344, %s15, 1
        %s346 = smul.addr %s345, 2
        %s347 = smul.addr %s346, 8
        %s348 = scalar_lea.vmem %s3, %s347
      $region44: #{vision_transformer_forward.2} parent=39 // pred_fallthru
        _
    $region40: #{vision_transformer_forward.2} parent=5 // pred_fallthru
      _
  $region6: #{vision_transformer_forward.2} parent=0 // loop_footer
    %s13 = sadd.s32 1, %s9
  $region7: #{vision_transformer_forward.2} parent=0 // loop_footer_branch
    %8 = sbr.rel target = $region3
  $region8: #{vision_transformer_forward.2} parent=0 // loop_exit
    _

// kernel: vision_transformer_forward.3
$region0: #{vision_transformer_forward.3}
  #allocation0 [shape = 'u32[]', space=smem, size = 0x4, offset = 0x4, fixed_abs, tag = 'smem constant byte address 0x4 - core index']
  #allocation1 [shape = 'u32[144,128]{1,0:T(1,128)}', space=vmem, size = 0x12000, scoped, tag = 'internal scratch']
  #allocation2 [shape = 'bf16[16,384]{1,0:T(16,128)(2,1)}', space=vmem, size = 0x3000, scoped, tag = 'scratch operand']
  #allocation3 [shape = 'bf16[16,128]{1,0:T(16,128)(2,1)}', space=vmem, size = 0x1000, scoped, tag = 'scratch operand']
  %s0 = inlined_call_operand.vmem [shape: f32[2,16,128], index: 0, kind: input, shape index: {}]
  %s1 = inlined_call_operand.vmem [shape: f32[2,1,128], index: 1, kind: input, shape index: {}]
  %s2 = inlined_call_operand.vmem [shape: f32[2,1,128], index: 2, kind: input, shape index: {}]
  %s3 = inlined_call_operand.vmem [shape: bf16[2,128,384], index: 3, kind: input, shape index: {}]
  %s4 = inlined_call_operand.vmem [shape: f32[2,1,384], index: 4, kind: input, shape index: {}]
  %s5 = inlined_call_operand.vmem [shape: bf16[2,128,128], index: 5, kind: input, shape index: {}]
  %s6 = inlined_call_operand.vmem [shape: f32[2,1,128], index: 6, kind: input, shape index: {}]
  %s7 = inlined_call_operand.vmem [shape: f32[2,1,128], index: 7, kind: input, shape index: {}]
  %s8 = inlined_call_operand.vmem [shape: f32[2,1,128], index: 8, kind: input, shape index: {}]
  %s9 = inlined_call_operand.vmem [shape: bf16[2,128,256], index: 9, kind: input, shape index: {}]
  %s10 = inlined_call_operand.vmem [shape: f32[2,1,256], index: 10, kind: input, shape index: {}]
  %s11 = inlined_call_operand.vmem [shape: bf16[2,256,128], index: 11, kind: input, shape index: {}]
  %s12 = inlined_call_operand.vmem [shape: f32[2,1,128], index: 12, kind: input, shape index: {}]
  %s13 = inlined_call_operand.vmem [shape: f32[1,128], index: 13, kind: input, shape index: {}]
  %s14 = inlined_call_operand.vmem [shape: f32[1,128], index: 14, kind: input, shape index: {}]
  %s15 = inlined_call_operand.hbm [shape: f32[2,16,128], index: 15, kind: output, shape index: {}]
  %s16 = sld [smem:[#allocation0]]
  $region101: #{vision_transformer_forward.3} parent=0
    _
  %s18 = ssub.s32 1, %s16
  %s19 = scalar_select 0, %s18, %s16
  $region1: #{vision_transformer_forward.3} parent=0
    #allocation4 [shape = 'u8[16384]{0}', space=vmem, size = 0x4000, scoped, tag = 'output window, operand 0']
    #allocation5 [shape = 's32[2]{0}', space=sflag, size = 0x8, scoped, tag = 'scoped memory for vision_transformer_forward.3']
    %20 = vsyncpa [#allocation5], 0
    %s21 = scalar_lea.sflag [#allocation5], 1
    %22 = vsyncpa %s21, 0
    loop: start=0, step=1, limit=6
    $region2: #{vision_transformer_forward.3} parent=1 // loop_pre_header
      _
    $region3: #{vision_transformer_forward.3} parent=1 // loop_header
      %s24 = sphi 0, %s28
      %p25 = scmp.ge.s32.totalorder %s24, 6
      %s31 = sphi 0, %s43
      %s32 = sphi 0, %s39
      %s33 = sphi 0, %s31
      %s34 = sphi 0, %s32
      %s35 = sphi 0, %s33
      %s36 = sphi 0, %s34
      %s46 = sphi 0, %s48
      %s49 = sphi 0, %s46
      %s50 = sphi 0, %s49
      %s66 = sphi 0, %s50
      %s72 = sphi 0, %s74
      %s75 = sphi 0, %s72
      %s76 = sphi 0, %s75
      %s92 = sphi 0, %s76
      %s98 = sphi 0, %s100
      %s101 = sphi 0, %s98
      %s102 = sphi 0, %s101
      %s118 = sphi 0, %s102
      %s124 = sphi 0, %s126
      %s127 = sphi 0, %s124
      %s128 = sphi 0, %s127
      %s144 = sphi 0, %s128
      %s150 = sphi 0, %s152
      %s153 = sphi 0, %s150
      %s154 = sphi 0, %s153
      %s170 = sphi 0, %s154
      %s176 = sphi 0, %s178
      %s179 = sphi 0, %s176
      %s180 = sphi 0, %s179
      %s196 = sphi 0, %s180
      %s202 = sphi 0, %s204
      %s205 = sphi 0, %s202
      %s206 = sphi 0, %s205
      %s222 = sphi 0, %s206
      %s228 = sphi 0, %s230
      %s231 = sphi 0, %s228
      %s232 = sphi 0, %s231
      %s248 = sphi 0, %s232
      %s254 = sphi 0, %s256
      %s257 = sphi 0, %s254
      %s258 = sphi 0, %s257
      %s274 = sphi 0, %s258
      %s280 = sphi 0, %s282
      %s283 = sphi 0, %s280
      %s284 = sphi 0, %s283
      %s300 = sphi 0, %s284
      %s306 = sphi 0, %s308
      %s309 = sphi 0, %s306
      %s310 = sphi 0, %s309
      %s326 = sphi 0, %s310
      %s332 = sphi 0, %s334
      %s335 = sphi 0, %s332
      %s336 = sphi 0, %s335
      %s352 = sphi 0, %s336
      %s358 = sphi 0, %s360
      %s361 = sphi 0, %s358
      %s362 = sphi 0, %s361
      %s378 = sphi 0, %s362
      %s382 = sphi 0, %s382
      %s384 = sphi 0, %s382
      %s385 = sphi 0, %s384
      %s399 = sphi 0, %s385
      %s403 = sphi 0, %s403
      %s405 = sphi 0, %s403
      %s406 = sphi 0, %s405
      %s420 = sphi 0, %s406
      %s426 = sphi 0, %s428
      %s429 = sphi 0, %s426
      %s430 = sphi 0, %s429
      %s446 = sphi 0, %s430
    $region4: #{vision_transformer_forward.3} parent=1 // loop_header_branch
      %27 = sbr.rel (%p25) target = $region8
    $region5: #{vision_transformer_forward.3} parent=1 // loop_body
      %s29 = ssub.s32 %s24, 1
      %s30 = ssub.s32 %s24, 2
      %s37 = sadd.s32 1, %s32
      %p38 = scmp.ge.s32.totalorder %s37, 2
      %s39 = scalar_select %p38, 0, %s37
      %s40 = sadd.s32 1, %s31
      %s41 = scalar_select %p38, %s40, %s31
      %p42 = scmp.ge.s32.totalorder %s41, 2
      %s43 = scalar_select %p42, 0, %s41
      %s44 = ssub.s32 %s31, %s43
      %p45 = scmp.eq.s32.totalorder %s44, 0
      %s47 = sadd.s32 %s46, 1
      %s48 = scalar_select %p45, %s46, %s47
      %p51 = pneg %p45
      %p52 = scmp.eq.s32.totalorder %s24, 3
      %p53 = por %p51, %p52
      %p54 = scmp.ne.s32.totalorder %s46, %s49
      %p55 = scmp.eq.s32.totalorder %s24, 0
      %p56 = por %p54, %p55
      %p57 = scmp.ne.s32.totalorder %s46, %s49
      %p58 = scmp.eq.s32.totalorder %s29, 3
      %p59 = por %p57, %p58
      %p60 = scmp.ne.s32.totalorder %s49, %s50
      %p61 = scmp.eq.s32.totalorder %s29, 0
      %p62 = por %p60, %p61
      %p63 = scmp.ne.s32.totalorder %s49, %s50
      %p64 = scmp.eq.s32.totalorder %s30, 3
      %p65 = por %p63, %p64
      %p67 = scmp.ne.s32.totalorder %s50, %s66
      %p68 = scmp.eq.s32.totalorder %s30, 0
      %p69 = por %p67, %p68
      %s70 = ssub.s32 %s32, %s39
      %p71 = scmp.eq.s32.totalorder %s70, 0
      %s73 = sadd.s32 %s72, 1
      %s74 = scalar_select %p71, %s72, %s73
      %p77 = pneg %p71
      %p78 = scmp.eq.s32.totalorder %s24, 3
      %p79 = por %p77, %p78
      %p80 = scmp.ne.s32.totalorder %s72, %s75
      %p81 = scmp.eq.s32.totalorder %s24, 0
      %p82 = por %p80, %p81
      %p83 = scmp.ne.s32.totalorder %s72, %s75
      %p84 = scmp.eq.s32.totalorder %s29, 3
      %p85 = por %p83, %p84
      %p86 = scmp.ne.s32.totalorder %s75, %s76
      %p87 = scmp.eq.s32.totalorder %s29, 0
      %p88 = por %p86, %p87
      %p89 = scmp.ne.s32.totalorder %s75, %s76
      %p90 = scmp.eq.s32.totalorder %s30, 3
      %p91 = por %p89, %p90
      %p93 = scmp.ne.s32.totalorder %s76, %s92
      %p94 = scmp.eq.s32.totalorder %s30, 0
      %p95 = por %p93, %p94
      %s96 = ssub.s32 %s32, %s39
      %p97 = scmp.eq.s32.totalorder %s96, 0
      %s99 = sadd.s32 %s98, 1
      %s100 = scalar_select %p97, %s98, %s99
      %p103 = pneg %p97
      %p104 = scmp.eq.s32.totalorder %s24, 3
      %p105 = por %p103, %p104
      %p106 = scmp.ne.s32.totalorder %s98, %s101
      %p107 = scmp.eq.s32.totalorder %s24, 0
      %p108 = por %p106, %p107
      %p109 = scmp.ne.s32.totalorder %s98, %s101
      %p110 = scmp.eq.s32.totalorder %s29, 3
      %p111 = por %p109, %p110
      %p112 = scmp.ne.s32.totalorder %s101, %s102
      %p113 = scmp.eq.s32.totalorder %s29, 0
      %p114 = por %p112, %p113
      %p115 = scmp.ne.s32.totalorder %s101, %s102
      %p116 = scmp.eq.s32.totalorder %s30, 3
      %p117 = por %p115, %p116
      %p119 = scmp.ne.s32.totalorder %s102, %s118
      %p120 = scmp.eq.s32.totalorder %s30, 0
      %p121 = por %p119, %p120
      %s122 = ssub.s32 %s32, %s39
      %p123 = scmp.eq.s32.totalorder %s122, 0
      %s125 = sadd.s32 %s124, 1
      %s126 = scalar_select %p123, %s124, %s125
      %p129 = pneg %p123
      %p130 = scmp.eq.s32.totalorder %s24, 3
      %p131 = por %p129, %p130
      %p132 = scmp.ne.s32.totalorder %s124, %s127
      %p133 = scmp.eq.s32.totalorder %s24, 0
      %p134 = por %p132, %p133
      %p135 = scmp.ne.s32.totalorder %s124, %s127
      %p136 = scmp.eq.s32.totalorder %s29, 3
      %p137 = por %p135, %p136
      %p138 = scmp.ne.s32.totalorder %s127, %s128
      %p139 = scmp.eq.s32.totalorder %s29, 0
      %p140 = por %p138, %p139
      %p141 = scmp.ne.s32.totalorder %s127, %s128
      %p142 = scmp.eq.s32.totalorder %s30, 3
      %p143 = por %p141, %p142
      %p145 = scmp.ne.s32.totalorder %s128, %s144
      %p146 = scmp.eq.s32.totalorder %s30, 0
      %p147 = por %p145, %p146
      %s148 = ssub.s32 %s32, %s39
      %p149 = scmp.eq.s32.totalorder %s148, 0
      %s151 = sadd.s32 %s150, 1
      %s152 = scalar_select %p149, %s150, %s151
      %p155 = pneg %p149
      %p156 = scmp.eq.s32.totalorder %s24, 3
      %p157 = por %p155, %p156
      %p158 = scmp.ne.s32.totalorder %s150, %s153
      %p159 = scmp.eq.s32.totalorder %s24, 0
      %p160 = por %p158, %p159
      %p161 = scmp.ne.s32.totalorder %s150, %s153
      %p162 = scmp.eq.s32.totalorder %s29, 3
      %p163 = por %p161, %p162
      %p164 = scmp.ne.s32.totalorder %s153, %s154
      %p165 = scmp.eq.s32.totalorder %s29, 0
      %p166 = por %p164, %p165
      %p167 = scmp.ne.s32.totalorder %s153, %s154
      %p168 = scmp.eq.s32.totalorder %s30, 3
      %p169 = por %p167, %p168
      %p171 = scmp.ne.s32.totalorder %s154, %s170
      %p172 = scmp.eq.s32.totalorder %s30, 0
      %p173 = por %p171, %p172
      %s174 = ssub.s32 %s32, %s39
      %p175 = scmp.eq.s32.totalorder %s174, 0
      %s177 = sadd.s32 %s176, 1
      %s178 = scalar_select %p175, %s176, %s177
      %p181 = pneg %p175
      %p182 = scmp.eq.s32.totalorder %s24, 3
      %p183 = por %p181, %p182
      %p184 = scmp.ne.s32.totalorder %s176, %s179
      %p185 = scmp.eq.s32.totalorder %s24, 0
      %p186 = por %p184, %p185
      %p187 = scmp.ne.s32.totalorder %s176, %s179
      %p188 = scmp.eq.s32.totalorder %s29, 3
      %p189 = por %p187, %p188
      %p190 = scmp.ne.s32.totalorder %s179, %s180
      %p191 = scmp.eq.s32.totalorder %s29, 0
      %p192 = por %p190, %p191
      %p193 = scmp.ne.s32.totalorder %s179, %s180
      %p194 = scmp.eq.s32.totalorder %s30, 3
      %p195 = por %p193, %p194
      %p197 = scmp.ne.s32.totalorder %s180, %s196
      %p198 = scmp.eq.s32.totalorder %s30, 0
      %p199 = por %p197, %p198
      %s200 = ssub.s32 %s32, %s39
      %p201 = scmp.eq.s32.totalorder %s200, 0
      %s203 = sadd.s32 %s202, 1
      %s204 = scalar_select %p201, %s202, %s203
      %p207 = pneg %p201
      %p208 = scmp.eq.s32.totalorder %s24, 3
      %p209 = por %p207, %p208
      %p210 = scmp.ne.s32.totalorder %s202, %s205
      %p211 = scmp.eq.s32.totalorder %s24, 0
      %p212 = por %p210, %p211
      %p213 = scmp.ne.s32.totalorder %s202, %s205
      %p214 = scmp.eq.s32.totalorder %s29, 3
      %p215 = por %p213, %p214
      %p216 = scmp.ne.s32.totalorder %s205, %s206
      %p217 = scmp.eq.s32.totalorder %s29, 0
      %p218 = por %p216, %p217
      %p219 = scmp.ne.s32.totalorder %s205, %s206
      %p220 = scmp.eq.s32.totalorder %s30, 3
      %p221 = por %p219, %p220
      %p223 = scmp.ne.s32.totalorder %s206, %s222
      %p224 = scmp.eq.s32.totalorder %s30, 0
      %p225 = por %p223, %p224
      %s226 = ssub.s32 %s32, %s39
      %p227 = scmp.eq.s32.totalorder %s226, 0
      %s229 = sadd.s32 %s228, 1
      %s230 = scalar_select %p227, %s228, %s229
      %p233 = pneg %p227
      %p234 = scmp.eq.s32.totalorder %s24, 3
      %p235 = por %p233, %p234
      %p236 = scmp.ne.s32.totalorder %s228, %s231
      %p237 = scmp.eq.s32.totalorder %s24, 0
      %p238 = por %p236, %p237
      %p239 = scmp.ne.s32.totalorder %s228, %s231
      %p240 = scmp.eq.s32.totalorder %s29, 3
      %p241 = por %p239, %p240
      %p242 = scmp.ne.s32.totalorder %s231, %s232
      %p243 = scmp.eq.s32.totalorder %s29, 0
      %p244 = por %p242, %p243
      %p245 = scmp.ne.s32.totalorder %s231, %s232
      %p246 = scmp.eq.s32.totalorder %s30, 3
      %p247 = por %p245, %p246
      %p249 = scmp.ne.s32.totalorder %s232, %s248
      %p250 = scmp.eq.s32.totalorder %s30, 0
      %p251 = por %p249, %p250
      %s252 = ssub.s32 %s32, %s39
      %p253 = scmp.eq.s32.totalorder %s252, 0
      %s255 = sadd.s32 %s254, 1
      %s256 = scalar_select %p253, %s254, %s255
      %p259 = pneg %p253
      %p260 = scmp.eq.s32.totalorder %s24, 3
      %p261 = por %p259, %p260
      %p262 = scmp.ne.s32.totalorder %s254, %s257
      %p263 = scmp.eq.s32.totalorder %s24, 0
      %p264 = por %p262, %p263
      %p265 = scmp.ne.s32.totalorder %s254, %s257
      %p266 = scmp.eq.s32.totalorder %s29, 3
      %p267 = por %p265, %p266
      %p268 = scmp.ne.s32.totalorder %s257, %s258
      %p269 = scmp.eq.s32.totalorder %s29, 0
      %p270 = por %p268, %p269
      %p271 = scmp.ne.s32.totalorder %s257, %s258
      %p272 = scmp.eq.s32.totalorder %s30, 3
      %p273 = por %p271, %p272
      %p275 = scmp.ne.s32.totalorder %s258, %s274
      %p276 = scmp.eq.s32.totalorder %s30, 0
      %p277 = por %p275, %p276
      %s278 = ssub.s32 %s32, %s39
      %p279 = scmp.eq.s32.totalorder %s278, 0
      %s281 = sadd.s32 %s280, 1
      %s282 = scalar_select %p279, %s280, %s281
      %p285 = pneg %p279
      %p286 = scmp.eq.s32.totalorder %s24, 3
      %p287 = por %p285, %p286
      %p288 = scmp.ne.s32.totalorder %s280, %s283
      %p289 = scmp.eq.s32.totalorder %s24, 0
      %p290 = por %p288, %p289
      %p291 = scmp.ne.s32.totalorder %s280, %s283
      %p292 = scmp.eq.s32.totalorder %s29, 3
      %p293 = por %p291, %p292
      %p294 = scmp.ne.s32.totalorder %s283, %s284
      %p295 = scmp.eq.s32.totalorder %s29, 0
      %p296 = por %p294, %p295
      %p297 = scmp.ne.s32.totalorder %s283, %s284
      %p298 = scmp.eq.s32.totalorder %s30, 3
      %p299 = por %p297, %p298
      %p301 = scmp.ne.s32.totalorder %s284, %s300
      %p302 = scmp.eq.s32.totalorder %s30, 0
      %p303 = por %p301, %p302
      %s304 = ssub.s32 %s32, %s39
      %p305 = scmp.eq.s32.totalorder %s304, 0
      %s307 = sadd.s32 %s306, 1
      %s308 = scalar_select %p305, %s306, %s307
      %p311 = pneg %p305
      %p312 = scmp.eq.s32.totalorder %s24, 3
      %p313 = por %p311, %p312
      %p314 = scmp.ne.s32.totalorder %s306, %s309
      %p315 = scmp.eq.s32.totalorder %s24, 0
      %p316 = por %p314, %p315
      %p317 = scmp.ne.s32.totalorder %s306, %s309
      %p318 = scmp.eq.s32.totalorder %s29, 3
      %p319 = por %p317, %p318
      %p320 = scmp.ne.s32.totalorder %s309, %s310
      %p321 = scmp.eq.s32.totalorder %s29, 0
      %p322 = por %p320, %p321
      %p323 = scmp.ne.s32.totalorder %s309, %s310
      %p324 = scmp.eq.s32.totalorder %s30, 3
      %p325 = por %p323, %p324
      %p327 = scmp.ne.s32.totalorder %s310, %s326
      %p328 = scmp.eq.s32.totalorder %s30, 0
      %p329 = por %p327, %p328
      %s330 = ssub.s32 %s32, %s39
      %p331 = scmp.eq.s32.totalorder %s330, 0
      %s333 = sadd.s32 %s332, 1
      %s334 = scalar_select %p331, %s332, %s333
      %p337 = pneg %p331
      %p338 = scmp.eq.s32.totalorder %s24, 3
      %p339 = por %p337, %p338
      %p340 = scmp.ne.s32.totalorder %s332, %s335
      %p341 = scmp.eq.s32.totalorder %s24, 0
      %p342 = por %p340, %p341
      %p343 = scmp.ne.s32.totalorder %s332, %s335
      %p344 = scmp.eq.s32.totalorder %s29, 3
      %p345 = por %p343, %p344
      %p346 = scmp.ne.s32.totalorder %s335, %s336
      %p347 = scmp.eq.s32.totalorder %s29, 0
      %p348 = por %p346, %p347
      %p349 = scmp.ne.s32.totalorder %s335, %s336
      %p350 = scmp.eq.s32.totalorder %s30, 3
      %p351 = por %p349, %p350
      %p353 = scmp.ne.s32.totalorder %s336, %s352
      %p354 = scmp.eq.s32.totalorder %s30, 0
      %p355 = por %p353, %p354
      %s356 = ssub.s32 %s32, %s39
      %p357 = scmp.eq.s32.totalorder %s356, 0
      %s359 = sadd.s32 %s358, 1
      %s360 = scalar_select %p357, %s358, %s359
      %p363 = pneg %p357
      %p364 = scmp.eq.s32.totalorder %s24, 3
      %p365 = por %p363, %p364
      %p366 = scmp.ne.s32.totalorder %s358, %s361
      %p367 = scmp.eq.s32.totalorder %s24, 0
      %p368 = por %p366, %p367
      %p369 = scmp.ne.s32.totalorder %s358, %s361
      %p370 = scmp.eq.s32.totalorder %s29, 3
      %p371 = por %p369, %p370
      %p372 = scmp.ne.s32.totalorder %s361, %s362
      %p373 = scmp.eq.s32.totalorder %s29, 0
      %p374 = por %p372, %p373
      %p375 = scmp.ne.s32.totalorder %s361, %s362
      %p376 = scmp.eq.s32.totalorder %s30, 3
      %p377 = por %p375, %p376
      %p379 = scmp.ne.s32.totalorder %s362, %s378
      %p380 = scmp.eq.s32.totalorder %s30, 0
      %p381 = por %p379, %p380
      %s383 = sadd.s32 %s382, 1
      %p386 = scmp.eq.s32.totalorder %s24, 3
      %p387 = scmp.ne.s32.totalorder %s382, %s384
      %p388 = scmp.eq.s32.totalorder %s24, 0
      %p389 = por %p387, %p388
      %p390 = scmp.ne.s32.totalorder %s382, %s384
      %p391 = scmp.eq.s32.totalorder %s29, 3
      %p392 = por %p390, %p391
      %p393 = scmp.ne.s32.totalorder %s384, %s385
      %p394 = scmp.eq.s32.totalorder %s29, 0
      %p395 = por %p393, %p394
      %p396 = scmp.ne.s32.totalorder %s384, %s385
      %p397 = scmp.eq.s32.totalorder %s30, 3
      %p398 = por %p396, %p397
      %p400 = scmp.ne.s32.totalorder %s385, %s399
      %p401 = scmp.eq.s32.totalorder %s30, 0
      %p402 = por %p400, %p401
      %s404 = sadd.s32 %s403, 1
      %p407 = scmp.eq.s32.totalorder %s24, 3
      %p408 = scmp.ne.s32.totalorder %s403, %s405
      %p409 = scmp.eq.s32.totalorder %s24, 0
      %p410 = por %p408, %p409
      %p411 = scmp.ne.s32.totalorder %s403, %s405
      %p412 = scmp.eq.s32.totalorder %s29, 3
      %p413 = por %p411, %p412
      %p414 = scmp.ne.s32.totalorder %s405, %s406
      %p415 = scmp.eq.s32.totalorder %s29, 0
      %p416 = por %p414, %p415
      %p417 = scmp.ne.s32.totalorder %s405, %s406
      %p418 = scmp.eq.s32.totalorder %s30, 3
      %p419 = por %p417, %p418
      %p421 = scmp.ne.s32.totalorder %s406, %s420
      %p422 = scmp.eq.s32.totalorder %s30, 0
      %p423 = por %p421, %p422
      %s424 = ssub.s32 %s31, %s43
      %p425 = scmp.eq.s32.totalorder %s424, 0
      %s427 = sadd.s32 %s426, 1
      %s428 = scalar_select %p425, %s426, %s427
      %p431 = pneg %p425
      %p432 = scmp.eq.s32.totalorder %s24, 3
      %p433 = por %p431, %p432
      %p434 = scmp.ne.s32.totalorder %s426, %s429
      %p435 = scmp.eq.s32.totalorder %s24, 0
      %p436 = por %p434, %p435
      %p437 = scmp.ne.s32.totalorder %s426, %s429
      %p438 = scmp.eq.s32.totalorder %s29, 3
      %p439 = por %p437, %p438
      %p440 = scmp.ne.s32.totalorder %s429, %s430
      %p441 = scmp.eq.s32.totalorder %s29, 0
      %p442 = por %p440, %p441
      %p443 = scmp.ne.s32.totalorder %s429, %s430
      %p444 = scmp.eq.s32.totalorder %s30, 3
      %p445 = por %p443, %p444
      %p447 = scmp.ne.s32.totalorder %s430, %s446
      %p448 = scmp.eq.s32.totalorder %s30, 0
      %p449 = por %p447, %p448
      %p450 = scmp.le.s32.totalorder 1, %s24
      %p451 = scmp.lt.s32.totalorder %s24, 5
      %p452 = pnand %p450, %p451
      %p453 = pneg %p452
      // Predicated region
      $region9: #{vision_transformer_forward.3} parent=5 // pred_check
        _
      $region10: #{vision_transformer_forward.3} parent=5 // pred_check_branch
        %455 = sbr.rel (%p452) target = $region12
      $region11: #{vision_transformer_forward.3} parent=5 // pred_region
        %s456 = ssub.s32 %s24, 1
        // Predicated region
        $region13: #{vision_transformer_forward.3} parent=11 // pred_check
          %p457 = pneg %p395
        $region14: #{vision_transformer_forward.3} parent=11 // pred_check_branch
          %459 = sbr.rel (%p457) target = $region16
        $region15: #{vision_transformer_forward.3} parent=11 // pred_region
          _
        $region16: #{vision_transformer_forward.3} parent=11 // pred_fallthru
          _
        // Predicated region
        $region17: #{vision_transformer_forward.3} parent=11 // pred_check
          %p460 = pneg %p416
        $region18: #{vision_transformer_forward.3} parent=11 // pred_check_branch
          %462 = sbr.rel (%p460) target = $region20
        $region19: #{vision_transformer_forward.3} parent=11 // pred_region
          _
        $region20: #{vision_transformer_forward.3} parent=11 // pred_fallthru
          _
      $region12: #{vision_transformer_forward.3} parent=5 // pred_fallthru
        _
      %p463 = scmp.lt.s32.totalorder %s24, 4
      // Predicated region
      $region21: #{vision_transformer_forward.3} parent=5 // pred_check
        %p464 = pneg %p463
      $region22: #{vision_transformer_forward.3} parent=5 // pred_check_branch
        %466 = sbr.rel (%p464) target = $region24
      $region23: #{vision_transformer_forward.3} parent=5 // pred_region
        // Predicated region
        $region25: #{vision_transformer_forward.3} parent=23 // pred_check
          %p467 = pneg %p56
        $region26: #{vision_transformer_forward.3} parent=23 // pred_check_branch
          %469 = sbr.rel (%p467) target = $region28
        $region27: #{vision_transformer_forward.3} parent=23 // pred_region
          %p470 = scmp.lt.s32.totalorder %s31, 1
          %s471 = scalar_select %p470, %s31, 1
          %s472 = smul.addr %s471, 2
          %s473 = smul.addr %s472, 8
          %s474 = scalar_lea.vmem %s0, %s473
        $region28: #{vision_transformer_forward.3} parent=23 // pred_fallthru
          _
        // Predicated region
        $region29: #{vision_transformer_forward.3} parent=23 // pred_check
          %p475 = pneg %p82
        $region30: #{vision_transformer_forward.3} parent=23 // pred_check_branch
          %477 = sbr.rel (%p475) target = $region32
        $region31: #{vision_transformer_forward.3} parent=23 // pred_region
          %p478 = scmp.lt.s32.totalorder %s32, 1
          %s479 = scalar_select %p478, %s32, 1
          %s480 = scalar_lea.vmem %s1, %s479
        $region32: #{vision_transformer_forward.3} parent=23 // pred_fallthru
          _
        // Predicated region
        $region33: #{vision_transformer_forward.3} parent=23 // pred_check
          %p481 = pneg %p108
        $region34: #{vision_transformer_forward.3} parent=23 // pred_check_branch
          %483 = sbr.rel (%p481) target = $region36
        $region35: #{vision_transformer_forward.3} parent=23 // pred_region
          %p484 = scmp.lt.s32.totalorder %s32, 1
          %s485 = scalar_select %p484, %s32, 1
          %s486 = scalar_lea.vmem %s2, %s485
        $region36: #{vision_transformer_forward.3} parent=23 // pred_fallthru
          _
        // Predicated region
        $region37: #{vision_transformer_forward.3} parent=23 // pred_check
          %p487 = pneg %p134
        $region38: #{vision_transformer_forward.3} parent=23 // pred_check_branch
          %489 = sbr.rel (%p487) target = $region40
        $region39: #{vision_transformer_forward.3} parent=23 // pred_region
          %p490 = scmp.lt.s32.totalorder %s32, 1
          %s491 = scalar_select %p490, %s32, 1
          %s492 = smul.addr %s491, 48
          %s493 = smul.addr %s492, 4
          %s494 = scalar_lea.vmem %s3, %s493
        $region40: #{vision_transformer_forward.3} parent=23 // pred_fallthru
          _
        // Predicated region
        $region41: #{vision_transformer_forward.3} parent=23 // pred_check
          %p495 = pneg %p160
        $region42: #{vision_transformer_forward.3} parent=23 // pred_check_branch
          %497 = sbr.rel (%p495) target = $region44
        $region43: #{vision_transformer_forward.3} parent=23 // pred_region
          %p498 = scmp.lt.s32.totalorder %s32, 1
          %s499 = scalar_select %p498, %s32, 1
          %s500 = smul.addr %s499, 3
          %s501 = scalar_lea.vmem %s4, %s500
        $region44: #{vision_transformer_forward.3} parent=23 // pred_fallthru
          _
        // Predicated region
        $region45: #{vision_transformer_forward.3} parent=23 // pred_check
          %p502 = pneg %p186
        $region46: #{vision_transformer_forward.3} parent=23 // pred_check_branch
          %504 = sbr.rel (%p502) target = $region48
        $region47: #{vision_transformer_forward.3} parent=23 // pred_region
          %p505 = scmp.lt.s32.totalorder %s32, 1
          %s506 = scalar_select %p505, %s32, 1
          %s507 = smul.addr %s506, 16
          %s508 = smul.addr %s507, 4
          %s509 = scalar_lea.vmem %s5, %s508
        $region48: #{vision_transformer_forward.3} parent=23 // pred_fallthru
          _
        // Predicated region
        $region49: #{vision_transformer_forward.3} parent=23 // pred_check
          %p510 = pneg %p212
        $region50: #{vision_transformer_forward.3} parent=23 // pred_check_branch
          %512 = sbr.rel (%p510) target = $region52
        $region51: #{vision_transformer_forward.3} parent=23 // pred_region
          %p513 = scmp.lt.s32.totalorder %s32, 1
          %s514 = scalar_select %p513, %s32, 1
          %s515 = scalar_lea.vmem %s6, %s514
        $region52: #{vision_transformer_forward.3} parent=23 // pred_fallthru
          _
        // Predicated region
        $region53: #{vision_transformer_forward.3} parent=23 // pred_check
          %p516 = pneg %p238
        $region54: #{vision_transformer_forward.3} parent=23 // pred_check_branch
          %518 = sbr.rel (%p516) target = $region56
        $region55: #{vision_transformer_forward.3} parent=23 // pred_region
          %p519 = scmp.lt.s32.totalorder %s32, 1
          %s520 = scalar_select %p519, %s32, 1
          %s521 = scalar_lea.vmem %s7, %s520
        $region56: #{vision_transformer_forward.3} parent=23 // pred_fallthru
          _
        // Predicated region
        $region57: #{vision_transformer_forward.3} parent=23 // pred_check
          %p522 = pneg %p264
        $region58: #{vision_transformer_forward.3} parent=23 // pred_check_branch
          %524 = sbr.rel (%p522) target = $region60
        $region59: #{vision_transformer_forward.3} parent=23 // pred_region
          %p525 = scmp.lt.s32.totalorder %s32, 1
          %s526 = scalar_select %p525, %s32, 1
          %s527 = scalar_lea.vmem %s8, %s526
        $region60: #{vision_transformer_forward.3} parent=23 // pred_fallthru
          _
        // Predicated region
        $region61: #{vision_transformer_forward.3} parent=23 // pred_check
          %p528 = pneg %p290
        $region62: #{vision_transformer_forward.3} parent=23 // pred_check_branch
          %530 = sbr.rel (%p528) target = $region64
        $region63: #{vision_transformer_forward.3} parent=23 // pred_region
          %p531 = scmp.lt.s32.totalorder %s32, 1
          %s532 = scalar_select %p531, %s32, 1
          %s533 = smul.addr %s532, 32
          %s534 = smul.addr %s533, 4
          %s535 = scalar_lea.vmem %s9, %s534
        $region64: #{vision_transformer_forward.3} parent=23 // pred_fallthru
          _
        // Predicated region
        $region65: #{vision_transformer_forward.3} parent=23 // pred_check
          %p536 = pneg %p316
        $region66: #{vision_transformer_forward.3} parent=23 // pred_check_branch
          %538 = sbr.rel (%p536) target = $region68
        $region67: #{vision_transformer_forward.3} parent=23 // pred_region
          %p539 = scmp.lt.s32.totalorder %s32, 1
          %s540 = scalar_select %p539, %s32, 1
          %s541 = smul.addr %s540, 2
          %s542 = scalar_lea.vmem %s10, %s541
        $region68: #{vision_transformer_forward.3} parent=23 // pred_fallthru
          _
        // Predicated region
        $region69: #{vision_transformer_forward.3} parent=23 // pred_check
          %p543 = pneg %p342
        $region70: #{vision_transformer_forward.3} parent=23 // pred_check_branch
          %545 = sbr.rel (%p543) target = $region72
        $region71: #{vision_transformer_forward.3} parent=23 // pred_region
          %p546 = scmp.lt.s32.totalorder %s32, 1
          %s547 = scalar_select %p546, %s32, 1
          %s548 = smul.addr %s547, 32
          %s549 = smul.addr %s548, 4
          %s550 = scalar_lea.vmem %s11, %s549
        $region72: #{vision_transformer_forward.3} parent=23 // pred_fallthru
          _
        // Predicated region
        $region73: #{vision_transformer_forward.3} parent=23 // pred_check
          %p551 = pneg %p368
        $region74: #{vision_transformer_forward.3} parent=23 // pred_check_branch
          %553 = sbr.rel (%p551) target = $region76
        $region75: #{vision_transformer_forward.3} parent=23 // pred_region
          %p554 = scmp.lt.s32.totalorder %s32, 1
          %s555 = scalar_select %p554, %s32, 1
          %s556 = scalar_lea.vmem %s12, %s555
        $region76: #{vision_transformer_forward.3} parent=23 // pred_fallthru
          _
      $region24: #{vision_transformer_forward.3} parent=5 // pred_fallthru
        _
      %p557 = scmp.le.s32.totalorder 1, %s24
      %p558 = scmp.lt.s32.totalorder %s24, 5
      %p559 = pnand %p557, %p558
      %p560 = pneg %p559
      // Predicated region
      $region77: #{vision_transformer_forward.3} parent=5 // pred_check
        _
      $region78: #{vision_transformer_forward.3} parent=5 // pred_check_branch
        %562 = sbr.rel (%p559) target = $region80
      $region79: #{vision_transformer_forward.3} parent=5 // pred_region
        %s563 = ssub.s32 %s24, 1
        %p564 = scmp.lt.s32.totalorder %s33, 1
        %s565 = scalar_select %p564, %s33, 1
        %s566 = smul.addr %s565, 2
        %s567 = smul.addr %s566, 8
        %s568 = scalar_lea.vmem %s0, %s567
        %p569 = pneg %p62
        %p570 = pneg %p59
        %p571 = scmp.lt.s32.totalorder %s34, 1
        %s572 = scalar_select %p571, %s34, 1
        %s573 = scalar_lea.vmem %s1, %s572
        %p574 = pneg %p88
        %p575 = pneg %p85
        %p576 = scmp.lt.s32.totalorder %s34, 1
        %s577 = scalar_select %p576, %s34, 1
        %s578 = scalar_lea.vmem %s2, %s577
        %p579 = pneg %p114
        %p580 = pneg %p111
        %p581 = scmp.lt.s32.totalorder %s34, 1
        %s582 = scalar_select %p581, %s34, 1
        %s583 = smul.addr %s582, 48
        %s584 = smul.addr %s583, 4
        %s585 = scalar_lea.vmem %s3, %s584
        %p586 = pneg %p140
        %p587 = pneg %p137
        %p588 = scmp.lt.s32.totalorder %s34, 1
        %s589 = scalar_select %p588, %s34, 1
        %s590 = smul.addr %s589, 3
        %s591 = scalar_lea.vmem %s4, %s590
        %p592 = pneg %p166
        %p593 = pneg %p163
        %p594 = scmp.lt.s32.totalorder %s34, 1
        %s595 = scalar_select %p594, %s34, 1
        %s596 = smul.addr %s595, 16
        %s597 = smul.addr %s596, 4
        %s598 = scalar_lea.vmem %s5, %s597
        %p599 = pneg %p192
        %p600 = pneg %p189
        %p601 = scmp.lt.s32.totalorder %s34, 1
        %s602 = scalar_select %p601, %s34, 1
        %s603 = scalar_lea.vmem %s6, %s602
        %p604 = pneg %p218
        %p605 = pneg %p215
        %p606 = scmp.lt.s32.totalorder %s34, 1
        %s607 = scalar_select %p606, %s34, 1
        %s608 = scalar_lea.vmem %s7, %s607
        %p609 = pneg %p244
        %p610 = pneg %p241
        %p611 = scmp.lt.s32.totalorder %s34, 1
        %s612 = scalar_select %p611, %s34, 1
        %s613 = scalar_lea.vmem %s8, %s612
        %p614 = pneg %p270
        %p615 = pneg %p267
        %p616 = scmp.lt.s32.totalorder %s34, 1
        %s617 = scalar_select %p616, %s34, 1
        %s618 = smul.addr %s617, 32
        %s619 = smul.addr %s618, 4
        %s620 = scalar_lea.vmem %s9, %s619
        %p621 = pneg %p296
        %p622 = pneg %p293
        %p623 = scmp.lt.s32.totalorder %s34, 1
        %s624 = scalar_select %p623, %s34, 1
        %s625 = smul.addr %s624, 2
        %s626 = scalar_lea.vmem %s10, %s625
        %p627 = pneg %p322
        %p628 = pneg %p319
        %p629 = scmp.lt.s32.totalorder %s34, 1
        %s630 = scalar_select %p629, %s34, 1
        %s631 = smul.addr %s630, 32
        %s632 = smul.addr %s631, 4
        %s633 = scalar_lea.vmem %s11, %s632
        %p634 = pneg %p348
        %p635 = pneg %p345
        %p636 = scmp.lt.s32.totalorder %s34, 1
        %s637 = scalar_select %p636, %s34, 1
        %s638 = scalar_lea.vmem %s12, %s637
        %p639 = pneg %p374
        %p640 = pneg %p371
        %p641 = pneg %p395
        %p642 = pneg %p392
        %p643 = pneg %p416
        %p644 = pneg %p413
        %p645 = pneg %p442
        %p646 = pneg %p439
        %s647 = sand.u32 %s429, 1
        %s648 = scalar_lea.sflag [#allocation5], %s647
        %s649 = sand.u32 %s429, 1
        %s650 = smul.addr %s649, 16
        %s651 = scalar_lea.vmem [#allocation4], %s650
        %p652 = scmp.lt.s32.totalorder %s33, 1
        %s653 = scalar_select %p652, %s33, 1
        %s654 = smul.addr %s653, 2
        %s655 = smul.addr %s654, 8
        %s656 = scalar_lea.vmem %s0, %s655
        %p657 = scmp.lt.s32.totalorder %s34, 1
        %s658 = scalar_select %p657, %s34, 1
        %s659 = scalar_lea.vmem %s1, %s658
        %p660 = scmp.lt.s32.totalorder %s34, 1
        %s661 = scalar_select %p660, %s34, 1
        %s662 = scalar_lea.vmem %s2, %s661
        %p663 = scmp.lt.s32.totalorder %s34, 1
        %s664 = scalar_select %p663, %s34, 1
        %s665 = smul.addr %s664, 48
        %s666 = smul.addr %s665, 4
        %s667 = scalar_lea.vmem %s3, %s666
        %p668 = scmp.lt.s32.totalorder %s34, 1
        %s669 = scalar_select %p668, %s34, 1
        %s670 = smul.addr %s669, 3
        %s671 = scalar_lea.vmem %s4, %s670
        %p672 = scmp.lt.s32.totalorder %s34, 1
        %s673 = scalar_select %p672, %s34, 1
        %s674 = smul.addr %s673, 16
        %s675 = smul.addr %s674, 4
        %s676 = scalar_lea.vmem %s5, %s675
        %p677 = scmp.lt.s32.totalorder %s34, 1
        %s678 = scalar_select %p677, %s34, 1
        %s679 = scalar_lea.vmem %s6, %s678
        %p680 = scmp.lt.s32.totalorder %s34, 1
        %s681 = scalar_select %p680, %s34, 1
        %s682 = scalar_lea.vmem %s7, %s681
        %p683 = scmp.lt.s32.totalorder %s34, 1
        %s684 = scalar_select %p683, %s34, 1
        %s685 = scalar_lea.vmem %s8, %s684
        %p686 = scmp.lt.s32.totalorder %s34, 1
        %s687 = scalar_select %p686, %s34, 1
        %s688 = smul.addr %s687, 32
        %s689 = smul.addr %s688, 4
        %s690 = scalar_lea.vmem %s9, %s689
        %p691 = scmp.lt.s32.totalorder %s34, 1
        %s692 = scalar_select %p691, %s34, 1
        %s693 = smul.addr %s692, 2
        %s694 = scalar_lea.vmem %s10, %s693
        %p695 = scmp.lt.s32.totalorder %s34, 1
        %s696 = scalar_select %p695, %s34, 1
        %s697 = smul.addr %s696, 32
        %s698 = smul.addr %s697, 4
        %s699 = scalar_lea.vmem %s11, %s698
        %p700 = scmp.lt.s32.totalorder %s34, 1
        %s701 = scalar_select %p700, %s34, 1
        %s702 = scalar_lea.vmem %s12, %s701
        %p704 = scmp.eq.s32.totalorder %s34, 0
        // Predicated region
        $region81: #{vision_transformer_forward.3} parent=79 // pred_check
          %p705 = pneg %p704
        $region82: #{vision_transformer_forward.3} parent=79 // pred_check_branch
          %707 = sbr.rel (%p705) target = $region84
        $region83: #{vision_transformer_forward.3} parent=79 // pred_region
          %v708 = vld [vmem:[%s656] sm:$0xff]
          %v709 = vld [vmem:[%s656 + $0x8] sm:$0xff]
          %710 = vst [vmem:[%s651] sm:$0xff] %v708
          %711 = vst [vmem:[%s651 + $0x8] sm:$0xff] %v709
        $region84: #{vision_transformer_forward.3} parent=79 // pred_fallthru
          _
        %v712 = vld [vmem:[%s651] sm:$0xff]
        %v713 = vld [vmem:[%s651 + $0x8] sm:$0xff]
        %v714 = vld [vmem:[%s659] sm:$0x1]
        %v715 = vld [vmem:[%s662] sm:$0x1]
        %716 = vadd.xlane.f32.xlu0 %v712
        %v717 = vpop.xlane.xlu0 %716
        %718 = vadd.xlane.f32.xlu0 %v713
        %v719 = vpop.xlane.xlu0 %718
        %v720 = vrcp.pop 128.0
        %v721 = vmul.f32 %v717, %v720
        %v722 = vmul.f32 %v719, %v720
        %v723 = vmul.f32 %v712, %v712
        %v724 = vmul.f32 %v713, %v713
        %725 = vadd.xlane.f32.xlu0 %v723
        %v726 = vpop.xlane.xlu0 %725
        %727 = vadd.xlane.f32.xlu0 %v724
        %v728 = vpop.xlane.xlu0 %727
        %v729 = vmul.f32 %v726, %v720
        %v730 = vmul.f32 %v728, %v720
        %v731 = vmul.f32 %v721, %v721
        %v732 = vmul.f32 %v722, %v722
        %v733 = vsub.f32 %v729, %v731
        %v734 = vsub.f32 %v730, %v732
        %v735 = vmax.f32 %v733, 0.0
        %v736 = vmax.f32 %v734, 0.0
        %v737 = vsub.f32 %v712, %v721
        %v738 = vsub.f32 %v713, %v722
        %v739 = vadd.f32 %v735, 1e-06
        %v740 = vadd.f32 %v736, 1e-06
        %v741 = vrsqrt.pop %v739
        %v742 = vrsqrt.pop %v740
        %v743 = vmul.f32 %v737, %v741
        %v744 = vmul.f32 %v738, %v742
        %v746 = vlaneseq
        %v747 = vshrl.u32 %v746, 7
        %v748 = vsub.s32 0, %v747
        %v749 = vrot.slane %v714, %v748
        %v751 = vmul.f32 %v743, %v749
        %v752 = vmul.f32 %v744, %v749
        %v754 = vlaneseq
        %v755 = vshrl.u32 %v754, 7
        %v756 = vsub.s32 0, %v755
        %v757 = vrot.slane %v715, %v756
        %v759 = vadd.f32 %v751, %v757
        %v760 = vadd.f32 %v752, %v757
        %v761 = vpack.c.bf16 %v760, %v759
        %v762 = vld [vmem:[%s667] sm:$0xff]
        %v763 = vld [vmem:[%s667 + $0x8] sm:$0xf]
        %v764 = vld [vmem:[%s667 + $0xc] sm:$0xff]
        %v765 = vld [vmem:[%s667 + $0x14] sm:$0xf]
        %v766 = vld [vmem:[%s667 + $0x18] sm:$0xff]
        %v767 = vld [vmem:[%s667 + $0x20] sm:$0xf]
        %v768 = vld [vmem:[%s667 + $0x24] sm:$0xff]
        %v769 = vld [vmem:[%s667 + $0x2c] sm:$0xf]
        %v770 = vld [vmem:[%s667 + $0x30] sm:$0xff]
        %v771 = vld [vmem:[%s667 + $0x38] sm:$0xf]
        %v772 = vld [vmem:[%s667 + $0x3c] sm:$0xff]
        %v773 = vld [vmem:[%s667 + $0x44] sm:$0xf]
        %v774 = vld [vmem:[%s667 + $0x48] sm:$0xff]
        %v775 = vld [vmem:[%s667 + $0x50] sm:$0xf]
        %v776 = vld [vmem:[%s667 + $0x54] sm:$0xff]
        %v777 = vld [vmem:[%s667 + $0x5c] sm:$0xf]
        %v778 = vld [vmem:[%s667 + $0x60] sm:$0xff]
        %v779 = vld [vmem:[%s667 + $0x68] sm:$0xf]
        %v780 = vld [vmem:[%s667 + $0x6c] sm:$0xff]
        %v781 = vld [vmem:[%s667 + $0x74] sm:$0xf]
        %v782 = vld [vmem:[%s667 + $0x78] sm:$0xff]
        %v783 = vld [vmem:[%s667 + $0x80] sm:$0xf]
        %v784 = vld [vmem:[%s667 + $0x84] sm:$0xff]
        %v785 = vld [vmem:[%s667 + $0x8c] sm:$0xf]
        %v786 = vld [vmem:[%s667 + $0x90] sm:$0xff]
        %v787 = vld [vmem:[%s667 + $0x98] sm:$0xf]
        %v788 = vld [vmem:[%s667 + $0x9c] sm:$0xff]
        %v789 = vld [vmem:[%s667 + $0xa4] sm:$0xf]
        %v790 = vld [vmem:[%s667 + $0xa8] sm:$0xff]
        %v791 = vld [vmem:[%s667 + $0xb0] sm:$0xf]
        %v792 = vld [vmem:[%s667 + $0xb4] sm:$0xff]
        %v793 = vld [vmem:[%s667 + $0xbc] sm:$0xf]
        %v794 = vld [vmem:[%s671] sm:$0x7]
        %v796 = vlaneseq
        %v797 = vshrl.u32 %v796, 7
        %v798 = vsub.s32 0, %v797
        %v799 = vrot.slane %v794, %v798
        %v800 = vlaneseq
        %v801 = vshrl.u32 %v800, 7
        %v802 = vsub.s32 1, %v801
        %v803 = vrot.slane %v794, %v802
        %v804 = vlaneseq
        %v805 = vshrl.u32 %v804, 7
        %v806 = vsub.s32 2, %v805
        %v807 = vrot.slane %v794, %v806
        %v843 = vunpack.c.l.b16 %v762
        %v844 = vunpack.c.h.b16 %v762
        %v845 = vunpack.c.l.b16 %v763
        %v846 = vunpack.c.l.b16 %v764
        %v847 = vunpack.c.h.b16 %v764
        %v848 = vunpack.c.l.b16 %v765
        %v849 = vunpack.c.l.b16 %v766
        %v850 = vunpack.c.h.b16 %v766
        %v851 = vunpack.c.l.b16 %v767
        %v852 = vunpack.c.l.b16 %v768
        %v853 = vunpack.c.h.b16 %v768
        %v854 = vunpack.c.l.b16 %v769
        %v855 = vunpack.c.l.b16 %v770
        %v856 = vunpack.c.h.b16 %v770
        %v857 = vunpack.c.l.b16 %v771
        %v858 = vunpack.c.l.b16 %v772
        %v859 = vunpack.c.h.b16 %v772
        %v860 = vunpack.c.l.b16 %v773
        %v861 = vunpack.c.l.b16 %v774
        %v862 = vunpack.c.h.b16 %v774
        %v863 = vunpack.c.l.b16 %v775
        %v864 = vunpack.c.l.b16 %v776
        %v865 = vunpack.c.h.b16 %v776
        %v866 = vunpack.c.l.b16 %v777
        %v867 = vunpack.c.l.b16 %v778
        %v868 = vunpack.c.h.b16 %v778
        %v869 = vunpack.c.l.b16 %v779
        %v870 = vunpack.c.l.b16 %v780
        %v871 = vunpack.c.h.b16 %v780
        %v872 = vunpack.c.l.b16 %v781
        %v873 = vunpack.c.l.b16 %v782
        %v874 = vunpack.c.h.b16 %v782
        %v875 = vunpack.c.l.b16 %v783
        %v876 = vunpack.c.l.b16 %v784
        %v877 = vunpack.c.h.b16 %v784
        %v878 = vunpack.c.l.b16 %v785
        %v879 = vunpack.c.l.b16 %v786
        %v880 = vunpack.c.h.b16 %v786
        %v881 = vunpack.c.l.b16 %v787
        %v882 = vunpack.c.l.b16 %v788
        %v883 = vunpack.c.h.b16 %v788
        %v884 = vunpack.c.l.b16 %v789
        %v885 = vunpack.c.l.b16 %v790
        %v886 = vunpack.c.h.b16 %v790
        %v887 = vunpack.c.l.b16 %v791
        %v888 = vunpack.c.l.b16 %v792
        %v889 = vunpack.c.h.b16 %v792
        %v890 = vunpack.c.l.b16 %v793
        %v891 = vpack.c.b16 %v846, %v843
        %v892 = vpack.c.b16 %v847, %v844
        %v893 = vpack.c.b16 %v848, %v845
        %v894 = vpack.c.b16 %v852, %v849
        %v895 = vpack.c.b16 %v853, %v850
        %v896 = vpack.c.b16 %v854, %v851
        %v897 = vpack.c.b16 %v858, %v855
        %v898 = vpack.c.b16 %v859, %v856
        %v899 = vpack.c.b16 %v860, %v857
        %v900 = vpack.c.b16 %v864, %v861
        %v901 = vpack.c.b16 %v865, %v862
        %v902 = vpack.c.b16 %v866, %v863
        %v903 = vpack.c.b16 %v870, %v867
        %v904 = vpack.c.b16 %v871, %v868
        %v905 = vpack.c.b16 %v872, %v869
        %v906 = vpack.c.b16 %v876, %v873
        %v907 = vpack.c.b16 %v877, %v874
        %v908 = vpack.c.b16 %v878, %v875
        %v909 = vpack.c.b16 %v882, %v879
        %v910 = vpack.c.b16 %v883, %v880
        %v911 = vpack.c.b16 %v884, %v881
        %v912 = vpack.c.b16 %v888, %v885
        %v913 = vpack.c.b16 %v889, %v886
        %v914 = vpack.c.b16 %v890, %v887
        %939 = vmatprep.subr.bf16.mxu0 %v892
        %940 = vmatpush1.bf16.msra.mxu0 %v891
        %941 = vmatprep.subr.bf16.mxu0 %v895
        %942 = vmatpush1.bf16.msra.mxu0 %v894
        %943 = vmatprep.subr.bf16.mxu0 %v898
        %944 = vmatpush1.bf16.msra.mxu0 %v897
        %945 = vmatprep.subr.bf16.mxu0 %v901
        %946 = vmatpush1.bf16.msra.mxu0 %v900
        %947 = vmatprep.subr.bf16.mxu0 %v904
        %948 = vmatpush1.bf16.msra.mxu0 %v903
        %949 = vmatprep.subr.bf16.mxu0 %v907
        %950 = vmatpush1.bf16.msra.mxu0 %v906
        %951 = vmatprep.subr.bf16.mxu0 %v910
        %952 = vmatpush1.bf16.msra.mxu0 %v909
        %953 = vmatprep.subr.bf16.mxu0 %v913
        %954 = vmatpush1.bf16.msra.mxu0 %v912
        %955 = vmatprep.subr.bf16.mxu0 0
        %956 = vmatpush1.bf16.msra.mxu0 0
        %957 = vmatprep.subr.bf16.mxu0 0
        %958 = vmatpush1.bf16.msra.mxu0 0
        %959 = vmatprep.subr.bf16.mxu0 0
        %960 = vmatpush1.bf16.msra.mxu0 0
        %961 = vmatprep.subr.bf16.mxu0 0
        %962 = vmatpush1.bf16.msra.mxu0 0
        %963 = vmatprep.subr.bf16.mxu0 0
        %964 = vmatpush1.bf16.msra.mxu0 0
        %965 = vmatprep.subr.bf16.mxu0 0
        %966 = vmatpush1.bf16.msra.mxu0 0
        %967 = vmatprep.subr.bf16.mxu0 0
        %968 = vmatpush1.bf16.msra.mxu0 0
        %969 = vmatprep.subr.bf16.mxu0 0
        %970 = vmatpush1.bf16.msra.mxu0 0
        %971 = vmatprep.mubr.bf16.mxu0 0
        %972 = vmatmul.mubr.bf16.gmra.mrb[0].mxu0 %v761
        %v973 = vpop.f32.mrb[0].mxu0
        %v974 = vadd.f32 %v799, %v973
        %v975 = vpop.f32.mrb[0].mxu0
        %v976 = vadd.f32 %v803, %v975
        %v977 = vpop.f32.mrb[0].mxu0
        %v978 = vadd.f32 %v799, %v977
        %v979 = vpop.f32.mrb[0].mxu0
        %v980 = vadd.f32 %v803, %v979
        %981 = vdwg.mxu0
        %982 = vmatprep.subr.bf16.mxu0 0
        %983 = vmatpush1.bf16.msra.mxu0 %v893
        %984 = vmatprep.subr.bf16.mxu0 0
        %985 = vmatpush1.bf16.msra.mxu0 %v896
        %986 = vmatprep.subr.bf16.mxu0 0
        %987 = vmatpush1.bf16.msra.mxu0 %v899
        %988 = vmatprep.subr.bf16.mxu0 0
        %989 = vmatpush1.bf16.msra.mxu0 %v902
        %990 = vmatprep.subr.bf16.mxu0 0
        %991 = vmatpush1.bf16.msra.mxu0 %v905
        %992 = vmatprep.subr.bf16.mxu0 0
        %993 = vmatpush1.bf16.msra.mxu0 %v908
        %994 = vmatprep.subr.bf16.mxu0 0
        %995 = vmatpush1.bf16.msra.mxu0 %v911
        %996 = vmatprep.subr.bf16.mxu0 0
        %997 = vmatpush1.bf16.msra.mxu0 %v914
        %998 = vmatprep.subr.bf16.mxu0 0
        %999 = vmatpush1.bf16.msra.mxu0 0
        %1000 = vmatprep.subr.bf16.mxu0 0
        %1001 = vmatpush1.bf16.msra.mxu0 0
        %1002 = vmatprep.subr.bf16.mxu0 0
        %1003 = vmatpush1.bf16.msra.mxu0 0
        %1004 = vmatprep.subr.bf16.mxu0 0
        %1005 = vmatpush1.bf16.msra.mxu0 0
        %1006 = vmatprep.subr.bf16.mxu0 0
        %1007 = vmatpush1.bf16.msra.mxu0 0
        %1008 = vmatprep.subr.bf16.mxu0 0
        %1009 = vmatpush1.bf16.msra.mxu0 0
        %1010 = vmatprep.subr.bf16.mxu0 0
        %1011 = vmatpush1.bf16.msra.mxu0 0
        %1012 = vmatprep.subr.bf16.mxu0 0
        %1013 = vmatpush1.bf16.msra.mxu0 0
        %1014 = vmatprep.mubr.bf16.mxu0 0
        %1015 = vmatmul.mubr.bf16.gmra.mrb[0].mxu0 %v761
        %v1016 = vpop.f32.mrb[0].mxu0
        %v1017 = vadd.f32 %v807, %v1016
        %v1018 = vpop.f32.mrb[0].mxu0
        %v1019 = vpop.f32.mrb[0].mxu0
        %v1020 = vadd.f32 %v807, %v1019
        %v1021 = vpop.f32.mrb[0].mxu0
        %1022 = vdwg.mxu0
        %v1023 = vpack.c.bf16 %v978, %v974
        %v1024 = vpack.c.bf16 %v980, %v976
        %v1025 = vpack.c.bf16 %v1020, %v1017
        %1026 = vst [vmem:[#allocation2] sm:$0xff] %v1023
        %1027 = vst [vmem:[#allocation2 + $0x8] sm:$0xff] %v1024
        %1028 = vst [vmem:[#allocation2 + $0x10] sm:$0xff] %v1025
        %v1029 = vld [vmem:[#allocation2] sm:$0xff]
        %v1030 = vld [vmem:[#allocation2 + $0x8] sm:$0xff]
        %v1031 = vld [vmem:[#allocation2 + $0x10] sm:$0xff]
        %vm1032 = vcmask 261120
        %v1034 = vsel %vm1032, %v1029, 0
        %v1037 = vsel %vm1032, %v1030, 0
        %1039 = vmatprep.subr.bf16.mxu0 0
        %1040 = vmatpush1.bf16.xpose.msra.mxu0 %v1037
        %1041 = vmatprep.subr.bf16.mxu0 0
        %1042 = vmatpush1.bf16.xpose.msra.mxu0 0
        %1043 = vmatprep.subr.bf16.mxu0 0
        %1044 = vmatpush1.bf16.xpose.msra.mxu0 0
        %1045 = vmatprep.subr.bf16.mxu0 0
        %1046 = vmatpush1.bf16.xpose.msra.mxu0 0
        %1047 = vmatprep.subr.bf16.mxu0 0
        %1048 = vmatpush1.bf16.xpose.msra.mxu0 0
        %1049 = vmatprep.subr.bf16.mxu0 0
        %1050 = vmatpush1.bf16.xpose.msra.mxu0 0
        %1051 = vmatprep.subr.bf16.mxu0 0
        %1052 = vmatpush1.bf16.xpose.msra.mxu0 0
        %1053 = vmatprep.subr.bf16.mxu0 0
        %1054 = vmatpush1.bf16.xpose.msra.mxu0 0
        %1055 = vmatprep.subr.bf16.mxu0 0
        %1056 = vmatpush1.bf16.xpose.msra.mxu0 0
        %1057 = vmatprep.subr.bf16.mxu0 0
        %1058 = vmatpush1.bf16.xpose.msra.mxu0 0
        %1059 = vmatprep.subr.bf16.mxu0 0
        %1060 = vmatpush1.bf16.xpose.msra.mxu0 0
        %1061 = vmatprep.subr.bf16.mxu0 0
        %1062 = vmatpush1.bf16.xpose.msra.mxu0 0
        %1063 = vmatprep.subr.bf16.mxu0 0
        %1064 = vmatpush1.bf16.xpose.msra.mxu0 0
        %1065 = vmatprep.subr.bf16.mxu0 0
        %1066 = vmatpush1.bf16.xpose.msra.mxu0 0
        %1067 = vmatprep.subr.bf16.mxu0 0
        %1068 = vmatpush1.bf16.xpose.msra.mxu0 0
        %1069 = vmatprep.subr.bf16.mxu0 0
        %1070 = vmatpush1.bf16.xpose.msra.mxu0 0
        %1071 = vmatprep.mubr.bf16.mxu0 0
        %1072 = vmatmul.mubr.bf16.gmra.mrb[0].mxu0 %v1034
        %v1073 = vpop.f32.mrb[0].mxu0
        %v1074 = vadd.f32 0.0, %v1073
        %v1075 = vpop.f32.mrb[0].mxu0
        %v1076 = vpop.f32.mrb[0].mxu0
        %v1077 = vadd.f32 0.0, %v1076
        %v1078 = vpop.f32.mrb[0].mxu0
        %1079 = vdwg.mxu0
        %v1080 = vmul.f32 %v1074, 0.17677669
        %v1081 = vmul.f32 %v1077, 0.17677669
        %vm1082 = vcmask 130048
        %v1083 = vsel %vm1082, %v1080, -inf
        %1084 = vmax.xlane.f32.xlu0 %v1083
        %v1085 = vpop.xlane.xlu0 %1084
        %v1086 = vsel %vm1082, %v1081, -inf
        %1087 = vmax.xlane.f32.xlu0 %v1086
        %v1088 = vpop.xlane.xlu0 %1087
        %v1089 = vsub.f32 %v1080, %v1085
        %v1090 = vsub.f32 %v1081, %v1088
        %v1091 = vmul.f32 %v1089, 1.442695
        %v1092 = vpow.pop %v1091
        %v1093 = vmul.f32 %v1090, 1.442695
        %v1094 = vpow.pop %v1093
        %v1095 = vsel %vm1082, %v1092, 0.0
        %1096 = vadd.xlane.f32.xlu0 %v1095
        %v1097 = vpop.xlane.xlu0 %1096
        %v1098 = vsel %vm1082, %v1094, 0.0
        %1099 = vadd.xlane.f32.xlu0 %v1098
        %v1100 = vpop.xlane.xlu0 %1099
        %v1101 = vrcp.pop %v1097
        %v1102 = vrcp.pop %v1100
        %v1103 = vmul.f32 %v1092, %v1101
        %v1104 = vmul.f32 %v1094, %v1102
        %v1105 = vpack.c.bf16 %v1104, %v1103
        %v1107 = vsel %vm1082, %v1105, 0
        %1109 = vmatprep.subr.bf16.mxu0 0
        %1110 = vmatpush1.bf16.msra.mxu0 %v1031
        %1111 = vmatprep.subr.bf16.mxu0 0
        %1112 = vmatpush1.bf16.msra.mxu0 0
        %1113 = vmatprep.subr.bf16.mxu0 0
        %1114 = vmatpush1.bf16.msra.mxu0 0
        %1115 = vmatprep.subr.bf16.mxu0 0
        %1116 = vmatpush1.bf16.msra.mxu0 0
        %1117 = vmatprep.subr.bf16.mxu0 0
        %1118 = vmatpush1.bf16.msra.mxu0 0
        %1119 = vmatprep.subr.bf16.mxu0 0
        %1120 = vmatpush1.bf16.msra.mxu0 0
        %1121 = vmatprep.subr.bf16.mxu0 0
        %1122 = vmatpush1.bf16.msra.mxu0 0
        %1123 = vmatprep.subr.bf16.mxu0 0
        %1124 = vmatpush1.bf16.msra.mxu0 0
        %1125 = vmatprep.subr.bf16.mxu0 0
        %1126 = vmatpush1.bf16.msra.mxu0 0
        %1127 = vmatprep.subr.bf16.mxu0 0
        %1128 = vmatpush1.bf16.msra.mxu0 0
        %1129 = vmatprep.subr.bf16.mxu0 0
        %1130 = vmatpush1.bf16.msra.mxu0 0
        %1131 = vmatprep.subr.bf16.mxu0 0
        %1132 = vmatpush1.bf16.msra.mxu0 0
        %1133 = vmatprep.subr.bf16.mxu0 0
        %1134 = vmatpush1.bf16.msra.mxu0 0
        %1135 = vmatprep.subr.bf16.mxu0 0
        %1136 = vmatpush1.bf16.msra.mxu0 0
        %1137 = vmatprep.subr.bf16.mxu0 0
        %1138 = vmatpush1.bf16.msra.mxu0 0
        %1139 = vmatprep.subr.bf16.mxu0 0
        %1140 = vmatpush1.bf16.msra.mxu0 0
        %1141 = vmatprep.mubr.bf16.mxu0 0
        %1142 = vmatmul.mubr.bf16.gmra.mrb[0].mxu0 %v1107
        %v1143 = vpop.f32.mrb[0].mxu0
        %v1144 = vadd.f32 0.0, %v1143
        %v1145 = vpop.f32.mrb[0].mxu0
        %v1146 = vpop.f32.mrb[0].mxu0
        %v1147 = vadd.f32 0.0, %v1146
        %v1148 = vpop.f32.mrb[0].mxu0
        %1149 = vdwg.mxu0
        %v1150 = vpack.c.bf16 %v1147, %v1144
        %1151 = vst.msk [vmem:[#allocation3] sm:$0xff] %vm1032, %v1150
        %v1152 = vld [vmem:[#allocation2] sm:$0xff]
        %v1153 = vld [vmem:[#allocation2 + $0x8] sm:$0xff]
        %v1154 = vld [vmem:[#allocation2 + $0x10] sm:$0xff]
        %1156 = vrot.lane.b32.xlu0 %v1152, 96
        %v1157 = vpop.permute.xlu0 %1156
        %1159 = vrot.lane.b32.xlu0 %v1153, 96
        %v1160 = vpop.permute.xlu0 %1159
        %v1162 = vsel %vm1032, %v1157, 0
        %v1165 = vsel %vm1032, %v1160, 0
        %1167 = vmatprep.subr.bf16.mxu0 0
        %1168 = vmatpush1.bf16.xpose.msra.mxu0 %v1165
        %1169 = vmatprep.subr.bf16.mxu0 0
        %1170 = vmatpush1.bf16.xpose.msra.mxu0 0
        %1171 = vmatprep.subr.bf16.mxu0 0
        %1172 = vmatpush1.bf16.xpose.msra.mxu0 0
        %1173 = vmatprep.subr.bf16.mxu0 0
        %1174 = vmatpush1.bf16.xpose.msra.mxu0 0
        %1175 = vmatprep.subr.bf16.mxu0 0
        %1176 = vmatpush1.bf16.xpose.msra.mxu0 0
        %1177 = vmatprep.subr.bf16.mxu0 0
        %1178 = vmatpush1.bf16.xpose.msra.mxu0 0
        %1179 = vmatprep.subr.bf16.mxu0 0
        %1180 = vmatpush1.bf16.xpose.msra.mxu0 0
        %1181 = vmatprep.subr.bf16.mxu0 0
        %1182 = vmatpush1.bf16.xpose.msra.mxu0 0
        %1183 = vmatprep.subr.bf16.mxu0 0
        %1184 = vmatpush1.bf16.xpose.msra.mxu0 0
        %1185 = vmatprep.subr.bf16.mxu0 0
        %1186 = vmatpush1.bf16.xpose.msra.mxu0 0
        %1187 = vmatprep.subr.bf16.mxu0 0
        %1188 = vmatpush1.bf16.xpose.msra.mxu0 0
        %1189 = vmatprep.subr.bf16.mxu0 0
        %1190 = vmatpush1.bf16.xpose.msra.mxu0 0
        %1191 = vmatprep.subr.bf16.mxu0 0
        %1192 = vmatpush1.bf16.xpose.msra.mxu0 0
        %1193 = vmatprep.subr.bf16.mxu0 0
        %1194 = vmatpush1.bf16.xpose.msra.mxu0 0
        %1195 = vmatprep.subr.bf16.mxu0 0
        %1196 = vmatpush1.bf16.xpose.msra.mxu0 0
        %1197 = vmatprep.subr.bf16.mxu0 0
        %1198 = vmatpush1.bf16.xpose.msra.mxu0 0
        %1199 = vmatprep.mubr.bf16.mxu0 0
        %1200 = vmatmul.mubr.bf16.gmra.mrb[0].mxu0 %v1162
        %v1201 = vpop.f32.mrb[0].mxu0
        %v1202 = vadd.f32 0.0, %v1201
        %v1203 = vpop.f32.mrb[0].mxu0
        %v1204 = vpop.f32.mrb[0].mxu0
        %v1205 = vadd.f32 0.0, %v1204
        %v1206 = vpop.f32.mrb[0].mxu0
        %1207 = vdwg.mxu0
        %v1208 = vmul.f32 %v1202, 0.17677669
        %v1209 = vmul.f32 %v1205, 0.17677669
        %v1210 = vsel %vm1082, %v1208, -inf
        %1211 = vmax.xlane.f32.xlu0 %v1210
        %v1212 = vpop.xlane.xlu0 %1211
        %v1213 = vsel %vm1082, %v1209, -inf
        %1214 = vmax.xlane.f32.xlu0 %v1213
        %v1215 = vpop.xlane.xlu0 %1214
        %v1216 = vsub.f32 %v1208, %v1212
        %v1217 = vsub.f32 %v1209, %v1215
        %v1218 = vmul.f32 %v1216, 1.442695
        %v1219 = vpow.pop %v1218
        %v1220 = vmul.f32 %v1217, 1.442695
        %v1221 = vpow.pop %v1220
        %v1222 = vsel %vm1082, %v1219, 0.0
        %1223 = vadd.xlane.f32.xlu0 %v1222
        %v1224 = vpop.xlane.xlu0 %1223
        %v1225 = vsel %vm1082, %v1221, 0.0
        %1226 = vadd.xlane.f32.xlu0 %v1225
        %v1227 = vpop.xlane.xlu0 %1226
        %v1228 = vrcp.pop %v1224
        %v1229 = vrcp.pop %v1227
        %v1230 = vmul.f32 %v1219, %v1228
        %v1231 = vmul.f32 %v1221, %v1229
        %v1232 = vpack.c.bf16 %v1231, %v1230
        %1234 = vrot.lane.b32.xlu0 %v1154, 96
        %v1235 = vpop.permute.xlu0 %1234
        %v1238 = vsel %vm1082, %v1232, 0
        %1240 = vmatprep.subr.bf16.mxu0 0
        %1241 = vmatpush1.bf16.msra.mxu0 %v1235
        %1242 = vmatprep.subr.bf16.mxu0 0
        %1243 = vmatpush1.bf16.msra.mxu0 0
        %1244 = vmatprep.subr.bf16.mxu0 0
        %1245 = vmatpush1.bf16.msra.mxu0 0
        %1246 = vmatprep.subr.bf16.mxu0 0
        %1247 = vmatpush1.bf16.msra.mxu0 0
        %1248 = vmatprep.subr.bf16.mxu0 0
        %1249 = vmatpush1.bf16.msra.mxu0 0
        %1250 = vmatprep.subr.bf16.mxu0 0
        %1251 = vmatpush1.bf16.msra.mxu0 0
        %1252 = vmatprep.subr.bf16.mxu0 0
        %1253 = vmatpush1.bf16.msra.mxu0 0
        %1254 = vmatprep.subr.bf16.mxu0 0
        %1255 = vmatpush1.bf16.msra.mxu0 0
        %1256 = vmatprep.subr.bf16.mxu0 0
        %1257 = vmatpush1.bf16.msra.mxu0 0
        %1258 = vmatprep.subr.bf16.mxu0 0
        %1259 = vmatpush1.bf16.msra.mxu0 0
        %1260 = vmatprep.subr.bf16.mxu0 0
        %1261 = vmatpush1.bf16.msra.mxu0 0
        %1262 = vmatprep.subr.bf16.mxu0 0
        %1263 = vmatpush1.bf16.msra.mxu0 0
        %1264 = vmatprep.subr.bf16.mxu0 0
        %1265 = vmatpush1.bf16.msra.mxu0 0
        %1266 = vmatprep.subr.bf16.mxu0 0
        %1267 = vmatpush1.bf16.msra.mxu0 0
        %1268 = vmatprep.subr.bf16.mxu0 0
        %1269 = vmatpush1.bf16.msra.mxu0 0
        %1270 = vmatprep.subr.bf16.mxu0 0
        %1271 = vmatpush1.bf16.msra.mxu0 0
        %1272 = vmatprep.mubr.bf16.mxu0 0
        %1273 = vmatmul.mubr.bf16.gmra.mrb[0].mxu0 %v1238
        %v1274 = vpop.f32.mrb[0].mxu0
        %v1275 = vadd.f32 0.0, %v1274
        %v1276 = vpop.f32.mrb[0].mxu0
        %v1277 = vpop.f32.mrb[0].mxu0
        %v1278 = vadd.f32 0.0, %v1277
        %v1279 = vpop.f32.mrb[0].mxu0
        %1280 = vdwg.mxu0
        %v1281 = vpack.c.bf16 %v1278, %v1275
        %1283 = vrot.lane.b32.xlu0 %v1281, 32
        %v1284 = vpop.permute.xlu0 %1283
        %vm1286 = vcmask 523520
        %1287 = vst.msk [vmem:[#allocation3] sm:$0xff] %vm1286, %v1284
        %v1288 = vld [vmem:[#allocation2] sm:$0xff]
        %v1289 = vld [vmem:[#allocation2 + $0x8] sm:$0xff]
        %v1290 = vld [vmem:[#allocation2 + $0x10] sm:$0xff]
        %1292 = vrot.lane.b32.xlu0 %v1288, 64
        %v1293 = vpop.permute.xlu0 %1292
        %1295 = vrot.lane.b32.xlu0 %v1289, 64
        %v1296 = vpop.permute.xlu0 %1295
        %v1298 = vsel %vm1032, %v1293, 0
        %v1301 = vsel %vm1032, %v1296, 0
        %1303 = vmatprep.subr.bf16.mxu0 0
        %1304 = vmatpush1.bf16.xpose.msra.mxu0 %v1301
        %1305 = vmatprep.subr.bf16.mxu0 0
        %1306 = vmatpush1.bf16.xpose.msra.mxu0 0
        %1307 = vmatprep.subr.bf16.mxu0 0
        %1308 = vmatpush1.bf16.xpose.msra.mxu0 0
        %1309 = vmatprep.subr.bf16.mxu0 0
        %1310 = vmatpush1.bf16.xpose.msra.mxu0 0
        %1311 = vmatprep.subr.bf16.mxu0 0
        %1312 = vmatpush1.bf16.xpose.msra.mxu0 0
        %1313 = vmatprep.subr.bf16.mxu0 0
        %1314 = vmatpush1.bf16.xpose.msra.mxu0 0
        %1315 = vmatprep.subr.bf16.mxu0 0
        %1316 = vmatpush1.bf16.xpose.msra.mxu0 0
        %1317 = vmatprep.subr.bf16.mxu0 0
        %1318 = vmatpush1.bf16.xpose.msra.mxu0 0
        %1319 = vmatprep.subr.bf16.mxu0 0
        %1320 = vmatpush1.bf16.xpose.msra.mxu0 0
        %1321 = vmatprep.subr.bf16.mxu0 0
        %1322 = vmatpush1.bf16.xpose.msra.mxu0 0
        %1323 = vmatprep.subr.bf16.mxu0 0
        %1324 = vmatpush1.bf16.xpose.msra.mxu0 0
        %1325 = vmatprep.subr.bf16.mxu0 0
        %1326 = vmatpush1.bf16.xpose.msra.mxu0 0
        %1327 = vmatprep.subr.bf16.mxu0 0
        %1328 = vmatpush1.bf16.xpose.msra.mxu0 0
        %1329 = vmatprep.subr.bf16.mxu0 0
        %1330 = vmatpush1.bf16.xpose.msra.mxu0 0
        %1331 = vmatprep.subr.bf16.mxu0 0
        %1332 = vmatpush1.bf16.xpose.msra.mxu0 0
        %1333 = vmatprep.subr.bf16.mxu0 0
        %1334 = vmatpush1.bf16.xpose.msra.mxu0 0
        %1335 = vmatprep.mubr.bf16.mxu0 0
        %1336 = vmatmul.mubr.bf16.gmra.mrb[0].mxu0 %v1298
        %v1337 = vpop.f32.mrb[0].mxu0
        %v1338 = vadd.f32 0.0, %v1337
        %v1339 = vpop.f32.mrb[0].mxu0
        %v1340 = vpop.f32.mrb[0].mxu0
        %v1341 = vadd.f32 0.0, %v1340
        %v1342 = vpop.f32.mrb[0].mxu0
        %1343 = vdwg.mxu0
        %v1344 = vmul.f32 %v1338, 0.17677669
        %v1345 = vmul.f32 %v1341, 0.17677669
        %v1346 = vsel %vm1082, %v1344, -inf
        %1347 = vmax.xlane.f32.xlu0 %v1346
        %v1348 = vpop.xlane.xlu0 %1347
        %v1349 = vsel %vm1082, %v1345, -inf
        %1350 = vmax.xlane.f32.xlu0 %v1349
        %v1351 = vpop.xlane.xlu0 %1350
        %v1352 = vsub.f32 %v1344, %v1348
        %v1353 = vsub.f32 %v1345, %v1351
        %v1354 = vmul.f32 %v1352, 1.442695
        %v1355 = vpow.pop %v1354
        %v1356 = vmul.f32 %v1353, 1.442695
        %v1357 = vpow.pop %v1356
        %v1358 = vsel %vm1082, %v1355, 0.0
        %1359 = vadd.xlane.f32.xlu0 %v1358
        %v1360 = vpop.xlane.xlu0 %1359
        %v1361 = vsel %vm1082, %v1357, 0.0
        %1362 = vadd.xlane.f32.xlu0 %v1361
        %v1363 = vpop.xlane.xlu0 %1362
        %v1364 = vrcp.pop %v1360
        %v1365 = vrcp.pop %v1363
        %v1366 = vmul.f32 %v1355, %v1364
        %v1367 = vmul.f32 %v1357, %v1365
        %v1368 = vpack.c.bf16 %v1367, %v1366
        %1370 = vrot.lane.b32.xlu0 %v1290, 64
        %v1371 = vpop.permute.xlu0 %1370
        %v1374 = vsel %vm1082, %v1368, 0
        %1376 = vmatprep.subr.bf16.mxu0 0
        %1377 = vmatpush1.bf16.msra.mxu0 %v1371
        %1378 = vmatprep.subr.bf16.mxu0 0
        %1379 = vmatpush1.bf16.msra.mxu0 0
        %1380 = vmatprep.subr.bf16.mxu0 0
        %1381 = vmatpush1.bf16.msra.mxu0 0
        %1382 = vmatprep.subr.bf16.mxu0 0
        %1383 = vmatpush1.bf16.msra.mxu0 0
        %1384 = vmatprep.subr.bf16.mxu0 0
        %1385 = vmatpush1.bf16.msra.mxu0 0
        %1386 = vmatprep.subr.bf16.mxu0 0
        %1387 = vmatpush1.bf16.msra.mxu0 0
        %1388 = vmatprep.subr.bf16.mxu0 0
        %1389 = vmatpush1.bf16.msra.mxu0 0
        %1390 = vmatprep.subr.bf16.mxu0 0
        %1391 = vmatpush1.bf16.msra.mxu0 0
        %1392 = vmatprep.subr.bf16.mxu0 0
        %1393 = vmatpush1.bf16.msra.mxu0 0
        %1394 = vmatprep.subr.bf16.mxu0 0
        %1395 = vmatpush1.bf16.msra.mxu0 0
        %1396 = vmatprep.subr.bf16.mxu0 0
        %1397 = vmatpush1.bf16.msra.mxu0 0
        %1398 = vmatprep.subr.bf16.mxu0 0
        %1399 = vmatpush1.bf16.msra.mxu0 0
        %1400 = vmatprep.subr.bf16.mxu0 0
        %1401 = vmatpush1.bf16.msra.mxu0 0
        %1402 = vmatprep.subr.bf16.mxu0 0
        %1403 = vmatpush1.bf16.msra.mxu0 0
        %1404 = vmatprep.subr.bf16.mxu0 0
        %1405 = vmatpush1.bf16.msra.mxu0 0
        %1406 = vmatprep.subr.bf16.mxu0 0
        %1407 = vmatpush1.bf16.msra.mxu0 0
        %1408 = vmatprep.mubr.bf16.mxu0 0
        %1409 = vmatmul.mubr.bf16.gmra.mrb[0].mxu0 %v1374
        %v1410 = vpop.f32.mrb[0].mxu0
        %v1411 = vadd.f32 0.0, %v1410
        %v1412 = vpop.f32.mrb[0].mxu0
        %v1413 = vpop.f32.mrb[0].mxu0
        %v1414 = vadd.f32 0.0, %v1413
        %v1415 = vpop.f32.mrb[0].mxu0
        %1416 = vdwg.mxu0
        %v1417 = vpack.c.bf16 %v1414, %v1411
        %1419 = vrot.lane.b32.xlu0 %v1417, 64
        %v1420 = vpop.permute.xlu0 %1419
        %vm1422 = vcmask 785920
        %1423 = vst.msk [vmem:[#allocation3] sm:$0xff] %vm1422, %v1420
        %v1424 = vld [vmem:[#allocation2] sm:$0xff]
        %v1425 = vld [vmem:[#allocation2 + $0x8] sm:$0xff]
        %v1426 = vld [vmem:[#allocation2 + $0x10] sm:$0xff]
        %1428 = vrot.lane.b32.xlu0 %v1424, 32
        %v1429 = vpop.permute.xlu0 %1428
        %1431 = vrot.lane.b32.xlu0 %v1425, 32
        %v1432 = vpop.permute.xlu0 %1431
        %v1434 = vsel %vm1032, %v1429, 0
        %v1437 = vsel %vm1032, %v1432, 0
        %1439 = vmatprep.subr.bf16.mxu0 0
        %1440 = vmatpush1.bf16.xpose.msra.mxu0 %v1437
        %1441 = vmatprep.subr.bf16.mxu0 0
        %1442 = vmatpush1.bf16.xpose.msra.mxu0 0
        %1443 = vmatprep.subr.bf16.mxu0 0
        %1444 = vmatpush1.bf16.xpose.msra.mxu0 0
        %1445 = vmatprep.subr.bf16.mxu0 0
        %1446 = vmatpush1.bf16.xpose.msra.mxu0 0
        %1447 = vmatprep.subr.bf16.mxu0 0
        %1448 = vmatpush1.bf16.xpose.msra.mxu0 0
        %1449 = vmatprep.subr.bf16.mxu0 0
        %1450 = vmatpush1.bf16.xpose.msra.mxu0 0
        %1451 = vmatprep.subr.bf16.mxu0 0
        %1452 = vmatpush1.bf16.xpose.msra.mxu0 0
        %1453 = vmatprep.subr.bf16.mxu0 0
        %1454 = vmatpush1.bf16.xpose.msra.mxu0 0
        %1455 = vmatprep.subr.bf16.mxu0 0
        %1456 = vmatpush1.bf16.xpose.msra.mxu0 0
        %1457 = vmatprep.subr.bf16.mxu0 0
        %1458 = vmatpush1.bf16.xpose.msra.mxu0 0
        %1459 = vmatprep.subr.bf16.mxu0 0
        %1460 = vmatpush1.bf16.xpose.msra.mxu0 0
        %1461 = vmatprep.subr.bf16.mxu0 0
        %1462 = vmatpush1.bf16.xpose.msra.mxu0 0
        %1463 = vmatprep.subr.bf16.mxu0 0
        %1464 = vmatpush1.bf16.xpose.msra.mxu0 0
        %1465 = vmatprep.subr.bf16.mxu0 0
        %1466 = vmatpush1.bf16.xpose.msra.mxu0 0
        %1467 = vmatprep.subr.bf16.mxu0 0
        %1468 = vmatpush1.bf16.xpose.msra.mxu0 0
        %1469 = vmatprep.subr.bf16.mxu0 0
        %1470 = vmatpush1.bf16.xpose.msra.mxu0 0
        %1471 = vmatprep.mubr.bf16.mxu0 0
        %1472 = vmatmul.mubr.bf16.gmra.mrb[0].mxu0 %v1434
        %v1473 = vpop.f32.mrb[0].mxu0
        %v1474 = vadd.f32 0.0, %v1473
        %v1475 = vpop.f32.mrb[0].mxu0
        %v1476 = vpop.f32.mrb[0].mxu0
        %v1477 = vadd.f32 0.0, %v1476
        %v1478 = vpop.f32.mrb[0].mxu0
        %1479 = vdwg.mxu0
        %v1480 = vmul.f32 %v1474, 0.17677669
        %v1481 = vmul.f32 %v1477, 0.17677669
        %v1482 = vsel %vm1082, %v1480, -inf
        %1483 = vmax.xlane.f32.xlu0 %v1482
        %v1484 = vpop.xlane.xlu0 %1483
        %v1485 = vsel %vm1082, %v1481, -inf
        %1486 = vmax.xlane.f32.xlu0 %v1485
        %v1487 = vpop.xlane.xlu0 %1486
        %v1488 = vsub.f32 %v1480, %v1484
        %v1489 = vsub.f32 %v1481, %v1487
        %v1490 = vmul.f32 %v1488, 1.442695
        %v1491 = vpow.pop %v1490
        %v1492 = vmul.f32 %v1489, 1.442695
        %v1493 = vpow.pop %v1492
        %v1494 = vsel %vm1082, %v1491, 0.0
        %1495 = vadd.xlane.f32.xlu0 %v1494
        %v1496 = vpop.xlane.xlu0 %1495
        %v1497 = vsel %vm1082, %v1493, 0.0
        %1498 = vadd.xlane.f32.xlu0 %v1497
        %v1499 = vpop.xlane.xlu0 %1498
        %v1500 = vrcp.pop %v1496
        %v1501 = vrcp.pop %v1499
        %v1502 = vmul.f32 %v1491, %v1500
        %v1503 = vmul.f32 %v1493, %v1501
        %v1504 = vpack.c.bf16 %v1503, %v1502
        %1506 = vrot.lane.b32.xlu0 %v1426, 32
        %v1507 = vpop.permute.xlu0 %1506
        %v1510 = vsel %vm1082, %v1504, 0
        %1512 = vmatprep.subr.bf16.mxu0 0
        %1513 = vmatpush1.bf16.msra.mxu0 %v1507
        %1514 = vmatprep.subr.bf16.mxu0 0
        %1515 = vmatpush1.bf16.msra.mxu0 0
        %1516 = vmatprep.subr.bf16.mxu0 0
        %1517 = vmatpush1.bf16.msra.mxu0 0
        %1518 = vmatprep.subr.bf16.mxu0 0
        %1519 = vmatpush1.bf16.msra.mxu0 0
        %1520 = vmatprep.subr.bf16.mxu0 0
        %1521 = vmatpush1.bf16.msra.mxu0 0
        %1522 = vmatprep.subr.bf16.mxu0 0
        %1523 = vmatpush1.bf16.msra.mxu0 0
        %1524 = vmatprep.subr.bf16.mxu0 0
        %1525 = vmatpush1.bf16.msra.mxu0 0
        %1526 = vmatprep.subr.bf16.mxu0 0
        %1527 = vmatpush1.bf16.msra.mxu0 0
        %1528 = vmatprep.subr.bf16.mxu0 0
        %1529 = vmatpush1.bf16.msra.mxu0 0
        %1530 = vmatprep.subr.bf16.mxu0 0
        %1531 = vmatpush1.bf16.msra.mxu0 0
        %1532 = vmatprep.subr.bf16.mxu0 0
        %1533 = vmatpush1.bf16.msra.mxu0 0
        %1534 = vmatprep.subr.bf16.mxu0 0
        %1535 = vmatpush1.bf16.msra.mxu0 0
        %1536 = vmatprep.subr.bf16.mxu0 0
        %1537 = vmatpush1.bf16.msra.mxu0 0
        %1538 = vmatprep.subr.bf16.mxu0 0
        %1539 = vmatpush1.bf16.msra.mxu0 0
        %1540 = vmatprep.subr.bf16.mxu0 0
        %1541 = vmatpush1.bf16.msra.mxu0 0
        %1542 = vmatprep.subr.bf16.mxu0 0
        %1543 = vmatpush1.bf16.msra.mxu0 0
        %1544 = vmatprep.mubr.bf16.mxu0 0
        %1545 = vmatmul.mubr.bf16.gmra.mrb[0].mxu0 %v1510
        %v1546 = vpop.f32.mrb[0].mxu0
        %v1547 = vadd.f32 0.0, %v1546
        %v1548 = vpop.f32.mrb[0].mxu0
        %v1549 = vpop.f32.mrb[0].mxu0
        %v1550 = vadd.f32 0.0, %v1549
        %v1551 = vpop.f32.mrb[0].mxu0
        %1552 = vdwg.mxu0
        %v1553 = vpack.c.bf16 %v1550, %v1547
        %1555 = vrot.lane.b32.xlu0 %v1553, 96
        %v1556 = vpop.permute.xlu0 %1555
        %vm1558 = vcmask 1048320
        %1559 = vst.msk [vmem:[#allocation3] sm:$0xff] %vm1558, %v1556
        %v1560 = vld [vmem:[#allocation3] sm:$0xff]
        %v1561 = vld [vmem:[%s676] sm:$0xf]
        %v1562 = vld [vmem:[%s676 + $0x4] sm:$0xf]
        %v1563 = vld [vmem:[%s676 + $0x8] sm:$0xf]
        %v1564 = vld [vmem:[%s676 + $0xc] sm:$0xf]
        %v1565 = vld [vmem:[%s676 + $0x10] sm:$0xf]
        %v1566 = vld [vmem:[%s676 + $0x14] sm:$0xf]
        %v1567 = vld [vmem:[%s676 + $0x18] sm:$0xf]
        %v1568 = vld [vmem:[%s676 + $0x1c] sm:$0xf]
        %v1569 = vld [vmem:[%s676 + $0x20] sm:$0xf]
        %v1570 = vld [vmem:[%s676 + $0x24] sm:$0xf]
        %v1571 = vld [vmem:[%s676 + $0x28] sm:$0xf]
        %v1572 = vld [vmem:[%s676 + $0x2c] sm:$0xf]
        %v1573 = vld [vmem:[%s676 + $0x30] sm:$0xf]
        %v1574 = vld [vmem:[%s676 + $0x34] sm:$0xf]
        %v1575 = vld [vmem:[%s676 + $0x38] sm:$0xf]
        %v1576 = vld [vmem:[%s676 + $0x3c] sm:$0xf]
        %v1577 = vld [vmem:[%s679] sm:$0x1]
        %v1579 = vlaneseq
        %v1580 = vshrl.u32 %v1579, 7
        %v1581 = vsub.s32 0, %v1580
        %v1582 = vrot.slane %v1577, %v1581
        %v1600 = vunpack.c.l.b16 %v1561
        %v1601 = vunpack.c.l.b16 %v1562
        %v1602 = vunpack.c.l.b16 %v1563
        %v1603 = vunpack.c.l.b16 %v1564
        %v1604 = vunpack.c.l.b16 %v1565
        %v1605 = vunpack.c.l.b16 %v1566
        %v1606 = vunpack.c.l.b16 %v1567
        %v1607 = vunpack.c.l.b16 %v1568
        %v1608 = vunpack.c.l.b16 %v1569
        %v1609 = vunpack.c.l.b16 %v1570
        %v1610 = vunpack.c.l.b16 %v1571
        %v1611 = vunpack.c.l.b16 %v1572
        %v1612 = vunpack.c.l.b16 %v1573
        %v1613 = vunpack.c.l.b16 %v1574
        %v1614 = vunpack.c.l.b16 %v1575
        %v1615 = vunpack.c.l.b16 %v1576
        %v1616 = vpack.c.b16 %v1601, %v1600
        %v1617 = vpack.c.b16 %v1603, %v1602
        %v1618 = vpack.c.b16 %v1605, %v1604
        %v1619 = vpack.c.b16 %v1607, %v1606
        %v1620 = vpack.c.b16 %v1609, %v1608
        %v1621 = vpack.c.b16 %v1611, %v1610
        %v1622 = vpack.c.b16 %v1613, %v1612
        %v1623 = vpack.c.b16 %v1615, %v1614
        %1632 = vmatprep.subr.bf16.mxu0 0
        %1633 = vmatpush1.bf16.msra.mxu0 %v1616
        %1634 = vmatprep.subr.bf16.mxu0 0
        %1635 = vmatpush1.bf16.msra.mxu0 %v1617
        %1636 = vmatprep.subr.bf16.mxu0 0
        %1637 = vmatpush1.bf16.msra.mxu0 %v1618
        %1638 = vmatprep.subr.bf16.mxu0 0
        %1639 = vmatpush1.bf16.msra.mxu0 %v1619
        %1640 = vmatprep.subr.bf16.mxu0 0
        %1641 = vmatpush1.bf16.msra.mxu0 %v1620
        %1642 = vmatprep.subr.bf16.mxu0 0
        %1643 = vmatpush1.bf16.msra.mxu0 %v1621
        %1644 = vmatprep.subr.bf16.mxu0 0
        %1645 = vmatpush1.bf16.msra.mxu0 %v1622
        %1646 = vmatprep.subr.bf16.mxu0 0
        %1647 = vmatpush1.bf16.msra.mxu0 %v1623
        %1648 = vmatprep.subr.bf16.mxu0 0
        %1649 = vmatpush1.bf16.msra.mxu0 0
        %1650 = vmatprep.subr.bf16.mxu0 0
        %1651 = vmatpush1.bf16.msra.mxu0 0
        %1652 = vmatprep.subr.bf16.mxu0 0
        %1653 = vmatpush1.bf16.msra.mxu0 0
        %1654 = vmatprep.subr.bf16.mxu0 0
        %1655 = vmatpush1.bf16.msra.mxu0 0
        %1656 = vmatprep.subr.bf16.mxu0 0
        %1657 = vmatpush1.bf16.msra.mxu0 0
        %1658 = vmatprep.subr.bf16.mxu0 0
        %1659 = vmatpush1.bf16.msra.mxu0 0
        %1660 = vmatprep.subr.bf16.mxu0 0
        %1661 = vmatpush1.bf16.msra.mxu0 0
        %1662 = vmatprep.subr.bf16.mxu0 0
        %1663 = vmatpush1.bf16.msra.mxu0 0
        %1664 = vmatprep.mubr.bf16.mxu0 0
        %1665 = vmatmul.mubr.bf16.gmra.mrb[0].mxu0 %v1560
        %v1666 = vpop.f32.mrb[0].mxu0
        %v1667 = vadd.f32 %v1582, %v1666
        %v1668 = vpop.f32.mrb[0].mxu0
        %v1669 = vpop.f32.mrb[0].mxu0
        %v1670 = vadd.f32 %v1582, %v1669
        %v1671 = vpop.f32.mrb[0].mxu0
        %1672 = vdwg.mxu0
        %v1673 = vadd.f32 %v712, %v1667
        %v1674 = vadd.f32 %v713, %v1670
        %v1675 = vld [vmem:[%s682] sm:$0x1]
        %v1676 = vld [vmem:[%s685] sm:$0x1]
        %1677 = vadd.xlane.f32.xlu0 %v1673
        %v1678 = vpop.xlane.xlu0 %1677
        %1679 = vadd.xlane.f32.xlu0 %v1674
        %v1680 = vpop.xlane.xlu0 %1679
        %v1681 = vmul.f32 %v1678, %v720
        %v1682 = vmul.f32 %v1680, %v720
        %v1683 = vmul.f32 %v1673, %v1673
        %v1684 = vmul.f32 %v1674, %v1674
        %1685 = vadd.xlane.f32.xlu0 %v1683
        %v1686 = vpop.xlane.xlu0 %1685
        %1687 = vadd.xlane.f32.xlu0 %v1684
        %v1688 = vpop.xlane.xlu0 %1687
        %v1689 = vmul.f32 %v1686, %v720
        %v1690 = vmul.f32 %v1688, %v720
        %v1691 = vmul.f32 %v1681, %v1681
        %v1692 = vmul.f32 %v1682, %v1682
        %v1693 = vsub.f32 %v1689, %v1691
        %v1694 = vsub.f32 %v1690, %v1692
        %v1695 = vmax.f32 %v1693, 0.0
        %v1696 = vmax.f32 %v1694, 0.0
        %v1697 = vsub.f32 %v1673, %v1681
        %v1698 = vsub.f32 %v1674, %v1682
        %v1699 = vadd.f32 %v1695, 1e-06
        %v1700 = vadd.f32 %v1696, 1e-06
        %v1701 = vrsqrt.pop %v1699
        %v1702 = vrsqrt.pop %v1700
        %v1703 = vmul.f32 %v1697, %v1701
        %v1704 = vmul.f32 %v1698, %v1702
        %v1706 = vlaneseq
        %v1707 = vshrl.u32 %v1706, 7
        %v1708 = vsub.s32 0, %v1707
        %v1709 = vrot.slane %v1675, %v1708
        %v1711 = vmul.f32 %v1703, %v1709
        %v1712 = vmul.f32 %v1704, %v1709
        %v1714 = vlaneseq
        %v1715 = vshrl.u32 %v1714, 7
        %v1716 = vsub.s32 0, %v1715
        %v1717 = vrot.slane %v1676, %v1716
        %v1719 = vadd.f32 %v1711, %v1717
        %v1720 = vadd.f32 %v1712, %v1717
        %v1721 = vpack.c.bf16 %v1720, %v1719
        %v1722 = vld [vmem:[%s690] sm:$0xff]
        %v1723 = vld [vmem:[%s690 + $0x8] sm:$0xff]
        %v1724 = vld [vmem:[%s690 + $0x10] sm:$0xff]
        %v1725 = vld [vmem:[%s690 + $0x18] sm:$0xff]
        %v1726 = vld [vmem:[%s690 + $0x20] sm:$0xff]
        %v1727 = vld [vmem:[%s690 + $0x28] sm:$0xff]
        %v1728 = vld [vmem:[%s690 + $0x30] sm:$0xff]
        %v1729 = vld [vmem:[%s690 + $0x38] sm:$0xff]
        %v1730 = vld [vmem:[%s690 + $0x40] sm:$0xff]
        %v1731 = vld [vmem:[%s690 + $0x48] sm:$0xff]
        %v1732 = vld [vmem:[%s690 + $0x50] sm:$0xff]
        %v1733 = vld [vmem:[%s690 + $0x58] sm:$0xff]
        %v1734 = vld [vmem:[%s690 + $0x60] sm:$0xff]
        %v1735 = vld [vmem:[%s690 + $0x68] sm:$0xff]
        %v1736 = vld [vmem:[%s690 + $0x70] sm:$0xff]
        %v1737 = vld [vmem:[%s690 + $0x78] sm:$0xff]
        %v1738 = vld [vmem:[%s694] sm:$0x3]
        %v1740 = vlaneseq
        %v1741 = vshrl.u32 %v1740, 7
        %v1742 = vsub.s32 0, %v1741
        %v1743 = vrot.slane %v1738, %v1742
        %v1744 = vlaneseq
        %v1745 = vshrl.u32 %v1744, 7
        %v1746 = vsub.s32 1, %v1745
        %v1747 = vrot.slane %v1738, %v1746
        %v1766 = vunpack.c.l.b16 %v1722
        %v1767 = vunpack.c.h.b16 %v1722
        %v1768 = vunpack.c.l.b16 %v1723
        %v1769 = vunpack.c.h.b16 %v1723
        %v1770 = vunpack.c.l.b16 %v1724
        %v1771 = vunpack.c.h.b16 %v1724
        %v1772 = vunpack.c.l.b16 %v1725
        %v1773 = vunpack.c.h.b16 %v1725
        %v1774 = vunpack.c.l.b16 %v1726
        %v1775 = vunpack.c.h.b16 %v1726
        %v1776 = vunpack.c.l.b16 %v1727
        %v1777 = vunpack.c.h.b16 %v1727
        %v1778 = vunpack.c.l.b16 %v1728
        %v1779 = vunpack.c.h.b16 %v1728
        %v1780 = vunpack.c.l.b16 %v1729
        %v1781 = vunpack.c.h.b16 %v1729
        %v1782 = vunpack.c.l.b16 %v1730
        %v1783 = vunpack.c.h.b16 %v1730
        %v1784 = vunpack.c.l.b16 %v1731
        %v1785 = vunpack.c.h.b16 %v1731
        %v1786 = vunpack.c.l.b16 %v1732
        %v1787 = vunpack.c.h.b16 %v1732
        %v1788 = vunpack.c.l.b16 %v1733
        %v1789 = vunpack.c.h.b16 %v1733
        %v1790 = vunpack.c.l.b16 %v1734
        %v1791 = vunpack.c.h.b16 %v1734
        %v1792 = vunpack.c.l.b16 %v1735
        %v1793 = vunpack.c.h.b16 %v1735
        %v1794 = vunpack.c.l.b16 %v1736
        %v1795 = vunpack.c.h.b16 %v1736
        %v1796 = vunpack.c.l.b16 %v1737
        %v1797 = vunpack.c.h.b16 %v1737
        %v1798 = vpack.c.b16 %v1768, %v1766
        %v1799 = vpack.c.b16 %v1769, %v1767
        %v1800 = vpack.c.b16 %v1772, %v1770
        %v1801 = vpack.c.b16 %v1773, %v1771
        %v1802 = vpack.c.b16 %v1776, %v1774
        %v1803 = vpack.c.b16 %v1777, %v1775
        %v1804 = vpack.c.b16 %v1780, %v1778
        %v1805 = vpack.c.b16 %v1781, %v1779
        %v1806 = vpack.c.b16 %v1784, %v1782
        %v1807 = vpack.c.b16 %v1785, %v1783
        %v1808 = vpack.c.b16 %v1788, %v1786
        %v1809 = vpack.c.b16 %v1789, %v1787
        %v1810 = vpack.c.b16 %v1792, %v1790
        %v1811 = vpack.c.b16 %v1793, %v1791
        %v1812 = vpack.c.b16 %v1796, %v1794
        %v1813 = vpack.c.b16 %v1797, %v1795
        %1830 = vmatprep.subr.bf16.mxu0 %v1799
        %1831 = vmatpush1.bf16.msra.mxu0 %v1798
        %1832 = vmatprep.subr.bf16.mxu0 %v1801
        %1833 = vmatpush1.bf16.msra.mxu0 %v1800
        %1834 = vmatprep.subr.bf16.mxu0 %v1803
        %1835 = vmatpush1.bf16.msra.mxu0 %v1802
        %1836 = vmatprep.subr.bf16.mxu0 %v1805
        %1837 = vmatpush1.bf16.msra.mxu0 %v1804
        %1838 = vmatprep.subr.bf16.mxu0 %v1807
        %1839 = vmatpush1.bf16.msra.mxu0 %v1806
        %1840 = vmatprep.subr.bf16.mxu0 %v1809
        %1841 = vmatpush1.bf16.msra.mxu0 %v1808
        %1842 = vmatprep.subr.bf16.mxu0 %v1811
        %1843 = vmatpush1.bf16.msra.mxu0 %v1810
        %1844 = vmatprep.subr.bf16.mxu0 %v1813
        %1845 = vmatpush1.bf16.msra.mxu0 %v1812
        %1846 = vmatprep.subr.bf16.mxu0 0
        %1847 = vmatpush1.bf16.msra.mxu0 0
        %1848 = vmatprep.subr.bf16.mxu0 0
        %1849 = vmatpush1.bf16.msra.mxu0 0
        %1850 = vmatprep.subr.bf16.mxu0 0
        %1851 = vmatpush1.bf16.msra.mxu0 0
        %1852 = vmatprep.subr.bf16.mxu0 0
        %1853 = vmatpush1.bf16.msra.mxu0 0
        %1854 = vmatprep.subr.bf16.mxu0 0
        %1855 = vmatpush1.bf16.msra.mxu0 0
        %1856 = vmatprep.subr.bf16.mxu0 0
        %1857 = vmatpush1.bf16.msra.mxu0 0
        %1858 = vmatprep.subr.bf16.mxu0 0
        %1859 = vmatpush1.bf16.msra.mxu0 0
        %1860 = vmatprep.subr.bf16.mxu0 0
        %1861 = vmatpush1.bf16.msra.mxu0 0
        %1862 = vmatprep.mubr.bf16.mxu0 0
        %1863 = vmatmul.mubr.bf16.gmra.mrb[0].mxu0 %v1721
        %v1864 = vpop.f32.mrb[0].mxu0
        %v1865 = vadd.f32 %v1743, %v1864
        %v1866 = vpop.f32.mrb[0].mxu0
        %v1867 = vadd.f32 %v1747, %v1866
        %v1868 = vpop.f32.mrb[0].mxu0
        %v1869 = vadd.f32 %v1743, %v1868
        %v1870 = vpop.f32.mrb[0].mxu0
        %v1871 = vadd.f32 %v1747, %v1870
        %1872 = vdwg.mxu0
        %v1873 = vmul.f32 %v1865, 0.5
        %v1874 = vmul.f32 %v1867, 0.5
        %v1875 = vmul.f32 %v1869, 0.5
        %v1876 = vmul.f32 %v1871, 0.5
        %v1877 = vmul.f32 %v1865, 0.044715
        %v1878 = vmul.f32 %v1867, 0.044715
        %v1879 = vmul.f32 %v1869, 0.044715
        %v1880 = vmul.f32 %v1871, 0.044715
        %v1881 = vmul.f32 %v1877, %v1865
        %v1882 = vmul.f32 %v1878, %v1867
        %v1883 = vmul.f32 %v1879, %v1869
        %v1884 = vmul.f32 %v1880, %v1871
        %v1885 = vmul.f32 %v1881, %v1865
        %v1886 = vmul.f32 %v1882, %v1867
        %v1887 = vmul.f32 %v1883, %v1869
        %v1888 = vmul.f32 %v1884, %v1871
        %v1889 = vadd.f32 %v1865, %v1885
        %v1890 = vadd.f32 %v1867, %v1886
        %v1891 = vadd.f32 %v1869, %v1887
        %v1892 = vadd.f32 %v1871, %v1888
        %v1893 = vmul.f32 %v1889, 0.7978846
        %v1894 = vmul.f32 %v1890, 0.7978846
        %v1895 = vmul.f32 %v1891, 0.7978846
        %v1896 = vmul.f32 %v1892, 0.7978846
        %v1897 = vtanh.pop %v1893
        %v1898 = vtanh.pop %v1894
        %v1899 = vtanh.pop %v1895
        %v1900 = vtanh.pop %v1896
        %v1901 = vadd.f32 %v1897, 1.0
        %v1902 = vadd.f32 %v1898, 1.0
        %v1903 = vadd.f32 %v1899, 1.0
        %v1904 = vadd.f32 %v1900, 1.0
        %v1905 = vmul.f32 %v1873, %v1901
        %v1906 = vmul.f32 %v1874, %v1902
        %v1907 = vmul.f32 %v1875, %v1903
        %v1908 = vmul.f32 %v1876, %v1904
        %v1909 = vpack.c.bf16 %v1907, %v1905
        %v1910 = vpack.c.bf16 %v1908, %v1906
        %v1911 = vld [vmem:[%s699] sm:$0xf]
        %v1912 = vld [vmem:[%s699 + $0x4] sm:$0xf]
        %v1913 = vld [vmem:[%s699 + $0x8] sm:$0xf]
        %v1914 = vld [vmem:[%s699 + $0xc] sm:$0xf]
        %v1915 = vld [vmem:[%s699 + $0x10] sm:$0xf]
        %v1916 = vld [vmem:[%s699 + $0x14] sm:$0xf]
        %v1917 = vld [vmem:[%s699 + $0x18] sm:$0xf]
        %v1918 = vld [vmem:[%s699 + $0x1c] sm:$0xf]
        %v1919 = vld [vmem:[%s699 + $0x20] sm:$0xf]
        %v1920 = vld [vmem:[%s699 + $0x24] sm:$0xf]
        %v1921 = vld [vmem:[%s699 + $0x28] sm:$0xf]
        %v1922 = vld [vmem:[%s699 + $0x2c] sm:$0xf]
        %v1923 = vld [vmem:[%s699 + $0x30] sm:$0xf]
        %v1924 = vld [vmem:[%s699 + $0x34] sm:$0xf]
        %v1925 = vld [vmem:[%s699 + $0x38] sm:$0xf]
        %v1926 = vld [vmem:[%s699 + $0x3c] sm:$0xf]
        %v1927 = vld [vmem:[%s699 + $0x40] sm:$0xf]
        %v1928 = vld [vmem:[%s699 + $0x44] sm:$0xf]
        %v1929 = vld [vmem:[%s699 + $0x48] sm:$0xf]
        %v1930 = vld [vmem:[%s699 + $0x4c] sm:$0xf]
        %v1931 = vld [vmem:[%s699 + $0x50] sm:$0xf]
        %v1932 = vld [vmem:[%s699 + $0x54] sm:$0xf]
        %v1933 = vld [vmem:[%s699 + $0x58] sm:$0xf]
        %v1934 = vld [vmem:[%s699 + $0x5c] sm:$0xf]
        %v1935 = vld [vmem:[%s699 + $0x60] sm:$0xf]
        %v1936 = vld [vmem:[%s699 + $0x64] sm:$0xf]
        %v1937 = vld [vmem:[%s699 + $0x68] sm:$0xf]
        %v1938 = vld [vmem:[%s699 + $0x6c] sm:$0xf]
        %v1939 = vld [vmem:[%s699 + $0x70] sm:$0xf]
        %v1940 = vld [vmem:[%s699 + $0x74] sm:$0xf]
        %v1941 = vld [vmem:[%s699 + $0x78] sm:$0xf]
        %v1942 = vld [vmem:[%s699 + $0x7c] sm:$0xf]
        %v1943 = vld [vmem:[%s702] sm:$0x1]
        %v1945 = vlaneseq
        %v1946 = vshrl.u32 %v1945, 7
        %v1947 = vsub.s32 0, %v1946
        %v1948 = vrot.slane %v1943, %v1947
        %v1982 = vunpack.c.l.b16 %v1911
        %v1983 = vunpack.c.l.b16 %v1912
        %v1984 = vunpack.c.l.b16 %v1913
        %v1985 = vunpack.c.l.b16 %v1914
        %v1986 = vunpack.c.l.b16 %v1915
        %v1987 = vunpack.c.l.b16 %v1916
        %v1988 = vunpack.c.l.b16 %v1917
        %v1989 = vunpack.c.l.b16 %v1918
        %v1990 = vunpack.c.l.b16 %v1919
        %v1991 = vunpack.c.l.b16 %v1920
        %v1992 = vunpack.c.l.b16 %v1921
        %v1993 = vunpack.c.l.b16 %v1922
        %v1994 = vunpack.c.l.b16 %v1923
        %v1995 = vunpack.c.l.b16 %v1924
        %v1996 = vunpack.c.l.b16 %v1925
        %v1997 = vunpack.c.l.b16 %v1926
        %v1998 = vunpack.c.l.b16 %v1927
        %v1999 = vunpack.c.l.b16 %v1928
        %v2000 = vunpack.c.l.b16 %v1929
        %v2001 = vunpack.c.l.b16 %v1930
        %v2002 = vunpack.c.l.b16 %v1931
        %v2003 = vunpack.c.l.b16 %v1932
        %v2004 = vunpack.c.l.b16 %v1933
        %v2005 = vunpack.c.l.b16 %v1934
        %v2006 = vunpack.c.l.b16 %v1935
        %v2007 = vunpack.c.l.b16 %v1936
        %v2008 = vunpack.c.l.b16 %v1937
        %v2009 = vunpack.c.l.b16 %v1938
        %v2010 = vunpack.c.l.b16 %v1939
        %v2011 = vunpack.c.l.b16 %v1940
        %v2012 = vunpack.c.l.b16 %v1941
        %v2013 = vunpack.c.l.b16 %v1942
        %v2014 = vpack.c.b16 %v1983, %v1982
        %v2015 = vpack.c.b16 %v1985, %v1984
        %v2016 = vpack.c.b16 %v1987, %v1986
        %v2017 = vpack.c.b16 %v1989, %v1988
        %v2018 = vpack.c.b16 %v1991, %v1990
        %v2019 = vpack.c.b16 %v1993, %v1992
        %v2020 = vpack.c.b16 %v1995, %v1994
        %v2021 = vpack.c.b16 %v1997, %v1996
        %v2022 = vpack.c.b16 %v1999, %v1998
        %v2023 = vpack.c.b16 %v2001, %v2000
        %v2024 = vpack.c.b16 %v2003, %v2002
        %v2025 = vpack.c.b16 %v2005, %v2004
        %v2026 = vpack.c.b16 %v2007, %v2006
        %v2027 = vpack.c.b16 %v2009, %v2008
        %v2028 = vpack.c.b16 %v2011, %v2010
        %v2029 = vpack.c.b16 %v2013, %v2012
        %2046 = vmatprep.subr.bf16.mxu0 0
        %2047 = vmatpush1.bf16.msra.mxu0 %v2014
        %2048 = vmatprep.subr.bf16.mxu0 0
        %2049 = vmatpush1.bf16.msra.mxu0 %v2015
        %2050 = vmatprep.subr.bf16.mxu0 0
        %2051 = vmatpush1.bf16.msra.mxu0 %v2016
        %2052 = vmatprep.subr.bf16.mxu0 0
        %2053 = vmatpush1.bf16.msra.mxu0 %v2017
        %2054 = vmatprep.subr.bf16.mxu0 0
        %2055 = vmatpush1.bf16.msra.mxu0 %v2018
        %2056 = vmatprep.subr.bf16.mxu0 0
        %2057 = vmatpush1.bf16.msra.mxu0 %v2019
        %2058 = vmatprep.subr.bf16.mxu0 0
        %2059 = vmatpush1.bf16.msra.mxu0 %v2020
        %2060 = vmatprep.subr.bf16.mxu0 0
        %2061 = vmatpush1.bf16.msra.mxu0 %v2021
        %2062 = vmatprep.subr.bf16.mxu0 0
        %2063 = vmatpush1.bf16.msra.mxu0 %v2022
        %2064 = vmatprep.subr.bf16.mxu0 0
        %2065 = vmatpush1.bf16.msra.mxu0 %v2023
        %2066 = vmatprep.subr.bf16.mxu0 0
        %2067 = vmatpush1.bf16.msra.mxu0 %v2024
        %2068 = vmatprep.subr.bf16.mxu0 0
        %2069 = vmatpush1.bf16.msra.mxu0 %v2025
        %2070 = vmatprep.subr.bf16.mxu0 0
        %2071 = vmatpush1.bf16.msra.mxu0 %v2026
        %2072 = vmatprep.subr.bf16.mxu0 0
        %2073 = vmatpush1.bf16.msra.mxu0 %v2027
        %2074 = vmatprep.subr.bf16.mxu0 0
        %2075 = vmatpush1.bf16.msra.mxu0 %v2028
        %2076 = vmatprep.subr.bf16.mxu0 0
        %2077 = vmatpush1.bf16.msra.mxu0 %v2029
        %2078 = vmatprep.mubr.bf16.mxu0 %v1910
        %2079 = vmatmul.mubr.bf16.gmra.mrb[0].mxu0 %v1909
        %v2080 = vpop.f32.mrb[0].mxu0
        %v2081 = vadd.f32 %v1948, %v2080
        %v2082 = vpop.f32.mrb[0].mxu0
        %v2083 = vpop.f32.mrb[0].mxu0
        %v2084 = vadd.f32 %v1948, %v2083
        %v2085 = vpop.f32.mrb[0].mxu0
        %2086 = vdwg.mxu0
        %v2087 = vadd.f32 %v1673, %v2081
        %v2088 = vadd.f32 %v1674, %v2084
        %2089 = vst [vmem:[%s651] sm:$0xff] %v2087
        %2090 = vst [vmem:[%s651 + $0x8] sm:$0xff] %v2088
        %p2091 = scmp.eq.s32.totalorder %s34, 1
        // Predicated region
        $region85: #{vision_transformer_forward.3} parent=79 // pred_check
          %p2092 = pneg %p2091
        $region86: #{vision_transformer_forward.3} parent=79 // pred_check_branch
          %2094 = sbr.rel (%p2092) target = $region88
        $region87: #{vision_transformer_forward.3} parent=79 // pred_region
          %v2095 = vld [vmem:[%s13] sm:$0x1]
          %v2096 = vld [vmem:[%s14] sm:$0x1]
          %2097 = vadd.xlane.f32.xlu0 %v2087
          %v2098 = vpop.xlane.xlu0 %2097
          %2099 = vadd.xlane.f32.xlu0 %v2088
          %v2100 = vpop.xlane.xlu0 %2099
          %v2101 = vmul.f32 %v2098, %v720
          %v2102 = vmul.f32 %v2100, %v720
          %v2103 = vmul.f32 %v2087, %v2087
          %v2104 = vmul.f32 %v2088, %v2088
          %2105 = vadd.xlane.f32.xlu0 %v2103
          %v2106 = vpop.xlane.xlu0 %2105
          %2107 = vadd.xlane.f32.xlu0 %v2104
          %v2108 = vpop.xlane.xlu0 %2107
          %v2109 = vmul.f32 %v2106, %v720
          %v2110 = vmul.f32 %v2108, %v720
          %v2111 = vmul.f32 %v2101, %v2101
          %v2112 = vmul.f32 %v2102, %v2102
          %v2113 = vsub.f32 %v2109, %v2111
          %v2114 = vsub.f32 %v2110, %v2112
          %v2115 = vmax.f32 %v2113, 0.0
          %v2116 = vmax.f32 %v2114, 0.0
          %v2117 = vsub.f32 %v2087, %v2101
          %v2118 = vsub.f32 %v2088, %v2102
          %v2119 = vadd.f32 %v2115, 1e-06
          %v2120 = vadd.f32 %v2116, 1e-06
          %v2121 = vrsqrt.pop %v2119
          %v2122 = vrsqrt.pop %v2120
          %v2123 = vmul.f32 %v2117, %v2121
          %v2124 = vmul.f32 %v2118, %v2122
          %v2126 = vlaneseq
          %v2127 = vshrl.u32 %v2126, 7
          %v2128 = vsub.s32 0, %v2127
          %v2129 = vrot.slane %v2095, %v2128
          %v2131 = vmul.f32 %v2123, %v2129
          %v2132 = vmul.f32 %v2124, %v2129
          %v2134 = vlaneseq
          %v2135 = vshrl.u32 %v2134, 7
          %v2136 = vsub.s32 0, %v2135
          %v2137 = vrot.slane %v2096, %v2136
          %v2139 = vadd.f32 %v2131, %v2137
          %v2140 = vadd.f32 %v2132, %v2137
          %2141 = vst [vmem:[%s651] sm:$0xff] %v2139
          %2142 = vst [vmem:[%s651 + $0x8] sm:$0xff] %v2140
        $region88: #{vision_transformer_forward.3} parent=79 // pred_fallthru
          _
        %s2143 = sand.u32 %s429, 1
        %s2144 = scalar_lea.sflag [#allocation5], %s2143
        %s2145 = sand.u32 %s429, 1
        %s2146 = smul.addr %s2145, 16
        %s2147 = scalar_lea.vmem [#allocation4], %s2146
        // Predicated region
        $region89: #{vision_transformer_forward.3} parent=79 // pred_check
          %p2148 = pneg %p439
        $region90: #{vision_transformer_forward.3} parent=79 // pred_check_branch
          %2150 = sbr.rel (%p2148) target = $region92
        $region91: #{vision_transformer_forward.3} parent=79 // pred_region
          %s2152 = ssub.s32 256, 256
          %2153 = vsyncadd %s2144, %s2152
          %s2154 = smul.addr %s33, 2
          %s2155 = smul.addr %s2154, 128
          %s2156 = scalar_lea.hbm %s15, %s2155
          %s2157 = sshll.u32 %s2147, 4
          %s2158 = int_to_ptr.vmem [resolvable:$true] %s2157
          %2163 = dma.vmem_to_hbm [thread:$0]  %s2158, 256, %s2156, %s2144, 128, 128, 8
        $region92: #{vision_transformer_forward.3} parent=79 // pred_fallthru
          _
      $region80: #{vision_transformer_forward.3} parent=5 // pred_fallthru
        _
      %p2164 = scmp.le.s32.totalorder 2, %s24
      // Predicated region
      $region93: #{vision_transformer_forward.3} parent=5 // pred_check
        %p2165 = pneg %p2164
      $region94: #{vision_transformer_forward.3} parent=5 // pred_check_branch
        %2167 = sbr.rel (%p2165) target = $region96
      $region95: #{vision_transformer_forward.3} parent=5 // pred_region
        %s2168 = ssub.s32 %s24, 2
        // Predicated region
        $region97: #{vision_transformer_forward.3} parent=95 // pred_check
          %p2169 = pneg %p445
        $region98: #{vision_transformer_forward.3} parent=95 // pred_check_branch
          %2171 = sbr.rel (%p2169) target = $region100
        $region99: #{vision_transformer_forward.3} parent=95 // pred_region
          %s2172 = sand.u32 %s430, 1
          %s2173 = scalar_lea.sflag [#allocation5], %s2172
          %s2174 = sand.u32 %s430, 1
          %s2175 = smul.addr %s2174, 16
          %s2176 = scalar_lea.vmem [#allocation4], %s2175
          %2177 = dma.done %s2173, 256
        $region100: #{vision_transformer_forward.3} parent=95 // pred_fallthru
          _
      $region96: #{vision_transformer_forward.3} parent=5 // pred_fallthru
        _
    $region6: #{vision_transformer_forward.3} parent=1 // loop_footer
      %s28 = sadd.s32 1, %s24
    $region7: #{vision_transformer_forward.3} parent=1 // loop_footer_branch
      %23 = sbr.rel target = $region3
    $region8: #{vision_transformer_forward.3} parent=1 // loop_exit
      _
    %2178 = vsyncpa [#allocation5], 1
    %s2179 = scalar_lea.sflag [#allocation5], 1
    %2180 = vsyncpa %s2179, 1

</llo_original>
